<compile_context>
chip_gen: v5e
topology: v5e:2x2
jax: 0.10.0
libtpu: 0.0.40
codegen_flags: <defaults>
</compile_context>

<pallas_src>
import functools

import jax
import jax.numpy as jnp
from jax.experimental import pallas as pl
from jax.experimental.pallas import tpu as pltpu


# ------------------------------ kernel helpers ------------------------------ #

def _layernorm(h, g, b, eps):
    """LayerNorm over last dim with affine params — matches torch.nn.LayerNorm."""
    mu = jnp.mean(h, axis=-1, keepdims=True)
    var = jnp.mean(jnp.square(h - mu), axis=-1, keepdims=True)
    return (h - mu) * jax.lax.rsqrt(var + eps) * g + b


def _gelu_exact(y):
    """Exact (erf) GELU — matches HF BERT's default 'gelu' activation."""
    inv_sqrt2 = jnp.float32(0.7071067811865476)
    return 0.5 * y * (1.0 + jax.lax.erf(y * inv_sqrt2))


# ------------------------------- fused kernel ------------------------------- #

def _fused_encoder_kernel(
    x_ref,          # (B*S, Din)   input features (flattened over batch/seq)
    lin_w_ref,      # (Din, H)     input projection weight
    lin_b_ref,      # (1, H)       input projection bias
    pos_tok_ref,    # (B*S, H)     pos_emb + token_type_emb, pre-broadcast over batch
    emb_ln_g_ref,   # (1, H)
    emb_ln_b_ref,   # (1, H)
    wqkv_ref,       # (L, 3, H, H) stacked Q/K/V projection weights
    bqkv_ref,       # (L, 3, 1, H)
    wo_ref,         # (L, H, H)
    bo_ref,         # (L, 1, H)
    ln1_g_ref,      # (L, 1, H)
    ln1_b_ref,      # (L, 1, H)
    w1_ref,         # (L, H, I)
    b1_ref,         # (L, 1, I)
    w2_ref,         # (L, I, H)
    b2_ref,         # (L, 1, H)
    ln2_g_ref,      # (L, 1, H)
    ln2_b_ref,      # (L, 1, H)
    pool_ref,       # (B, B*S)     block-diagonal 1/S mean-pooling matrix
    o_ref,          # (B, H)       pooled output
    *, B, S, H, num_heads, num_layers, eps):
    dh = H // num_heads
    scale = jnp.float32(1.0 / float(dh) ** 0.5)

    # --- input projection: nn.Linear(input_dim, hidden_dim) ---
    h = jnp.dot(x_ref[...], lin_w_ref[...], preferred_element_type=jnp.float32)
    h = h + lin_b_ref[...]

    # --- BERT embeddings: inputs_embeds + position + token_type, then LN ---
    h = h + pos_tok_ref[...]                      # plain VPU add, no concat
    h = _layernorm(h, emb_ln_g_ref[...], emb_ln_b_ref[...], eps)

    # --- encoder layers (attention_mask = ones -> no masking) ---
    # NOTE: static unroll is fine at L=2; at real L=12 put layers on a grid
    # axis (or lax.fori_loop) so vreg live ranges stay bounded.
    for l in range(num_layers):
        q = (jnp.dot(h, wqkv_ref[l, 0], preferred_element_type=jnp.float32)
             + bqkv_ref[l, 0])
        k = (jnp.dot(h, wqkv_ref[l, 1], preferred_element_type=jnp.float32)
             + bqkv_ref[l, 1])
        v = (jnp.dot(h, wqkv_ref[l, 2], preferred_element_type=jnp.float32)
             + bqkv_ref[l, 2])

        # (B*S, H) -> (B, S, H): pure sublane-dim split, layout no-op (S == 8).
        q3 = q.reshape(B, S, H)
        k3 = k.reshape(B, S, H)
        v3 = v.reshape(B, S, H)

        # Per-head attention, batched over B with dot_general batch dims.
        ctx_heads = []
        for hh in range(num_heads):
            cs, ce = hh * dh, (hh + 1) * dh
            qh = q3[:, :, cs:ce]                  # (B, S, dh)
            kh = k3[:, :, cs:ce]
            vh = v3[:, :, cs:ce]
            sc = jnp.einsum('bqd,bkd->bqk', qh, kh,
                            preferred_element_type=jnp.float32) * scale
            sc = sc - jnp.max(sc, axis=-1, keepdims=True)
            p = jnp.exp(sc)
            p = p * pl.reciprocal(jnp.sum(p, axis=-1, keepdims=True),
                                  approx=True)
            ctx_heads.append(
                jnp.einsum('bqk,bkd->bqd', p, vh,
                           preferred_element_type=jnp.float32))

        # Context stays in registers — no VMEM scratch, no masked stores.
        ctx = jnp.concatenate(ctx_heads, axis=-1).reshape(B * S, H)

        attn_out = (jnp.dot(ctx, wo_ref[l], preferred_element_type=jnp.float32)
                    + bo_ref[l])
        h = _layernorm(h + attn_out, ln1_g_ref[l], ln1_b_ref[l], eps)

        inter = _gelu_exact(
            jnp.dot(h, w1_ref[l], preferred_element_type=jnp.float32) + b1_ref[l])
        ffn = (jnp.dot(inter, w2_ref[l], preferred_element_type=jnp.float32)
               + b2_ref[l])
        h = _layernorm(h + ffn, ln2_g_ref[l], ln2_b_ref[l], eps)

    # --- mean pool over the sequence dim: single pooling matmul, one store ---
    o_ref[...] = jnp.dot(pool_ref[...], h, preferred_element_type=jnp.float32)


# ------------------------------ forward wrapper ----------------------------- #

def transformer_encoder_forward(x, params, num_heads):
    B, S, Din = x.shape
    H = params["lin_w"].shape[1]
    L = params["wqkv"].shape[0]
    I = params["w1"].shape[2]

    # Precompute (B*S, H) positional + token-type sum wrapper-side (tiny XLA
    # broadcast, done outside the kernel -> no in-kernel concatenate).
    pos_tok = params["pos_emb"][:S] + params["tok_emb"][0][None, :]
    pos_tok_b = jnp.broadcast_to(pos_tok[None], (B, S, H)).reshape(B * S, H)

    # Block-diagonal mean-pooling matrix: pooled = pool_mat @ h  (single matmul).
    pool_mat = jnp.kron(jnp.eye(B, dtype=jnp.float32),
                        jnp.full((1, S), 1.0 / S, dtype=jnp.float32))

    x2d = x.reshape(B * S, Din)

    kernel = functools.partial(
        _fused_encoder_kernel,
        B=B, S=S, H=H, num_heads=num_heads, num_layers=L, eps=1e-12)

    def full(shape):
        return pl.BlockSpec(shape, lambda i, _n=len(shape): (0,) * _n)

    in_specs = [
        full((B * S, Din)),       # x
        full((Din, H)),           # lin_w
        full((1, H)),             # lin_b
        full((B * S, H)),         # pos_tok (pre-broadcast)
        full((1, H)),             # emb_ln_g
        full((1, H)),             # emb_ln_b
        full((L, 3, H, H)),       # wqkv
        full((L, 3, 1, H)),       # bqkv
        full((L, H, H)),          # wo
        full((L, 1, H)),          # bo
        full((L, 1, H)),          # ln1_g
        full((L, 1, H)),          # ln1_b
        full((L, H, I)),          # w1
        full((L, 1, I)),          # b1
        full((L, I, H)),          # w2
        full((L, 1, H)),          # b2
        full((L, 1, H)),          # ln2_g
        full((L, 1, H)),          # ln2_b
        full((B, B * S)),         # pool_mat
    ]

    return pl.pallas_call(
        kernel,
        out_shape=jax.ShapeDtypeStruct((B, H), jnp.float32),
        grid=(1,),
        in_specs=in_specs,
        out_specs=full((B, H)),
        compiler_params=pltpu.CompilerParams(
            dimension_semantics=("arbitrary",)),
    )(
        x2d,
        params["lin_w"], params["lin_b"],
        pos_tok_b,
        params["emb_ln_g"], params["emb_ln_b"],
        params["wqkv"], params["bqkv"],
        params["wo"], params["bo"],
        params["ln1_g"], params["ln1_b"],
        params["w1"], params["b1"],
        params["w2"], params["b2"],
        params["ln2_g"], params["ln2_b"],
        pool_mat,
    )


# ------------------------------ parameter setup ----------------------------- #

def init_params(input_dim, hidden, num_layers, max_seq, intermediate, seed=0):
    key = jax.random.PRNGKey(seed)

    def nxt():
        nonlocal key
        key, sub = jax.random.split(key)
        return sub

    std = 0.02
    rnd = lambda shape: (std * jax.random.normal(nxt(), shape)).astype(jnp.float32)
    zeros = lambda shape: jnp.zeros(shape, jnp.float32)
    ones = lambda shape: jnp.ones(shape, jnp.float32)

    params = {
        "lin_w": rnd((input_dim, hidden)),
        "lin_b": zeros((1, hidden)),
        "pos_emb": rnd((max_seq, hidden)),
        "tok_emb": rnd((2, hidden)),          # token_type_ids default to 0 -> row 0
        "emb_ln_g": ones((1, hidden)),
        "emb_ln_b": zeros((1, hidden)),
    }

    wqkv, bqkv, wo, bo = [], [], [], []
    ln1_g, ln1_b, w1, b1, w2, b2, ln2_g, ln2_b = ([] for _ in range(8))
    for _ in range(num_layers):
        wq, wk, wv = (rnd((hidden, hidden)) for _ in range(3))
        wqkv.append(jnp.stack([wq, wk, wv], axis=0))           # (3, H, H)
        bqkv.append(zeros((3, 1, hidden)))
        wo.append(rnd((hidden, hidden)));       bo.append(zeros((1, hidden)))
        ln1_g.append(ones((1, hidden)));        ln1_b.append(zeros((1, hidden)))
        w1.append(rnd((hidden, intermediate))); b1.append(zeros((1, intermediate)))
        w2.append(rnd((intermediate, hidden))); b2.append(zeros((1, hidden)))
        ln2_g.append(ones((1, hidden)));        ln2_b.append(zeros((1, hidden)))

    stack = lambda xs: jnp.stack(xs, axis=0)
    params.update({
        "wqkv": stack(wqkv), "bqkv": stack(bqkv),
        "wo": stack(wo), "bo": stack(bo),
        "ln1_g": stack(ln1_g), "ln1_b": stack(ln1_b),
        "w1": stack(w1), "b1": stack(b1),
        "w2": stack(w2), "b2": stack(b2),
        "ln2_g": stack(ln2_g), "ln2_b": stack(ln2_b),
    })
    return params


# ----------------------------------- main ----------------------------------- #

if __name__ == "__main__":
    # Small, module-consistent shapes.
    B, S, INPUT_DIM = 2, 8, 5
    HIDDEN, NUM_HEADS, NUM_LAYERS, INTERMEDIATE = 32, 4, 2, 64
    MAX_SEQ = S

    params = init_params(INPUT_DIM, HIDDEN, NUM_LAYERS, MAX_SEQ, INTERMEDIATE,
                         seed=0)

    key = jax.random.PRNGKey(0)
    x = jax.random.normal(key, (B, S, INPUT_DIM), dtype=jnp.float32)

    fwd = jax.jit(functools.partial(transformer_encoder_forward,
                                    num_heads=NUM_HEADS))
    pooled = fwd(x, params)
    pooled = jax.block_until_ready(pooled)

    assert pooled.shape == (B, HIDDEN)
    assert bool(jnp.all(jnp.isfinite(pooled)))
    print("KERNEL_OK")
</pallas_src>

<mosaic_0001>
module attributes {stable_mosaic.version = 11 : i64} {
  func.func @_fused_encoder_kernel(%arg0: i32, %arg1: memref<16x5xf32, #tpu.memory_space<vmem>>, %arg2: memref<5x32xf32, #tpu.memory_space<vmem>>, %arg3: memref<1x32xf32, #tpu.memory_space<vmem>>, %arg4: memref<16x32xf32, #tpu.memory_space<vmem>>, %arg5: memref<1x32xf32, #tpu.memory_space<vmem>>, %arg6: memref<1x32xf32, #tpu.memory_space<vmem>>, %arg7: memref<2x3x32x32xf32, #tpu.memory_space<vmem>>, %arg8: memref<2x3x1x32xf32, #tpu.memory_space<vmem>>, %arg9: memref<2x32x32xf32, #tpu.memory_space<vmem>>, %arg10: memref<2x1x32xf32, #tpu.memory_space<vmem>>, %arg11: memref<2x1x32xf32, #tpu.memory_space<vmem>>, %arg12: memref<2x1x32xf32, #tpu.memory_space<vmem>>, %arg13: memref<2x32x64xf32, #tpu.memory_space<vmem>>, %arg14: memref<2x1x64xf32, #tpu.memory_space<vmem>>, %arg15: memref<2x64x32xf32, #tpu.memory_space<vmem>>, %arg16: memref<2x1x32xf32, #tpu.memory_space<vmem>>, %arg17: memref<2x1x32xf32, #tpu.memory_space<vmem>>, %arg18: memref<2x1x32xf32, #tpu.memory_space<vmem>>, %arg19: memref<2x16xf32, #tpu.memory_space<vmem>>, %arg20: memref<2x32xf32, #tpu.memory_space<vmem>>) attributes {dimension_semantics = [#tpu.dimension_semantics<arbitrary>], iteration_bounds = array<i64: 1>, scalar_prefetch = 0 : i64, scratch_operands = 0 : i64, tpu.core_type = #tpu.core_type<tc>, window_params = [{pipeline_mode = #tpu.pipeline_mode<synchronous>, transform_indices = @transform_0, window_bounds = array<i64: 16, 5>}, {pipeline_mode = #tpu.pipeline_mode<synchronous>, transform_indices = @transform_1, window_bounds = array<i64: 5, 32>}, {pipeline_mode = #tpu.pipeline_mode<synchronous>, transform_indices = @transform_2, window_bounds = array<i64: 1, 32>}, {pipeline_mode = #tpu.pipeline_mode<synchronous>, transform_indices = @transform_3, window_bounds = array<i64: 16, 32>}, {pipeline_mode = #tpu.pipeline_mode<synchronous>, transform_indices = @transform_4, window_bounds = array<i64: 1, 32>}, {pipeline_mode = #tpu.pipeline_mode<synchronous>, transform_indices = @transform_5, window_bounds = array<i64: 1, 32>}, {pipeline_mode = #tpu.pipeline_mode<synchronous>, transform_indices = @transform_6, window_bounds = array<i64: 2, 3, 32, 32>}, {pipeline_mode = #tpu.pipeline_mode<synchronous>, transform_indices = @transform_7, window_bounds = array<i64: 2, 3, 1, 32>}, {pipeline_mode = #tpu.pipeline_mode<synchronous>, transform_indices = @transform_8, window_bounds = array<i64: 2, 32, 32>}, {pipeline_mode = #tpu.pipeline_mode<synchronous>, transform_indices = @transform_9, window_bounds = array<i64: 2, 1, 32>}, {pipeline_mode = #tpu.pipeline_mode<synchronous>, transform_indices = @transform_10, window_bounds = array<i64: 2, 1, 32>}, {pipeline_mode = #tpu.pipeline_mode<synchronous>, transform_indices = @transform_11, window_bounds = array<i64: 2, 1, 32>}, {pipeline_mode = #tpu.pipeline_mode<synchronous>, transform_indices = @transform_12, window_bounds = array<i64: 2, 32, 64>}, {pipeline_mode = #tpu.pipeline_mode<synchronous>, transform_indices = @transform_13, window_bounds = array<i64: 2, 1, 64>}, {pipeline_mode = #tpu.pipeline_mode<synchronous>, transform_indices = @transform_14, window_bounds = array<i64: 2, 64, 32>}, {pipeline_mode = #tpu.pipeline_mode<synchronous>, transform_indices = @transform_15, window_bounds = array<i64: 2, 1, 32>}, {pipeline_mode = #tpu.pipeline_mode<synchronous>, transform_indices = @transform_16, window_bounds = array<i64: 2, 1, 32>}, {pipeline_mode = #tpu.pipeline_mode<synchronous>, transform_indices = @transform_17, window_bounds = array<i64: 2, 1, 32>}, {pipeline_mode = #tpu.pipeline_mode<synchronous>, transform_indices = @transform_18, window_bounds = array<i64: 2, 16>}, {pipeline_mode = #tpu.pipeline_mode<synchronous>, transform_indices = @transform_19, window_bounds = array<i64: 2, 32>}]} {
    %c0 = arith.constant 0 : index
    %c0_0 = arith.constant 0 : index
    %0 = vector.load %arg1[%c0, %c0_0] : memref<16x5xf32, #tpu.memory_space<vmem>>, vector<16x5xf32>
    %c0_1 = arith.constant 0 : index
    %c0_2 = arith.constant 0 : index
    %1 = vector.load %arg2[%c0_1, %c0_2] : memref<5x32xf32, #tpu.memory_space<vmem>>, vector<5x32xf32>
    %cst = arith.constant dense<0.000000e+00> : vector<16x32xf32>
    %2 = tpu.matmul %0, %1, %cst {dimension_numbers = #tpu.dot_dimension_numbers<[1], [0], [0], [1], [0, 0, 1, 1], [], []>} : vector<16x5xf32>, vector<5x32xf32>, vector<16x32xf32> -> vector<16x32xf32>
    %c0_3 = arith.constant 0 : index
    %c0_4 = arith.constant 0 : index
    %3 = vector.load %arg3[%c0_3, %c0_4] : memref<1x32xf32, #tpu.memory_space<vmem>>, vector<1x32xf32>
    %4 = vector.broadcast %3 : vector<1x32xf32> to vector<16x32xf32>
    %5 = arith.addf %2, %4 : vector<16x32xf32>
    %c0_5 = arith.constant 0 : index
    %c0_6 = arith.constant 0 : index
    %6 = vector.load %arg4[%c0_5, %c0_6] : memref<16x32xf32, #tpu.memory_space<vmem>>, vector<16x32xf32>
    %7 = arith.addf %5, %6 : vector<16x32xf32>
    %c0_7 = arith.constant 0 : index
    %c0_8 = arith.constant 0 : index
    %8 = vector.load %arg5[%c0_7, %c0_8] : memref<1x32xf32, #tpu.memory_space<vmem>>, vector<1x32xf32>
    %c0_9 = arith.constant 0 : index
    %c0_10 = arith.constant 0 : index
    %9 = vector.load %arg6[%c0_9, %c0_10] : memref<1x32xf32, #tpu.memory_space<vmem>>, vector<1x32xf32>
    %cst_11 = arith.constant dense<0.000000e+00> : vector<16xf32>
    %10 = vector.multi_reduction <add>, %7, %cst_11 [1] : vector<16x32xf32> to vector<16xf32>
    %11 = vector.shape_cast %10 : vector<16xf32> to vector<16x1xf32>
    %cst_12 = arith.constant 3.200000e+01 : f32
    %12 = vector.broadcast %cst_12 : f32 to vector<16x1xf32>
    %13 = arith.divf %11, %12 : vector<16x1xf32>
    %14 = vector.broadcast %13 : vector<16x1xf32> to vector<16x32xf32>
    %15 = arith.subf %7, %14 : vector<16x32xf32>
    %16 = arith.mulf %15, %15 : vector<16x32xf32>
    %cst_13 = arith.constant dense<0.000000e+00> : vector<16xf32>
    %17 = vector.multi_reduction <add>, %16, %cst_13 [1] : vector<16x32xf32> to vector<16xf32>
    %18 = vector.shape_cast %17 : vector<16xf32> to vector<16x1xf32>
    %cst_14 = arith.constant 3.200000e+01 : f32
    %19 = vector.broadcast %cst_14 : f32 to vector<16x1xf32>
    %20 = arith.divf %18, %19 : vector<16x1xf32>
    %21 = vector.broadcast %13 : vector<16x1xf32> to vector<16x32xf32>
    %22 = arith.subf %7, %21 : vector<16x32xf32>
    %cst_15 = arith.constant 9.99999996E-13 : f32
    %23 = vector.broadcast %cst_15 : f32 to vector<16x1xf32>
    %24 = arith.addf %20, %23 : vector<16x1xf32>
    %25 = math.rsqrt %24 : vector<16x1xf32>
    %26 = vector.broadcast %25 : vector<16x1xf32> to vector<16x32xf32>
    %27 = arith.mulf %22, %26 : vector<16x32xf32>
    %28 = vector.broadcast %8 : vector<1x32xf32> to vector<16x32xf32>
    %29 = arith.mulf %27, %28 : vector<16x32xf32>
    %30 = vector.broadcast %9 : vector<1x32xf32> to vector<16x32xf32>
    %31 = arith.addf %29, %30 : vector<16x32xf32>
    %c0_16 = arith.constant 0 : index
    %c0_17 = arith.constant 0 : index
    %c0_18 = arith.constant 0 : index
    %c0_19 = arith.constant 0 : index
    %32 = vector.load %arg7[%c0_16, %c0_17, %c0_18, %c0_19] : memref<2x3x32x32xf32, #tpu.memory_space<vmem>>, vector<1x1x32x32xf32>
    %33 = vector.shape_cast %32 : vector<1x1x32x32xf32> to vector<32x32xf32>
    %cst_20 = arith.constant dense<0.000000e+00> : vector<16x32xf32>
    %34 = tpu.matmul %31, %33, %cst_20 {dimension_numbers = #tpu.dot_dimension_numbers<[1], [0], [0], [1], [0, 0, 1, 1], [], []>} : vector<16x32xf32>, vector<32x32xf32>, vector<16x32xf32> -> vector<16x32xf32>
    %c0_21 = arith.constant 0 : index
    %c0_22 = arith.constant 0 : index
    %c0_23 = arith.constant 0 : index
    %c0_24 = arith.constant 0 : index
    %35 = vector.load %arg8[%c0_21, %c0_22, %c0_23, %c0_24] : memref<2x3x1x32xf32, #tpu.memory_space<vmem>>, vector<1x1x1x32xf32>
    %36 = vector.shape_cast %35 : vector<1x1x1x32xf32> to vector<1x32xf32>
    %37 = vector.broadcast %36 : vector<1x32xf32> to vector<16x32xf32>
    %38 = arith.addf %34, %37 : vector<16x32xf32>
    %c0_25 = arith.constant 0 : index
    %c1 = arith.constant 1 : index
    %c0_26 = arith.constant 0 : index
    %c0_27 = arith.constant 0 : index
    %39 = vector.load %arg7[%c0_25, %c1, %c0_26, %c0_27] : memref<2x3x32x32xf32, #tpu.memory_space<vmem>>, vector<1x1x32x32xf32>
    %40 = vector.shape_cast %39 : vector<1x1x32x32xf32> to vector<32x32xf32>
    %cst_28 = arith.constant dense<0.000000e+00> : vector<16x32xf32>
    %41 = tpu.matmul %31, %40, %cst_28 {dimension_numbers = #tpu.dot_dimension_numbers<[1], [0], [0], [1], [0, 0, 1, 1], [], []>} : vector<16x32xf32>, vector<32x32xf32>, vector<16x32xf32> -> vector<16x32xf32>
    %c0_29 = arith.constant 0 : index
    %c1_30 = arith.constant 1 : index
    %c0_31 = arith.constant 0 : index
    %c0_32 = arith.constant 0 : index
    %42 = vector.load %arg8[%c0_29, %c1_30, %c0_31, %c0_32] : memref<2x3x1x32xf32, #tpu.memory_space<vmem>>, vector<1x1x1x32xf32>
    %43 = vector.shape_cast %42 : vector<1x1x1x32xf32> to vector<1x32xf32>
    %44 = vector.broadcast %43 : vector<1x32xf32> to vector<16x32xf32>
    %45 = arith.addf %41, %44 : vector<16x32xf32>
    %c0_33 = arith.constant 0 : index
    %c2 = arith.constant 2 : index
    %c0_34 = arith.constant 0 : index
    %c0_35 = arith.constant 0 : index
    %46 = vector.load %arg7[%c0_33, %c2, %c0_34, %c0_35] : memref<2x3x32x32xf32, #tpu.memory_space<vmem>>, vector<1x1x32x32xf32>
    %47 = vector.shape_cast %46 : vector<1x1x32x32xf32> to vector<32x32xf32>
    %cst_36 = arith.constant dense<0.000000e+00> : vector<16x32xf32>
    %48 = tpu.matmul %31, %47, %cst_36 {dimension_numbers = #tpu.dot_dimension_numbers<[1], [0], [0], [1], [0, 0, 1, 1], [], []>} : vector<16x32xf32>, vector<32x32xf32>, vector<16x32xf32> -> vector<16x32xf32>
    %c0_37 = arith.constant 0 : index
    %c2_38 = arith.constant 2 : index
    %c0_39 = arith.constant 0 : index
    %c0_40 = arith.constant 0 : index
    %49 = vector.load %arg8[%c0_37, %c2_38, %c0_39, %c0_40] : memref<2x3x1x32xf32, #tpu.memory_space<vmem>>, vector<1x1x1x32xf32>
    %50 = vector.shape_cast %49 : vector<1x1x1x32xf32> to vector<1x32xf32>
    %51 = vector.broadcast %50 : vector<1x32xf32> to vector<16x32xf32>
    %52 = arith.addf %48, %51 : vector<16x32xf32>
    %53 = vector.shape_cast %38 : vector<16x32xf32> to vector<2x8x32xf32>
    %54 = vector.shape_cast %45 : vector<16x32xf32> to vector<2x8x32xf32>
    %55 = vector.shape_cast %52 : vector<16x32xf32> to vector<2x8x32xf32>
    %56 = vector.extract_strided_slice %53 {offsets = [0, 0, 0], sizes = [2, 8, 8], strides = [1, 1, 1]} : vector<2x8x32xf32> to vector<2x8x8xf32>
    %57 = vector.extract_strided_slice %54 {offsets = [0, 0, 0], sizes = [2, 8, 8], strides = [1, 1, 1]} : vector<2x8x32xf32> to vector<2x8x8xf32>
    %58 = vector.extract_strided_slice %55 {offsets = [0, 0, 0], sizes = [2, 8, 8], strides = [1, 1, 1]} : vector<2x8x32xf32> to vector<2x8x8xf32>
    "tpu.trace_start"() <{level = 10 : i32, message = "bqd,bkd->bqk"}> : () -> ()
    %cst_41 = arith.constant dense<0.000000e+00> : vector<2x8x8xf32>
    %59 = tpu.matmul %56, %57, %cst_41 {dimension_numbers = #tpu.dot_dimension_numbers<[2], [2], [1], [1], [0, 0, 0, 1, 1, 1], [0], [0]>} : vector<2x8x8xf32>, vector<2x8x8xf32>, vector<2x8x8xf32> -> vector<2x8x8xf32>
    "tpu.trace_stop"() : () -> ()
    %cst_42 = arith.constant 0.353553385 : f32
    %60 = vector.broadcast %cst_42 : f32 to vector<2x8x8xf32>
    %61 = arith.mulf %59, %60 : vector<2x8x8xf32>
    %cst_43 = arith.constant dense<0xFF800000> : vector<2x8xf32>
    %62 = vector.multi_reduction <maximumf>, %61, %cst_43 [2] : vector<2x8x8xf32> to vector<2x8xf32>
    %63 = vector.shape_cast %62 : vector<2x8xf32> to vector<2x8x1xf32>
    %64 = vector.broadcast %63 : vector<2x8x1xf32> to vector<2x8x8xf32>
    %65 = arith.subf %61, %64 : vector<2x8x8xf32>
    %66 = math.exp %65 : vector<2x8x8xf32>
    %cst_44 = arith.constant dense<0.000000e+00> : vector<2x8xf32>
    %67 = vector.multi_reduction <add>, %66, %cst_44 [2] : vector<2x8x8xf32> to vector<2x8xf32>
    %68 = vector.shape_cast %67 : vector<2x8xf32> to vector<2x8x1xf32>
    %69 = tpu.reciprocal %68 {approx = true} : vector<2x8x1xf32> -> vector<2x8x1xf32>
    %70 = vector.broadcast %69 : vector<2x8x1xf32> to vector<2x8x8xf32>
    %71 = arith.mulf %66, %70 : vector<2x8x8xf32>
    "tpu.trace_start"() <{level = 10 : i32, message = "bqk,bkd->bqd"}> : () -> ()
    %cst_45 = arith.constant dense<0.000000e+00> : vector<2x8x8xf32>
    %72 = tpu.matmul %71, %58, %cst_45 {dimension_numbers = #tpu.dot_dimension_numbers<[2], [1], [1], [2], [0, 0, 0, 1, 1, 2], [0], [0]>} : vector<2x8x8xf32>, vector<2x8x8xf32>, vector<2x8x8xf32> -> vector<2x8x8xf32>
    "tpu.trace_stop"() : () -> ()
    %73 = vector.extract_strided_slice %53 {offsets = [0, 0, 8], sizes = [2, 8, 8], strides = [1, 1, 1]} : vector<2x8x32xf32> to vector<2x8x8xf32>
    %74 = vector.extract_strided_slice %54 {offsets = [0, 0, 8], sizes = [2, 8, 8], strides = [1, 1, 1]} : vector<2x8x32xf32> to vector<2x8x8xf32>
    %75 = vector.extract_strided_slice %55 {offsets = [0, 0, 8], sizes = [2, 8, 8], strides = [1, 1, 1]} : vector<2x8x32xf32> to vector<2x8x8xf32>
    "tpu.trace_start"() <{level = 10 : i32, message = "bqd,bkd->bqk"}> : () -> ()
    %cst_46 = arith.constant dense<0.000000e+00> : vector<2x8x8xf32>
    %76 = tpu.matmul %73, %74, %cst_46 {dimension_numbers = #tpu.dot_dimension_numbers<[2], [2], [1], [1], [0, 0, 0, 1, 1, 1], [0], [0]>} : vector<2x8x8xf32>, vector<2x8x8xf32>, vector<2x8x8xf32> -> vector<2x8x8xf32>
    "tpu.trace_stop"() : () -> ()
    %cst_47 = arith.constant 0.353553385 : f32
    %77 = vector.broadcast %cst_47 : f32 to vector<2x8x8xf32>
    %78 = arith.mulf %76, %77 : vector<2x8x8xf32>
    %cst_48 = arith.constant dense<0xFF800000> : vector<2x8xf32>
    %79 = vector.multi_reduction <maximumf>, %78, %cst_48 [2] : vector<2x8x8xf32> to vector<2x8xf32>
    %80 = vector.shape_cast %79 : vector<2x8xf32> to vector<2x8x1xf32>
    %81 = vector.broadcast %80 : vector<2x8x1xf32> to vector<2x8x8xf32>
    %82 = arith.subf %78, %81 : vector<2x8x8xf32>
    %83 = math.exp %82 : vector<2x8x8xf32>
    %cst_49 = arith.constant dense<0.000000e+00> : vector<2x8xf32>
    %84 = vector.multi_reduction <add>, %83, %cst_49 [2] : vector<2x8x8xf32> to vector<2x8xf32>
    %85 = vector.shape_cast %84 : vector<2x8xf32> to vector<2x8x1xf32>
    %86 = tpu.reciprocal %85 {approx = true} : vector<2x8x1xf32> -> vector<2x8x1xf32>
    %87 = vector.broadcast %86 : vector<2x8x1xf32> to vector<2x8x8xf32>
    %88 = arith.mulf %83, %87 : vector<2x8x8xf32>
    "tpu.trace_start"() <{level = 10 : i32, message = "bqk,bkd->bqd"}> : () -> ()
    %cst_50 = arith.constant dense<0.000000e+00> : vector<2x8x8xf32>
    %89 = tpu.matmul %88, %75, %cst_50 {dimension_numbers = #tpu.dot_dimension_numbers<[2], [1], [1], [2], [0, 0, 0, 1, 1, 2], [0], [0]>} : vector<2x8x8xf32>, vector<2x8x8xf32>, vector<2x8x8xf32> -> vector<2x8x8xf32>
    "tpu.trace_stop"() : () -> ()
    %90 = vector.extract_strided_slice %53 {offsets = [0, 0, 16], sizes = [2, 8, 8], strides = [1, 1, 1]} : vector<2x8x32xf32> to vector<2x8x8xf32>
    %91 = vector.extract_strided_slice %54 {offsets = [0, 0, 16], sizes = [2, 8, 8], strides = [1, 1, 1]} : vector<2x8x32xf32> to vector<2x8x8xf32>
    %92 = vector.extract_strided_slice %55 {offsets = [0, 0, 16], sizes = [2, 8, 8], strides = [1, 1, 1]} : vector<2x8x32xf32> to vector<2x8x8xf32>
    "tpu.trace_start"() <{level = 10 : i32, message = "bqd,bkd->bqk"}> : () -> ()
    %cst_51 = arith.constant dense<0.000000e+00> : vector<2x8x8xf32>
    %93 = tpu.matmul %90, %91, %cst_51 {dimension_numbers = #tpu.dot_dimension_numbers<[2], [2], [1], [1], [0, 0, 0, 1, 1, 1], [0], [0]>} : vector<2x8x8xf32>, vector<2x8x8xf32>, vector<2x8x8xf32> -> vector<2x8x8xf32>
    "tpu.trace_stop"() : () -> ()
    %cst_52 = arith.constant 0.353553385 : f32
    %94 = vector.broadcast %cst_52 : f32 to vector<2x8x8xf32>
    %95 = arith.mulf %93, %94 : vector<2x8x8xf32>
    %cst_53 = arith.constant dense<0xFF800000> : vector<2x8xf32>
    %96 = vector.multi_reduction <maximumf>, %95, %cst_53 [2] : vector<2x8x8xf32> to vector<2x8xf32>
    %97 = vector.shape_cast %96 : vector<2x8xf32> to vector<2x8x1xf32>
    %98 = vector.broadcast %97 : vector<2x8x1xf32> to vector<2x8x8xf32>
    %99 = arith.subf %95, %98 : vector<2x8x8xf32>
    %100 = math.exp %99 : vector<2x8x8xf32>
    %cst_54 = arith.constant dense<0.000000e+00> : vector<2x8xf32>
    %101 = vector.multi_reduction <add>, %100, %cst_54 [2] : vector<2x8x8xf32> to vector<2x8xf32>
    %102 = vector.shape_cast %101 : vector<2x8xf32> to vector<2x8x1xf32>
    %103 = tpu.reciprocal %102 {approx = true} : vector<2x8x1xf32> -> vector<2x8x1xf32>
    %104 = vector.broadcast %103 : vector<2x8x1xf32> to vector<2x8x8xf32>
    %105 = arith.mulf %100, %104 : vector<2x8x8xf32>
    "tpu.trace_start"() <{level = 10 : i32, message = "bqk,bkd->bqd"}> : () -> ()
    %cst_55 = arith.constant dense<0.000000e+00> : vector<2x8x8xf32>
    %106 = tpu.matmul %105, %92, %cst_55 {dimension_numbers = #tpu.dot_dimension_numbers<[2], [1], [1], [2], [0, 0, 0, 1, 1, 2], [0], [0]>} : vector<2x8x8xf32>, vector<2x8x8xf32>, vector<2x8x8xf32> -> vector<2x8x8xf32>
    "tpu.trace_stop"() : () -> ()
    %107 = vector.extract_strided_slice %53 {offsets = [0, 0, 24], sizes = [2, 8, 8], strides = [1, 1, 1]} : vector<2x8x32xf32> to vector<2x8x8xf32>
    %108 = vector.extract_strided_slice %54 {offsets = [0, 0, 24], sizes = [2, 8, 8], strides = [1, 1, 1]} : vector<2x8x32xf32> to vector<2x8x8xf32>
    %109 = vector.extract_strided_slice %55 {offsets = [0, 0, 24], sizes = [2, 8, 8], strides = [1, 1, 1]} : vector<2x8x32xf32> to vector<2x8x8xf32>
    "tpu.trace_start"() <{level = 10 : i32, message = "bqd,bkd->bqk"}> : () -> ()
    %cst_56 = arith.constant dense<0.000000e+00> : vector<2x8x8xf32>
    %110 = tpu.matmul %107, %108, %cst_56 {dimension_numbers = #tpu.dot_dimension_numbers<[2], [2], [1], [1], [0, 0, 0, 1, 1, 1], [0], [0]>} : vector<2x8x8xf32>, vector<2x8x8xf32>, vector<2x8x8xf32> -> vector<2x8x8xf32>
    "tpu.trace_stop"() : () -> ()
    %cst_57 = arith.constant 0.353553385 : f32
    %111 = vector.broadcast %cst_57 : f32 to vector<2x8x8xf32>
    %112 = arith.mulf %110, %111 : vector<2x8x8xf32>
    %cst_58 = arith.constant dense<0xFF800000> : vector<2x8xf32>
    %113 = vector.multi_reduction <maximumf>, %112, %cst_58 [2] : vector<2x8x8xf32> to vector<2x8xf32>
    %114 = vector.shape_cast %113 : vector<2x8xf32> to vector<2x8x1xf32>
    %115 = vector.broadcast %114 : vector<2x8x1xf32> to vector<2x8x8xf32>
    %116 = arith.subf %112, %115 : vector<2x8x8xf32>
    %117 = math.exp %116 : vector<2x8x8xf32>
    %cst_59 = arith.constant dense<0.000000e+00> : vector<2x8xf32>
    %118 = vector.multi_reduction <add>, %117, %cst_59 [2] : vector<2x8x8xf32> to vector<2x8xf32>
    %119 = vector.shape_cast %118 : vector<2x8xf32> to vector<2x8x1xf32>
    %120 = tpu.reciprocal %119 {approx = true} : vector<2x8x1xf32> -> vector<2x8x1xf32>
    %121 = vector.broadcast %120 : vector<2x8x1xf32> to vector<2x8x8xf32>
    %122 = arith.mulf %117, %121 : vector<2x8x8xf32>
    "tpu.trace_start"() <{level = 10 : i32, message = "bqk,bkd->bqd"}> : () -> ()
    %cst_60 = arith.constant dense<0.000000e+00> : vector<2x8x8xf32>
    %123 = tpu.matmul %122, %109, %cst_60 {dimension_numbers = #tpu.dot_dimension_numbers<[2], [1], [1], [2], [0, 0, 0, 1, 1, 2], [0], [0]>} : vector<2x8x8xf32>, vector<2x8x8xf32>, vector<2x8x8xf32> -> vector<2x8x8xf32>
    "tpu.trace_stop"() : () -> ()
    %124 = tpu.concatenate %72, %89, %106, %123 in 2 : vector<2x8x8xf32>, vector<2x8x8xf32>, vector<2x8x8xf32>, vector<2x8x8xf32> -> vector<2x8x32xf32>
    %125 = vector.shape_cast %124 : vector<2x8x32xf32> to vector<16x32xf32>
    %c0_61 = arith.constant 0 : index
    %c0_62 = arith.constant 0 : index
    %c0_63 = arith.constant 0 : index
    %126 = vector.load %arg9[%c0_61, %c0_62, %c0_63] : memref<2x32x32xf32, #tpu.memory_space<vmem>>, vector<1x32x32xf32>
    %127 = vector.shape_cast %126 : vector<1x32x32xf32> to vector<32x32xf32>
    %cst_64 = arith.constant dense<0.000000e+00> : vector<16x32xf32>
    %128 = tpu.matmul %125, %127, %cst_64 {dimension_numbers = #tpu.dot_dimension_numbers<[1], [0], [0], [1], [0, 0, 1, 1], [], []>} : vector<16x32xf32>, vector<32x32xf32>, vector<16x32xf32> -> vector<16x32xf32>
    %c0_65 = arith.constant 0 : index
    %c0_66 = arith.constant 0 : index
    %c0_67 = arith.constant 0 : index
    %129 = vector.load %arg10[%c0_65, %c0_66, %c0_67] : memref<2x1x32xf32, #tpu.memory_space<vmem>>, vector<1x1x32xf32>
    %130 = vector.shape_cast %129 : vector<1x1x32xf32> to vector<1x32xf32>
    %131 = vector.broadcast %130 : vector<1x32xf32> to vector<16x32xf32>
    %132 = arith.addf %128, %131 : vector<16x32xf32>
    %133 = arith.addf %31, %132 : vector<16x32xf32>
    %c0_68 = arith.constant 0 : index
    %c0_69 = arith.constant 0 : index
    %c0_70 = arith.constant 0 : index
    %134 = vector.load %arg11[%c0_68, %c0_69, %c0_70] : memref<2x1x32xf32, #tpu.memory_space<vmem>>, vector<1x1x32xf32>
    %135 = vector.shape_cast %134 : vector<1x1x32xf32> to vector<1x32xf32>
    %c0_71 = arith.constant 0 : index
    %c0_72 = arith.constant 0 : index
    %c0_73 = arith.constant 0 : index
    %136 = vector.load %arg12[%c0_71, %c0_72, %c0_73] : memref<2x1x32xf32, #tpu.memory_space<vmem>>, vector<1x1x32xf32>
    %137 = vector.shape_cast %136 : vector<1x1x32xf32> to vector<1x32xf32>
    %cst_74 = arith.constant dense<0.000000e+00> : vector<16xf32>
    %138 = vector.multi_reduction <add>, %133, %cst_74 [1] : vector<16x32xf32> to vector<16xf32>
    %139 = vector.shape_cast %138 : vector<16xf32> to vector<16x1xf32>
    %cst_75 = arith.constant 3.200000e+01 : f32
    %140 = vector.broadcast %cst_75 : f32 to vector<16x1xf32>
    %141 = arith.divf %139, %140 : vector<16x1xf32>
    %142 = vector.broadcast %141 : vector<16x1xf32> to vector<16x32xf32>
    %143 = arith.subf %133, %142 : vector<16x32xf32>
    %144 = arith.mulf %143, %143 : vector<16x32xf32>
    %cst_76 = arith.constant dense<0.000000e+00> : vector<16xf32>
    %145 = vector.multi_reduction <add>, %144, %cst_76 [1] : vector<16x32xf32> to vector<16xf32>
    %146 = vector.shape_cast %145 : vector<16xf32> to vector<16x1xf32>
    %cst_77 = arith.constant 3.200000e+01 : f32
    %147 = vector.broadcast %cst_77 : f32 to vector<16x1xf32>
    %148 = arith.divf %146, %147 : vector<16x1xf32>
    %149 = vector.broadcast %141 : vector<16x1xf32> to vector<16x32xf32>
    %150 = arith.subf %133, %149 : vector<16x32xf32>
    %cst_78 = arith.constant 9.99999996E-13 : f32
    %151 = vector.broadcast %cst_78 : f32 to vector<16x1xf32>
    %152 = arith.addf %148, %151 : vector<16x1xf32>
    %153 = math.rsqrt %152 : vector<16x1xf32>
    %154 = vector.broadcast %153 : vector<16x1xf32> to vector<16x32xf32>
    %155 = arith.mulf %150, %154 : vector<16x32xf32>
    %156 = vector.broadcast %135 : vector<1x32xf32> to vector<16x32xf32>
    %157 = arith.mulf %155, %156 : vector<16x32xf32>
    %158 = vector.broadcast %137 : vector<1x32xf32> to vector<16x32xf32>
    %159 = arith.addf %157, %158 : vector<16x32xf32>
    %c0_79 = arith.constant 0 : index
    %c0_80 = arith.constant 0 : index
    %c0_81 = arith.constant 0 : index
    %160 = vector.load %arg13[%c0_79, %c0_80, %c0_81] : memref<2x32x64xf32, #tpu.memory_space<vmem>>, vector<1x32x64xf32>
    %161 = vector.shape_cast %160 : vector<1x32x64xf32> to vector<32x64xf32>
    %cst_82 = arith.constant dense<0.000000e+00> : vector<16x64xf32>
    %162 = tpu.matmul %159, %161, %cst_82 {dimension_numbers = #tpu.dot_dimension_numbers<[1], [0], [0], [1], [0, 0, 1, 1], [], []>} : vector<16x32xf32>, vector<32x64xf32>, vector<16x64xf32> -> vector<16x64xf32>
    %c0_83 = arith.constant 0 : index
    %c0_84 = arith.constant 0 : index
    %c0_85 = arith.constant 0 : index
    %163 = vector.load %arg14[%c0_83, %c0_84, %c0_85] : memref<2x1x64xf32, #tpu.memory_space<vmem>>, vector<1x1x64xf32>
    %164 = vector.shape_cast %163 : vector<1x1x64xf32> to vector<1x64xf32>
    %165 = vector.broadcast %164 : vector<1x64xf32> to vector<16x64xf32>
    %166 = arith.addf %162, %165 : vector<16x64xf32>
    %cst_86 = arith.constant 5.000000e-01 : f32
    %167 = vector.broadcast %cst_86 : f32 to vector<16x64xf32>
    %168 = arith.mulf %167, %166 : vector<16x64xf32>
    %cst_87 = arith.constant 0.707106769 : f32
    %169 = vector.broadcast %cst_87 : f32 to vector<16x64xf32>
    %170 = arith.mulf %166, %169 : vector<16x64xf32>
    %171 = math.erf %170 : vector<16x64xf32>
    %cst_88 = arith.constant 1.000000e+00 : f32
    %172 = vector.broadcast %cst_88 : f32 to vector<16x64xf32>
    %173 = arith.addf %172, %171 : vector<16x64xf32>
    %174 = arith.mulf %168, %173 : vector<16x64xf32>
    %c0_89 = arith.constant 0 : index
    %c0_90 = arith.constant 0 : index
    %c0_91 = arith.constant 0 : index
    %175 = vector.load %arg15[%c0_89, %c0_90, %c0_91] : memref<2x64x32xf32, #tpu.memory_space<vmem>>, vector<1x64x32xf32>
    %176 = vector.shape_cast %175 : vector<1x64x32xf32> to vector<64x32xf32>
    %cst_92 = arith.constant dense<0.000000e+00> : vector<16x32xf32>
    %177 = tpu.matmul %174, %176, %cst_92 {dimension_numbers = #tpu.dot_dimension_numbers<[1], [0], [0], [1], [0, 0, 1, 1], [], []>} : vector<16x64xf32>, vector<64x32xf32>, vector<16x32xf32> -> vector<16x32xf32>
    %c0_93 = arith.constant 0 : index
    %c0_94 = arith.constant 0 : index
    %c0_95 = arith.constant 0 : index
    %178 = vector.load %arg16[%c0_93, %c0_94, %c0_95] : memref<2x1x32xf32, #tpu.memory_space<vmem>>, vector<1x1x32xf32>
    %179 = vector.shape_cast %178 : vector<1x1x32xf32> to vector<1x32xf32>
    %180 = vector.broadcast %179 : vector<1x32xf32> to vector<16x32xf32>
    %181 = arith.addf %177, %180 : vector<16x32xf32>
    %182 = arith.addf %159, %181 : vector<16x32xf32>
    %c0_96 = arith.constant 0 : index
    %c0_97 = arith.constant 0 : index
    %c0_98 = arith.constant 0 : index
    %183 = vector.load %arg17[%c0_96, %c0_97, %c0_98] : memref<2x1x32xf32, #tpu.memory_space<vmem>>, vector<1x1x32xf32>
    %184 = vector.shape_cast %183 : vector<1x1x32xf32> to vector<1x32xf32>
    %c0_99 = arith.constant 0 : index
    %c0_100 = arith.constant 0 : index
    %c0_101 = arith.constant 0 : index
    %185 = vector.load %arg18[%c0_99, %c0_100, %c0_101] : memref<2x1x32xf32, #tpu.memory_space<vmem>>, vector<1x1x32xf32>
    %186 = vector.shape_cast %185 : vector<1x1x32xf32> to vector<1x32xf32>
    %cst_102 = arith.constant dense<0.000000e+00> : vector<16xf32>
    %187 = vector.multi_reduction <add>, %182, %cst_102 [1] : vector<16x32xf32> to vector<16xf32>
    %188 = vector.shape_cast %187 : vector<16xf32> to vector<16x1xf32>
    %cst_103 = arith.constant 3.200000e+01 : f32
    %189 = vector.broadcast %cst_103 : f32 to vector<16x1xf32>
    %190 = arith.divf %188, %189 : vector<16x1xf32>
    %191 = vector.broadcast %190 : vector<16x1xf32> to vector<16x32xf32>
    %192 = arith.subf %182, %191 : vector<16x32xf32>
    %193 = arith.mulf %192, %192 : vector<16x32xf32>
    %cst_104 = arith.constant dense<0.000000e+00> : vector<16xf32>
    %194 = vector.multi_reduction <add>, %193, %cst_104 [1] : vector<16x32xf32> to vector<16xf32>
    %195 = vector.shape_cast %194 : vector<16xf32> to vector<16x1xf32>
    %cst_105 = arith.constant 3.200000e+01 : f32
    %196 = vector.broadcast %cst_105 : f32 to vector<16x1xf32>
    %197 = arith.divf %195, %196 : vector<16x1xf32>
    %198 = vector.broadcast %190 : vector<16x1xf32> to vector<16x32xf32>
    %199 = arith.subf %182, %198 : vector<16x32xf32>
    %cst_106 = arith.constant 9.99999996E-13 : f32
    %200 = vector.broadcast %cst_106 : f32 to vector<16x1xf32>
    %201 = arith.addf %197, %200 : vector<16x1xf32>
    %202 = math.rsqrt %201 : vector<16x1xf32>
    %203 = vector.broadcast %202 : vector<16x1xf32> to vector<16x32xf32>
    %204 = arith.mulf %199, %203 : vector<16x32xf32>
    %205 = vector.broadcast %184 : vector<1x32xf32> to vector<16x32xf32>
    %206 = arith.mulf %204, %205 : vector<16x32xf32>
    %207 = vector.broadcast %186 : vector<1x32xf32> to vector<16x32xf32>
    %208 = arith.addf %206, %207 : vector<16x32xf32>
    %c1_107 = arith.constant 1 : index
    %c0_108 = arith.constant 0 : index
    %c0_109 = arith.constant 0 : index
    %c0_110 = arith.constant 0 : index
    %209 = vector.load %arg7[%c1_107, %c0_108, %c0_109, %c0_110] : memref<2x3x32x32xf32, #tpu.memory_space<vmem>>, vector<1x1x32x32xf32>
    %210 = vector.shape_cast %209 : vector<1x1x32x32xf32> to vector<32x32xf32>
    %cst_111 = arith.constant dense<0.000000e+00> : vector<16x32xf32>
    %211 = tpu.matmul %208, %210, %cst_111 {dimension_numbers = #tpu.dot_dimension_numbers<[1], [0], [0], [1], [0, 0, 1, 1], [], []>} : vector<16x32xf32>, vector<32x32xf32>, vector<16x32xf32> -> vector<16x32xf32>
    %c1_112 = arith.constant 1 : index
    %c0_113 = arith.constant 0 : index
    %c0_114 = arith.constant 0 : index
    %c0_115 = arith.constant 0 : index
    %212 = vector.load %arg8[%c1_112, %c0_113, %c0_114, %c0_115] : memref<2x3x1x32xf32, #tpu.memory_space<vmem>>, vector<1x1x1x32xf32>
    %213 = vector.shape_cast %212 : vector<1x1x1x32xf32> to vector<1x32xf32>
    %214 = vector.broadcast %213 : vector<1x32xf32> to vector<16x32xf32>
    %215 = arith.addf %211, %214 : vector<16x32xf32>
    %c1_116 = arith.constant 1 : index
    %c1_117 = arith.constant 1 : index
    %c0_118 = arith.constant 0 : index
    %c0_119 = arith.constant 0 : index
    %216 = vector.load %arg7[%c1_116, %c1_117, %c0_118, %c0_119] : memref<2x3x32x32xf32, #tpu.memory_space<vmem>>, vector<1x1x32x32xf32>
    %217 = vector.shape_cast %216 : vector<1x1x32x32xf32> to vector<32x32xf32>
    %cst_120 = arith.constant dense<0.000000e+00> : vector<16x32xf32>
    %218 = tpu.matmul %208, %217, %cst_120 {dimension_numbers = #tpu.dot_dimension_numbers<[1], [0], [0], [1], [0, 0, 1, 1], [], []>} : vector<16x32xf32>, vector<32x32xf32>, vector<16x32xf32> -> vector<16x32xf32>
    %c1_121 = arith.constant 1 : index
    %c1_122 = arith.constant 1 : index
    %c0_123 = arith.constant 0 : index
    %c0_124 = arith.constant 0 : index
    %219 = vector.load %arg8[%c1_121, %c1_122, %c0_123, %c0_124] : memref<2x3x1x32xf32, #tpu.memory_space<vmem>>, vector<1x1x1x32xf32>
    %220 = vector.shape_cast %219 : vector<1x1x1x32xf32> to vector<1x32xf32>
    %221 = vector.broadcast %220 : vector<1x32xf32> to vector<16x32xf32>
    %222 = arith.addf %218, %221 : vector<16x32xf32>
    %c1_125 = arith.constant 1 : index
    %c2_126 = arith.constant 2 : index
    %c0_127 = arith.constant 0 : index
    %c0_128 = arith.constant 0 : index
    %223 = vector.load %arg7[%c1_125, %c2_126, %c0_127, %c0_128] : memref<2x3x32x32xf32, #tpu.memory_space<vmem>>, vector<1x1x32x32xf32>
    %224 = vector.shape_cast %223 : vector<1x1x32x32xf32> to vector<32x32xf32>
    %cst_129 = arith.constant dense<0.000000e+00> : vector<16x32xf32>
    %225 = tpu.matmul %208, %224, %cst_129 {dimension_numbers = #tpu.dot_dimension_numbers<[1], [0], [0], [1], [0, 0, 1, 1], [], []>} : vector<16x32xf32>, vector<32x32xf32>, vector<16x32xf32> -> vector<16x32xf32>
    %c1_130 = arith.constant 1 : index
    %c2_131 = arith.constant 2 : index
    %c0_132 = arith.constant 0 : index
    %c0_133 = arith.constant 0 : index
    %226 = vector.load %arg8[%c1_130, %c2_131, %c0_132, %c0_133] : memref<2x3x1x32xf32, #tpu.memory_space<vmem>>, vector<1x1x1x32xf32>
    %227 = vector.shape_cast %226 : vector<1x1x1x32xf32> to vector<1x32xf32>
    %228 = vector.broadcast %227 : vector<1x32xf32> to vector<16x32xf32>
    %229 = arith.addf %225, %228 : vector<16x32xf32>
    %230 = vector.shape_cast %215 : vector<16x32xf32> to vector<2x8x32xf32>
    %231 = vector.shape_cast %222 : vector<16x32xf32> to vector<2x8x32xf32>
    %232 = vector.shape_cast %229 : vector<16x32xf32> to vector<2x8x32xf32>
    %233 = vector.extract_strided_slice %230 {offsets = [0, 0, 0], sizes = [2, 8, 8], strides = [1, 1, 1]} : vector<2x8x32xf32> to vector<2x8x8xf32>
    %234 = vector.extract_strided_slice %231 {offsets = [0, 0, 0], sizes = [2, 8, 8], strides = [1, 1, 1]} : vector<2x8x32xf32> to vector<2x8x8xf32>
    %235 = vector.extract_strided_slice %232 {offsets = [0, 0, 0], sizes = [2, 8, 8], strides = [1, 1, 1]} : vector<2x8x32xf32> to vector<2x8x8xf32>
    "tpu.trace_start"() <{level = 10 : i32, message = "bqd,bkd->bqk"}> : () -> ()
    %cst_134 = arith.constant dense<0.000000e+00> : vector<2x8x8xf32>
    %236 = tpu.matmul %233, %234, %cst_134 {dimension_numbers = #tpu.dot_dimension_numbers<[2], [2], [1], [1], [0, 0, 0, 1, 1, 1], [0], [0]>} : vector<2x8x8xf32>, vector<2x8x8xf32>, vector<2x8x8xf32> -> vector<2x8x8xf32>
    "tpu.trace_stop"() : () -> ()
    %cst_135 = arith.constant 0.353553385 : f32
    %237 = vector.broadcast %cst_135 : f32 to vector<2x8x8xf32>
    %238 = arith.mulf %236, %237 : vector<2x8x8xf32>
    %cst_136 = arith.constant dense<0xFF800000> : vector<2x8xf32>
    %239 = vector.multi_reduction <maximumf>, %238, %cst_136 [2] : vector<2x8x8xf32> to vector<2x8xf32>
    %240 = vector.shape_cast %239 : vector<2x8xf32> to vector<2x8x1xf32>
    %241 = vector.broadcast %240 : vector<2x8x1xf32> to vector<2x8x8xf32>
    %242 = arith.subf %238, %241 : vector<2x8x8xf32>
    %243 = math.exp %242 : vector<2x8x8xf32>
    %cst_137 = arith.constant dense<0.000000e+00> : vector<2x8xf32>
    %244 = vector.multi_reduction <add>, %243, %cst_137 [2] : vector<2x8x8xf32> to vector<2x8xf32>
    %245 = vector.shape_cast %244 : vector<2x8xf32> to vector<2x8x1xf32>
    %246 = tpu.reciprocal %245 {approx = true} : vector<2x8x1xf32> -> vector<2x8x1xf32>
    %247 = vector.broadcast %246 : vector<2x8x1xf32> to vector<2x8x8xf32>
    %248 = arith.mulf %243, %247 : vector<2x8x8xf32>
    "tpu.trace_start"() <{level = 10 : i32, message = "bqk,bkd->bqd"}> : () -> ()
    %cst_138 = arith.constant dense<0.000000e+00> : vector<2x8x8xf32>
    %249 = tpu.matmul %248, %235, %cst_138 {dimension_numbers = #tpu.dot_dimension_numbers<[2], [1], [1], [2], [0, 0, 0, 1, 1, 2], [0], [0]>} : vector<2x8x8xf32>, vector<2x8x8xf32>, vector<2x8x8xf32> -> vector<2x8x8xf32>
    "tpu.trace_stop"() : () -> ()
    %250 = vector.extract_strided_slice %230 {offsets = [0, 0, 8], sizes = [2, 8, 8], strides = [1, 1, 1]} : vector<2x8x32xf32> to vector<2x8x8xf32>
    %251 = vector.extract_strided_slice %231 {offsets = [0, 0, 8], sizes = [2, 8, 8], strides = [1, 1, 1]} : vector<2x8x32xf32> to vector<2x8x8xf32>
    %252 = vector.extract_strided_slice %232 {offsets = [0, 0, 8], sizes = [2, 8, 8], strides = [1, 1, 1]} : vector<2x8x32xf32> to vector<2x8x8xf32>
    "tpu.trace_start"() <{level = 10 : i32, message = "bqd,bkd->bqk"}> : () -> ()
    %cst_139 = arith.constant dense<0.000000e+00> : vector<2x8x8xf32>
    %253 = tpu.matmul %250, %251, %cst_139 {dimension_numbers = #tpu.dot_dimension_numbers<[2], [2], [1], [1], [0, 0, 0, 1, 1, 1], [0], [0]>} : vector<2x8x8xf32>, vector<2x8x8xf32>, vector<2x8x8xf32> -> vector<2x8x8xf32>
    "tpu.trace_stop"() : () -> ()
    %cst_140 = arith.constant 0.353553385 : f32
    %254 = vector.broadcast %cst_140 : f32 to vector<2x8x8xf32>
    %255 = arith.mulf %253, %254 : vector<2x8x8xf32>
    %cst_141 = arith.constant dense<0xFF800000> : vector<2x8xf32>
    %256 = vector.multi_reduction <maximumf>, %255, %cst_141 [2] : vector<2x8x8xf32> to vector<2x8xf32>
    %257 = vector.shape_cast %256 : vector<2x8xf32> to vector<2x8x1xf32>
    %258 = vector.broadcast %257 : vector<2x8x1xf32> to vector<2x8x8xf32>
    %259 = arith.subf %255, %258 : vector<2x8x8xf32>
    %260 = math.exp %259 : vector<2x8x8xf32>
    %cst_142 = arith.constant dense<0.000000e+00> : vector<2x8xf32>
    %261 = vector.multi_reduction <add>, %260, %cst_142 [2] : vector<2x8x8xf32> to vector<2x8xf32>
    %262 = vector.shape_cast %261 : vector<2x8xf32> to vector<2x8x1xf32>
    %263 = tpu.reciprocal %262 {approx = true} : vector<2x8x1xf32> -> vector<2x8x1xf32>
    %264 = vector.broadcast %263 : vector<2x8x1xf32> to vector<2x8x8xf32>
    %265 = arith.mulf %260, %264 : vector<2x8x8xf32>
    "tpu.trace_start"() <{level = 10 : i32, message = "bqk,bkd->bqd"}> : () -> ()
    %cst_143 = arith.constant dense<0.000000e+00> : vector<2x8x8xf32>
    %266 = tpu.matmul %265, %252, %cst_143 {dimension_numbers = #tpu.dot_dimension_numbers<[2], [1], [1], [2], [0, 0, 0, 1, 1, 2], [0], [0]>} : vector<2x8x8xf32>, vector<2x8x8xf32>, vector<2x8x8xf32> -> vector<2x8x8xf32>
    "tpu.trace_stop"() : () -> ()
    %267 = vector.extract_strided_slice %230 {offsets = [0, 0, 16], sizes = [2, 8, 8], strides = [1, 1, 1]} : vector<2x8x32xf32> to vector<2x8x8xf32>
    %268 = vector.extract_strided_slice %231 {offsets = [0, 0, 16], sizes = [2, 8, 8], strides = [1, 1, 1]} : vector<2x8x32xf32> to vector<2x8x8xf32>
    %269 = vector.extract_strided_slice %232 {offsets = [0, 0, 16], sizes = [2, 8, 8], strides = [1, 1, 1]} : vector<2x8x32xf32> to vector<2x8x8xf32>
    "tpu.trace_start"() <{level = 10 : i32, message = "bqd,bkd->bqk"}> : () -> ()
    %cst_144 = arith.constant dense<0.000000e+00> : vector<2x8x8xf32>
    %270 = tpu.matmul %267, %268, %cst_144 {dimension_numbers = #tpu.dot_dimension_numbers<[2], [2], [1], [1], [0, 0, 0, 1, 1, 1], [0], [0]>} : vector<2x8x8xf32>, vector<2x8x8xf32>, vector<2x8x8xf32> -> vector<2x8x8xf32>
    "tpu.trace_stop"() : () -> ()
    %cst_145 = arith.constant 0.353553385 : f32
    %271 = vector.broadcast %cst_145 : f32 to vector<2x8x8xf32>
    %272 = arith.mulf %270, %271 : vector<2x8x8xf32>
    %cst_146 = arith.constant dense<0xFF800000> : vector<2x8xf32>
    %273 = vector.multi_reduction <maximumf>, %272, %cst_146 [2] : vector<2x8x8xf32> to vector<2x8xf32>
    %274 = vector.shape_cast %273 : vector<2x8xf32> to vector<2x8x1xf32>
    %275 = vector.broadcast %274 : vector<2x8x1xf32> to vector<2x8x8xf32>
    %276 = arith.subf %272, %275 : vector<2x8x8xf32>
    %277 = math.exp %276 : vector<2x8x8xf32>
    %cst_147 = arith.constant dense<0.000000e+00> : vector<2x8xf32>
    %278 = vector.multi_reduction <add>, %277, %cst_147 [2] : vector<2x8x8xf32> to vector<2x8xf32>
    %279 = vector.shape_cast %278 : vector<2x8xf32> to vector<2x8x1xf32>
    %280 = tpu.reciprocal %279 {approx = true} : vector<2x8x1xf32> -> vector<2x8x1xf32>
    %281 = vector.broadcast %280 : vector<2x8x1xf32> to vector<2x8x8xf32>
    %282 = arith.mulf %277, %281 : vector<2x8x8xf32>
    "tpu.trace_start"() <{level = 10 : i32, message = "bqk,bkd->bqd"}> : () -> ()
    %cst_148 = arith.constant dense<0.000000e+00> : vector<2x8x8xf32>
    %283 = tpu.matmul %282, %269, %cst_148 {dimension_numbers = #tpu.dot_dimension_numbers<[2], [1], [1], [2], [0, 0, 0, 1, 1, 2], [0], [0]>} : vector<2x8x8xf32>, vector<2x8x8xf32>, vector<2x8x8xf32> -> vector<2x8x8xf32>
    "tpu.trace_stop"() : () -> ()
    %284 = vector.extract_strided_slice %230 {offsets = [0, 0, 24], sizes = [2, 8, 8], strides = [1, 1, 1]} : vector<2x8x32xf32> to vector<2x8x8xf32>
    %285 = vector.extract_strided_slice %231 {offsets = [0, 0, 24], sizes = [2, 8, 8], strides = [1, 1, 1]} : vector<2x8x32xf32> to vector<2x8x8xf32>
    %286 = vector.extract_strided_slice %232 {offsets = [0, 0, 24], sizes = [2, 8, 8], strides = [1, 1, 1]} : vector<2x8x32xf32> to vector<2x8x8xf32>
    "tpu.trace_start"() <{level = 10 : i32, message = "bqd,bkd->bqk"}> : () -> ()
    %cst_149 = arith.constant dense<0.000000e+00> : vector<2x8x8xf32>
    %287 = tpu.matmul %284, %285, %cst_149 {dimension_numbers = #tpu.dot_dimension_numbers<[2], [2], [1], [1], [0, 0, 0, 1, 1, 1], [0], [0]>} : vector<2x8x8xf32>, vector<2x8x8xf32>, vector<2x8x8xf32> -> vector<2x8x8xf32>
    "tpu.trace_stop"() : () -> ()
    %cst_150 = arith.constant 0.353553385 : f32
    %288 = vector.broadcast %cst_150 : f32 to vector<2x8x8xf32>
    %289 = arith.mulf %287, %288 : vector<2x8x8xf32>
    %cst_151 = arith.constant dense<0xFF800000> : vector<2x8xf32>
    %290 = vector.multi_reduction <maximumf>, %289, %cst_151 [2] : vector<2x8x8xf32> to vector<2x8xf32>
    %291 = vector.shape_cast %290 : vector<2x8xf32> to vector<2x8x1xf32>
    %292 = vector.broadcast %291 : vector<2x8x1xf32> to vector<2x8x8xf32>
    %293 = arith.subf %289, %292 : vector<2x8x8xf32>
    %294 = math.exp %293 : vector<2x8x8xf32>
    %cst_152 = arith.constant dense<0.000000e+00> : vector<2x8xf32>
    %295 = vector.multi_reduction <add>, %294, %cst_152 [2] : vector<2x8x8xf32> to vector<2x8xf32>
    %296 = vector.shape_cast %295 : vector<2x8xf32> to vector<2x8x1xf32>
    %297 = tpu.reciprocal %296 {approx = true} : vector<2x8x1xf32> -> vector<2x8x1xf32>
    %298 = vector.broadcast %297 : vector<2x8x1xf32> to vector<2x8x8xf32>
    %299 = arith.mulf %294, %298 : vector<2x8x8xf32>
    "tpu.trace_start"() <{level = 10 : i32, message = "bqk,bkd->bqd"}> : () -> ()
    %cst_153 = arith.constant dense<0.000000e+00> : vector<2x8x8xf32>
    %300 = tpu.matmul %299, %286, %cst_153 {dimension_numbers = #tpu.dot_dimension_numbers<[2], [1], [1], [2], [0, 0, 0, 1, 1, 2], [0], [0]>} : vector<2x8x8xf32>, vector<2x8x8xf32>, vector<2x8x8xf32> -> vector<2x8x8xf32>
    "tpu.trace_stop"() : () -> ()
    %301 = tpu.concatenate %249, %266, %283, %300 in 2 : vector<2x8x8xf32>, vector<2x8x8xf32>, vector<2x8x8xf32>, vector<2x8x8xf32> -> vector<2x8x32xf32>
    %302 = vector.shape_cast %301 : vector<2x8x32xf32> to vector<16x32xf32>
    %c1_154 = arith.constant 1 : index
    %c0_155 = arith.constant 0 : index
    %c0_156 = arith.constant 0 : index
    %303 = vector.load %arg9[%c1_154, %c0_155, %c0_156] : memref<2x32x32xf32, #tpu.memory_space<vmem>>, vector<1x32x32xf32>
    %304 = vector.shape_cast %303 : vector<1x32x32xf32> to vector<32x32xf32>
    %cst_157 = arith.constant dense<0.000000e+00> : vector<16x32xf32>
    %305 = tpu.matmul %302, %304, %cst_157 {dimension_numbers = #tpu.dot_dimension_numbers<[1], [0], [0], [1], [0, 0, 1, 1], [], []>} : vector<16x32xf32>, vector<32x32xf32>, vector<16x32xf32> -> vector<16x32xf32>
    %c1_158 = arith.constant 1 : index
    %c0_159 = arith.constant 0 : index
    %c0_160 = arith.constant 0 : index
    %306 = vector.load %arg10[%c1_158, %c0_159, %c0_160] : memref<2x1x32xf32, #tpu.memory_space<vmem>>, vector<1x1x32xf32>
    %307 = vector.shape_cast %306 : vector<1x1x32xf32> to vector<1x32xf32>
    %308 = vector.broadcast %307 : vector<1x32xf32> to vector<16x32xf32>
    %309 = arith.addf %305, %308 : vector<16x32xf32>
    %310 = arith.addf %208, %309 : vector<16x32xf32>
    %c1_161 = arith.constant 1 : index
    %c0_162 = arith.constant 0 : index
    %c0_163 = arith.constant 0 : index
    %311 = vector.load %arg11[%c1_161, %c0_162, %c0_163] : memref<2x1x32xf32, #tpu.memory_space<vmem>>, vector<1x1x32xf32>
    %312 = vector.shape_cast %311 : vector<1x1x32xf32> to vector<1x32xf32>
    %c1_164 = arith.constant 1 : index
    %c0_165 = arith.constant 0 : index
    %c0_166 = arith.constant 0 : index
    %313 = vector.load %arg12[%c1_164, %c0_165, %c0_166] : memref<2x1x32xf32, #tpu.memory_space<vmem>>, vector<1x1x32xf32>
    %314 = vector.shape_cast %313 : vector<1x1x32xf32> to vector<1x32xf32>
    %cst_167 = arith.constant dense<0.000000e+00> : vector<16xf32>
    %315 = vector.multi_reduction <add>, %310, %cst_167 [1] : vector<16x32xf32> to vector<16xf32>
    %316 = vector.shape_cast %315 : vector<16xf32> to vector<16x1xf32>
    %cst_168 = arith.constant 3.200000e+01 : f32
    %317 = vector.broadcast %cst_168 : f32 to vector<16x1xf32>
    %318 = arith.divf %316, %317 : vector<16x1xf32>
    %319 = vector.broadcast %318 : vector<16x1xf32> to vector<16x32xf32>
    %320 = arith.subf %310, %319 : vector<16x32xf32>
    %321 = arith.mulf %320, %320 : vector<16x32xf32>
    %cst_169 = arith.constant dense<0.000000e+00> : vector<16xf32>
    %322 = vector.multi_reduction <add>, %321, %cst_169 [1] : vector<16x32xf32> to vector<16xf32>
    %323 = vector.shape_cast %322 : vector<16xf32> to vector<16x1xf32>
    %cst_170 = arith.constant 3.200000e+01 : f32
    %324 = vector.broadcast %cst_170 : f32 to vector<16x1xf32>
    %325 = arith.divf %323, %324 : vector<16x1xf32>
    %326 = vector.broadcast %318 : vector<16x1xf32> to vector<16x32xf32>
    %327 = arith.subf %310, %326 : vector<16x32xf32>
    %cst_171 = arith.constant 9.99999996E-13 : f32
    %328 = vector.broadcast %cst_171 : f32 to vector<16x1xf32>
    %329 = arith.addf %325, %328 : vector<16x1xf32>
    %330 = math.rsqrt %329 : vector<16x1xf32>
    %331 = vector.broadcast %330 : vector<16x1xf32> to vector<16x32xf32>
    %332 = arith.mulf %327, %331 : vector<16x32xf32>
    %333 = vector.broadcast %312 : vector<1x32xf32> to vector<16x32xf32>
    %334 = arith.mulf %332, %333 : vector<16x32xf32>
    %335 = vector.broadcast %314 : vector<1x32xf32> to vector<16x32xf32>
    %336 = arith.addf %334, %335 : vector<16x32xf32>
    %c1_172 = arith.constant 1 : index
    %c0_173 = arith.constant 0 : index
    %c0_174 = arith.constant 0 : index
    %337 = vector.load %arg13[%c1_172, %c0_173, %c0_174] : memref<2x32x64xf32, #tpu.memory_space<vmem>>, vector<1x32x64xf32>
    %338 = vector.shape_cast %337 : vector<1x32x64xf32> to vector<32x64xf32>
    %cst_175 = arith.constant dense<0.000000e+00> : vector<16x64xf32>
    %339 = tpu.matmul %336, %338, %cst_175 {dimension_numbers = #tpu.dot_dimension_numbers<[1], [0], [0], [1], [0, 0, 1, 1], [], []>} : vector<16x32xf32>, vector<32x64xf32>, vector<16x64xf32> -> vector<16x64xf32>
    %c1_176 = arith.constant 1 : index
    %c0_177 = arith.constant 0 : index
    %c0_178 = arith.constant 0 : index
    %340 = vector.load %arg14[%c1_176, %c0_177, %c0_178] : memref<2x1x64xf32, #tpu.memory_space<vmem>>, vector<1x1x64xf32>
    %341 = vector.shape_cast %340 : vector<1x1x64xf32> to vector<1x64xf32>
    %342 = vector.broadcast %341 : vector<1x64xf32> to vector<16x64xf32>
    %343 = arith.addf %339, %342 : vector<16x64xf32>
    %cst_179 = arith.constant 5.000000e-01 : f32
    %344 = vector.broadcast %cst_179 : f32 to vector<16x64xf32>
    %345 = arith.mulf %344, %343 : vector<16x64xf32>
    %cst_180 = arith.constant 0.707106769 : f32
    %346 = vector.broadcast %cst_180 : f32 to vector<16x64xf32>
    %347 = arith.mulf %343, %346 : vector<16x64xf32>
    %348 = math.erf %347 : vector<16x64xf32>
    %cst_181 = arith.constant 1.000000e+00 : f32
    %349 = vector.broadcast %cst_181 : f32 to vector<16x64xf32>
    %350 = arith.addf %349, %348 : vector<16x64xf32>
    %351 = arith.mulf %345, %350 : vector<16x64xf32>
    %c1_182 = arith.constant 1 : index
    %c0_183 = arith.constant 0 : index
    %c0_184 = arith.constant 0 : index
    %352 = vector.load %arg15[%c1_182, %c0_183, %c0_184] : memref<2x64x32xf32, #tpu.memory_space<vmem>>, vector<1x64x32xf32>
    %353 = vector.shape_cast %352 : vector<1x64x32xf32> to vector<64x32xf32>
    %cst_185 = arith.constant dense<0.000000e+00> : vector<16x32xf32>
    %354 = tpu.matmul %351, %353, %cst_185 {dimension_numbers = #tpu.dot_dimension_numbers<[1], [0], [0], [1], [0, 0, 1, 1], [], []>} : vector<16x64xf32>, vector<64x32xf32>, vector<16x32xf32> -> vector<16x32xf32>
    %c1_186 = arith.constant 1 : index
    %c0_187 = arith.constant 0 : index
    %c0_188 = arith.constant 0 : index
    %355 = vector.load %arg16[%c1_186, %c0_187, %c0_188] : memref<2x1x32xf32, #tpu.memory_space<vmem>>, vector<1x1x32xf32>
    %356 = vector.shape_cast %355 : vector<1x1x32xf32> to vector<1x32xf32>
    %357 = vector.broadcast %356 : vector<1x32xf32> to vector<16x32xf32>
    %358 = arith.addf %354, %357 : vector<16x32xf32>
    %359 = arith.addf %336, %358 : vector<16x32xf32>
    %c1_189 = arith.constant 1 : index
    %c0_190 = arith.constant 0 : index
    %c0_191 = arith.constant 0 : index
    %360 = vector.load %arg17[%c1_189, %c0_190, %c0_191] : memref<2x1x32xf32, #tpu.memory_space<vmem>>, vector<1x1x32xf32>
    %361 = vector.shape_cast %360 : vector<1x1x32xf32> to vector<1x32xf32>
    %c1_192 = arith.constant 1 : index
    %c0_193 = arith.constant 0 : index
    %c0_194 = arith.constant 0 : index
    %362 = vector.load %arg18[%c1_192, %c0_193, %c0_194] : memref<2x1x32xf32, #tpu.memory_space<vmem>>, vector<1x1x32xf32>
    %363 = vector.shape_cast %362 : vector<1x1x32xf32> to vector<1x32xf32>
    %cst_195 = arith.constant dense<0.000000e+00> : vector<16xf32>
    %364 = vector.multi_reduction <add>, %359, %cst_195 [1] : vector<16x32xf32> to vector<16xf32>
    %365 = vector.shape_cast %364 : vector<16xf32> to vector<16x1xf32>
    %cst_196 = arith.constant 3.200000e+01 : f32
    %366 = vector.broadcast %cst_196 : f32 to vector<16x1xf32>
    %367 = arith.divf %365, %366 : vector<16x1xf32>
    %368 = vector.broadcast %367 : vector<16x1xf32> to vector<16x32xf32>
    %369 = arith.subf %359, %368 : vector<16x32xf32>
    %370 = arith.mulf %369, %369 : vector<16x32xf32>
    %cst_197 = arith.constant dense<0.000000e+00> : vector<16xf32>
    %371 = vector.multi_reduction <add>, %370, %cst_197 [1] : vector<16x32xf32> to vector<16xf32>
    %372 = vector.shape_cast %371 : vector<16xf32> to vector<16x1xf32>
    %cst_198 = arith.constant 3.200000e+01 : f32
    %373 = vector.broadcast %cst_198 : f32 to vector<16x1xf32>
    %374 = arith.divf %372, %373 : vector<16x1xf32>
    %375 = vector.broadcast %367 : vector<16x1xf32> to vector<16x32xf32>
    %376 = arith.subf %359, %375 : vector<16x32xf32>
    %cst_199 = arith.constant 9.99999996E-13 : f32
    %377 = vector.broadcast %cst_199 : f32 to vector<16x1xf32>
    %378 = arith.addf %374, %377 : vector<16x1xf32>
    %379 = math.rsqrt %378 : vector<16x1xf32>
    %380 = vector.broadcast %379 : vector<16x1xf32> to vector<16x32xf32>
    %381 = arith.mulf %376, %380 : vector<16x32xf32>
    %382 = vector.broadcast %361 : vector<1x32xf32> to vector<16x32xf32>
    %383 = arith.mulf %381, %382 : vector<16x32xf32>
    %384 = vector.broadcast %363 : vector<1x32xf32> to vector<16x32xf32>
    %385 = arith.addf %383, %384 : vector<16x32xf32>
    %c0_200 = arith.constant 0 : index
    %c0_201 = arith.constant 0 : index
    %386 = vector.load %arg19[%c0_200, %c0_201] : memref<2x16xf32, #tpu.memory_space<vmem>>, vector<2x16xf32>
    %cst_202 = arith.constant dense<0.000000e+00> : vector<2x32xf32>
    %387 = tpu.matmul %386, %385, %cst_202 {dimension_numbers = #tpu.dot_dimension_numbers<[1], [0], [0], [1], [0, 0, 1, 1], [], []>} : vector<2x16xf32>, vector<16x32xf32>, vector<2x32xf32> -> vector<2x32xf32>
    %c0_203 = arith.constant 0 : index
    %c0_204 = arith.constant 0 : index
    %388 = vector.load %arg20[%c0_203, %c0_204] : memref<2x32xf32, #tpu.memory_space<vmem>>, vector<2x32xf32>
    tpu.vector_store %arg20[%c0_203, %c0_204], %387 {strides = array<i32>} : memref<2x32xf32, #tpu.memory_space<vmem>>, vector<2x32xf32>,
    return
  }
  func.func @transform_0(%arg0: i32) -> (i32, i32) {
    %c0_i32 = arith.constant 0 : i32
    %c0_i32_0 = arith.constant 0 : i32
    %c0_i32_1 = arith.constant 0 : i32
    return %c0_i32, %c0_i32_0 : i32, i32
  }
  func.func @transform_1(%arg0: i32) -> (i32, i32) {
    %c0_i32 = arith.constant 0 : i32
    %c0_i32_0 = arith.constant 0 : i32
    %c0_i32_1 = arith.constant 0 : i32
    return %c0_i32, %c0_i32_0 : i32, i32
  }
  func.func @transform_2(%arg0: i32) -> (i32, i32) {
    %c0_i32 = arith.constant 0 : i32
    %c0_i32_0 = arith.constant 0 : i32
    %c0_i32_1 = arith.constant 0 : i32
    return %c0_i32, %c0_i32_0 : i32, i32
  }
  func.func @transform_3(%arg0: i32) -> (i32, i32) {
    %c0_i32 = arith.constant 0 : i32
    %c0_i32_0 = arith.constant 0 : i32
    %c0_i32_1 = arith.constant 0 : i32
    return %c0_i32, %c0_i32_0 : i32, i32
  }
  func.func @transform_4(%arg0: i32) -> (i32, i32) {
    %c0_i32 = arith.constant 0 : i32
    %c0_i32_0 = arith.constant 0 : i32
    %c0_i32_1 = arith.constant 0 : i32
    return %c0_i32, %c0_i32_0 : i32, i32
  }
  func.func @transform_5(%arg0: i32) -> (i32, i32) {
    %c0_i32 = arith.constant 0 : i32
    %c0_i32_0 = arith.constant 0 : i32
    %c0_i32_1 = arith.constant 0 : i32
    return %c0_i32, %c0_i32_0 : i32, i32
  }
  func.func @transform_6(%arg0: i32) -> (i32, i32, i32, i32) {
    %c0_i32 = arith.constant 0 : i32
    %c0_i32_0 = arith.constant 0 : i32
    %c0_i32_1 = arith.constant 0 : i32
    %c0_i32_2 = arith.constant 0 : i32
    %c0_i32_3 = arith.constant 0 : i32
    return %c0_i32, %c0_i32_0, %c0_i32_1, %c0_i32_2 : i32, i32, i32, i32
  }
  func.func @transform_7(%arg0: i32) -> (i32, i32, i32, i32) {
    %c0_i32 = arith.constant 0 : i32
    %c0_i32_0 = arith.constant 0 : i32
    %c0_i32_1 = arith.constant 0 : i32
    %c0_i32_2 = arith.constant 0 : i32
    %c0_i32_3 = arith.constant 0 : i32
    return %c0_i32, %c0_i32_0, %c0_i32_1, %c0_i32_2 : i32, i32, i32, i32
  }
  func.func @transform_8(%arg0: i32) -> (i32, i32, i32) {
    %c0_i32 = arith.constant 0 : i32
    %c0_i32_0 = arith.constant 0 : i32
    %c0_i32_1 = arith.constant 0 : i32
    %c0_i32_2 = arith.constant 0 : i32
    return %c0_i32, %c0_i32_0, %c0_i32_1 : i32, i32, i32
  }
  func.func @transform_9(%arg0: i32) -> (i32, i32, i32) {
    %c0_i32 = arith.constant 0 : i32
    %c0_i32_0 = arith.constant 0 : i32
    %c0_i32_1 = arith.constant 0 : i32
    %c0_i32_2 = arith.constant 0 : i32
    return %c0_i32, %c0_i32_0, %c0_i32_1 : i32, i32, i32
  }
  func.func @transform_10(%arg0: i32) -> (i32, i32, i32) {
    %c0_i32 = arith.constant 0 : i32
    %c0_i32_0 = arith.constant 0 : i32
    %c0_i32_1 = arith.constant 0 : i32
    %c0_i32_2 = arith.constant 0 : i32
    return %c0_i32, %c0_i32_0, %c0_i32_1 : i32, i32, i32
  }
  func.func @transform_11(%arg0: i32) -> (i32, i32, i32) {
    %c0_i32 = arith.constant 0 : i32
    %c0_i32_0 = arith.constant 0 : i32
    %c0_i32_1 = arith.constant 0 : i32
    %c0_i32_2 = arith.constant 0 : i32
    return %c0_i32, %c0_i32_0, %c0_i32_1 : i32, i32, i32
  }
  func.func @transform_12(%arg0: i32) -> (i32, i32, i32) {
    %c0_i32 = arith.constant 0 : i32
    %c0_i32_0 = arith.constant 0 : i32
    %c0_i32_1 = arith.constant 0 : i32
    %c0_i32_2 = arith.constant 0 : i32
    return %c0_i32, %c0_i32_0, %c0_i32_1 : i32, i32, i32
  }
  func.func @transform_13(%arg0: i32) -> (i32, i32, i32) {
    %c0_i32 = arith.constant 0 : i32
    %c0_i32_0 = arith.constant 0 : i32
    %c0_i32_1 = arith.constant 0 : i32
    %c0_i32_2 = arith.constant 0 : i32
    return %c0_i32, %c0_i32_0, %c0_i32_1 : i32, i32, i32
  }
  func.func @transform_14(%arg0: i32) -> (i32, i32, i32) {
    %c0_i32 = arith.constant 0 : i32
    %c0_i32_0 = arith.constant 0 : i32
    %c0_i32_1 = arith.constant 0 : i32
    %c0_i32_2 = arith.constant 0 : i32
    return %c0_i32, %c0_i32_0, %c0_i32_1 : i32, i32, i32
  }
  func.func @transform_15(%arg0: i32) -> (i32, i32, i32) {
    %c0_i32 = arith.constant 0 : i32
    %c0_i32_0 = arith.constant 0 : i32
    %c0_i32_1 = arith.constant 0 : i32
    %c0_i32_2 = arith.constant 0 : i32
    return %c0_i32, %c0_i32_0, %c0_i32_1 : i32, i32, i32
  }
  func.func @transform_16(%arg0: i32) -> (i32, i32, i32) {
    %c0_i32 = arith.constant 0 : i32
    %c0_i32_0 = arith.constant 0 : i32
    %c0_i32_1 = arith.constant 0 : i32
    %c0_i32_2 = arith.constant 0 : i32
    return %c0_i32, %c0_i32_0, %c0_i32_1 : i32, i32, i32
  }
  func.func @transform_17(%arg0: i32) -> (i32, i32, i32) {
    %c0_i32 = arith.constant 0 : i32
    %c0_i32_0 = arith.constant 0 : i32
    %c0_i32_1 = arith.constant 0 : i32
    %c0_i32_2 = arith.constant 0 : i32
    return %c0_i32, %c0_i32_0, %c0_i32_1 : i32, i32, i32
  }
  func.func @transform_18(%arg0: i32) -> (i32, i32) {
    %c0_i32 = arith.constant 0 : i32
    %c0_i32_0 = arith.constant 0 : i32
    %c0_i32_1 = arith.constant 0 : i32
    return %c0_i32, %c0_i32_0 : i32, i32
  }
  func.func @transform_19(%arg0: i32) -> (i32, i32) {
    %c0_i32 = arith.constant 0 : i32
    %c0_i32_0 = arith.constant 0 : i32
    %c0_i32_1 = arith.constant 0 : i32
    return %c0_i32, %c0_i32_0 : i32, i32
  }
}

</mosaic_0001>

<llo_original>
// kernel: transformer_encoder_forward.1
$region0: #{transformer_encoder_forward.1}
  #allocation0 [shape = 'u32[]', space=smem, size = 0x4, offset = 0x4, fixed_abs, tag = 'smem constant byte address 0x4 - core index']
  #allocation1 [shape = 'u32[72,128]{1,0:T(1,128)}', space=vmem, size = 0x9000, scoped, tag = 'internal scratch']
  %s0 = inlined_call_operand.vmem [shape: f32[16,5], index: 0, kind: input, shape index: {}]
  %s1 = inlined_call_operand.vmem [shape: f32[5,32], index: 1, kind: input, shape index: {}]
  %s2 = inlined_call_operand.vmem [shape: f32[1,32], index: 2, kind: input, shape index: {}]
  %s3 = inlined_call_operand.vmem [shape: f32[16,32], index: 3, kind: input, shape index: {}]
  %s4 = inlined_call_operand.vmem [shape: f32[1,32], index: 4, kind: input, shape index: {}]
  %s5 = inlined_call_operand.vmem [shape: f32[1,32], index: 5, kind: input, shape index: {}]
  %s6 = inlined_call_operand.vmem [shape: f32[2,3,32,32], index: 6, kind: input, shape index: {}]
  %s7 = inlined_call_operand.vmem [shape: f32[2,3,1,32], index: 7, kind: input, shape index: {}]
  %s8 = inlined_call_operand.hbm [shape: f32[2,32,32], index: 8, kind: input, shape index: {}]
  %s9 = inlined_call_operand.vmem [shape: f32[2,1,32], index: 9, kind: input, shape index: {}]
  %s10 = inlined_call_operand.vmem [shape: f32[2,1,32], index: 10, kind: input, shape index: {}]
  %s11 = inlined_call_operand.vmem [shape: f32[2,1,32], index: 11, kind: input, shape index: {}]
  %s12 = inlined_call_operand.hbm [shape: f32[2,32,64], index: 12, kind: input, shape index: {}]
  %s13 = inlined_call_operand.vmem [shape: f32[2,1,64], index: 13, kind: input, shape index: {}]
  %s14 = inlined_call_operand.vmem [shape: f32[2,64,32], index: 14, kind: input, shape index: {}]
  %s15 = inlined_call_operand.vmem [shape: f32[2,1,32], index: 15, kind: input, shape index: {}]
  %s16 = inlined_call_operand.vmem [shape: f32[2,1,32], index: 16, kind: input, shape index: {}]
  %s17 = inlined_call_operand.vmem [shape: f32[2,1,32], index: 17, kind: input, shape index: {}]
  %s18 = inlined_call_operand.vmem [shape: f32[2,16], index: 18, kind: input, shape index: {}]
  %s19 = inlined_call_operand.hbm [shape: f32[2,32], index: 19, kind: output, shape index: {}]
  %s20 = sld [smem:[#allocation0]]
  $region94: #{transformer_encoder_forward.1} parent=0
    _
  %s22 = ssub.s32 1, %s20
  %s23 = scalar_select 0, %s22, %s20
  $region1: #{transformer_encoder_forward.1} parent=0
    #allocation2 [shape = 'u8[32768]{0}', space=vmem, size = 0x8000, scoped, tag = 'input window, operand 8, single buffered']
    #allocation3 [shape = 's32[1]{0}', space=sflag, size = 0x4, scoped, tag = 'scoped memory for transformer_encoder_forward.1']
    #allocation4 [shape = 's32[1]{0}', space=sflag, size = 0x4, scoped, tag = 'scoped memory for transformer_encoder_forward.1']
    #allocation5 [shape = 'u8[32768]{0}', space=vmem, size = 0x8000, scoped, tag = 'input window, operand 12, single buffered']
    #allocation6 [shape = 's32[1]{0}', space=sflag, size = 0x4, scoped, tag = 'scoped memory for transformer_encoder_forward.1']
    #allocation7 [shape = 'u8[1024]{0}', space=vmem, size = 0x400, scoped, tag = 'output window, operand 0, single buffered']
    %24 = vsyncpa [#allocation3], 0
    %25 = vsyncpa [#allocation6], 0
    %26 = vsyncpa [#allocation4], 0
    // Predicated region
    $region2: #{transformer_encoder_forward.1} parent=1 // pred_check
      _
    $region3: #{transformer_encoder_forward.1} parent=1 // pred_check_branch
      %28 = sbr.rel (0) target = $region5
    $region4: #{transformer_encoder_forward.1} parent=1 // pred_region
      _
    $region5: #{transformer_encoder_forward.1} parent=1 // pred_fallthru
      _
    // Predicated region
    $region6: #{transformer_encoder_forward.1} parent=1 // pred_check
      _
    $region7: #{transformer_encoder_forward.1} parent=1 // pred_check_branch
      %30 = sbr.rel (0) target = $region9
    $region8: #{transformer_encoder_forward.1} parent=1 // pred_region
      _
    $region9: #{transformer_encoder_forward.1} parent=1 // pred_fallthru
      _
    // Predicated region
    $region10: #{transformer_encoder_forward.1} parent=1 // pred_check
      _
    $region11: #{transformer_encoder_forward.1} parent=1 // pred_check_branch
      %32 = sbr.rel (0) target = $region13
    $region12: #{transformer_encoder_forward.1} parent=1 // pred_region
      _
    $region13: #{transformer_encoder_forward.1} parent=1 // pred_fallthru
      _
    // Predicated region
    $region14: #{transformer_encoder_forward.1} parent=1 // pred_check
      _
    $region15: #{transformer_encoder_forward.1} parent=1 // pred_check_branch
      %34 = sbr.rel (0) target = $region17
    $region16: #{transformer_encoder_forward.1} parent=1 // pred_region
      _
    $region17: #{transformer_encoder_forward.1} parent=1 // pred_fallthru
      _
    // Predicated region
    $region18: #{transformer_encoder_forward.1} parent=1 // pred_check
      _
    $region19: #{transformer_encoder_forward.1} parent=1 // pred_check_branch
      %36 = sbr.rel (0) target = $region21
    $region20: #{transformer_encoder_forward.1} parent=1 // pred_region
      _
    $region21: #{transformer_encoder_forward.1} parent=1 // pred_fallthru
      _
    // Predicated region
    $region22: #{transformer_encoder_forward.1} parent=1 // pred_check
      _
    $region23: #{transformer_encoder_forward.1} parent=1 // pred_check_branch
      %38 = sbr.rel (0) target = $region25
    $region24: #{transformer_encoder_forward.1} parent=1 // pred_region
      _
    $region25: #{transformer_encoder_forward.1} parent=1 // pred_fallthru
      _
    // Predicated region
    $region26: #{transformer_encoder_forward.1} parent=1 // pred_check
      _
    $region27: #{transformer_encoder_forward.1} parent=1 // pred_check_branch
      %40 = sbr.rel (0) target = $region29
    $region28: #{transformer_encoder_forward.1} parent=1 // pred_region
      _
    $region29: #{transformer_encoder_forward.1} parent=1 // pred_fallthru
      _
    // Predicated region
    $region30: #{transformer_encoder_forward.1} parent=1 // pred_check
      _
    $region31: #{transformer_encoder_forward.1} parent=1 // pred_check_branch
      %42 = sbr.rel (0) target = $region33
    $region32: #{transformer_encoder_forward.1} parent=1 // pred_region
      _
    $region33: #{transformer_encoder_forward.1} parent=1 // pred_fallthru
      _
    // Predicated region
    $region34: #{transformer_encoder_forward.1} parent=1 // pred_check
      _
    $region35: #{transformer_encoder_forward.1} parent=1 // pred_check_branch
      %44 = sbr.rel (0) target = $region37
    $region36: #{transformer_encoder_forward.1} parent=1 // pred_region
      %46 = vsyncadd [#allocation3], 0
      %s47 = sshll.u32 %s8, 4
      %s48 = int_to_ptr.hbm [resolvable:$true] %s47
      %s49 = sshll.u32 [#allocation2], 4
      %s50 = int_to_ptr.vmem [resolvable:$true] %s49
      %55 = dma.hbm_to_vmem [thread:$0]  %s48, 1024, %s50, [#allocation3], 128, 128, 8
    $region37: #{transformer_encoder_forward.1} parent=1 // pred_fallthru
      _
    // Predicated region
    $region38: #{transformer_encoder_forward.1} parent=1 // pred_check
      _
    $region39: #{transformer_encoder_forward.1} parent=1 // pred_check_branch
      %57 = sbr.rel (0) target = $region41
    $region40: #{transformer_encoder_forward.1} parent=1 // pred_region
      _
    $region41: #{transformer_encoder_forward.1} parent=1 // pred_fallthru
      _
    // Predicated region
    $region42: #{transformer_encoder_forward.1} parent=1 // pred_check
      _
    $region43: #{transformer_encoder_forward.1} parent=1 // pred_check_branch
      %59 = sbr.rel (0) target = $region45
    $region44: #{transformer_encoder_forward.1} parent=1 // pred_region
      _
    $region45: #{transformer_encoder_forward.1} parent=1 // pred_fallthru
      _
    // Predicated region
    $region46: #{transformer_encoder_forward.1} parent=1 // pred_check
      _
    $region47: #{transformer_encoder_forward.1} parent=1 // pred_check_branch
      %61 = sbr.rel (0) target = $region49
    $region48: #{transformer_encoder_forward.1} parent=1 // pred_region
      _
    $region49: #{transformer_encoder_forward.1} parent=1 // pred_fallthru
      _
    // Predicated region
    $region50: #{transformer_encoder_forward.1} parent=1 // pred_check
      _
    $region51: #{transformer_encoder_forward.1} parent=1 // pred_check_branch
      %63 = sbr.rel (0) target = $region53
    $region52: #{transformer_encoder_forward.1} parent=1 // pred_region
      %65 = vsyncadd [#allocation6], 0
      %s66 = sshll.u32 %s12, 4
      %s67 = int_to_ptr.hbm [resolvable:$true] %s66
      %s68 = sshll.u32 [#allocation5], 4
      %s69 = int_to_ptr.vmem [resolvable:$true] %s68
      %74 = dma.hbm_to_vmem [thread:$0]  %s67, 1024, %s69, [#allocation6], 128, 128, 8
    $region53: #{transformer_encoder_forward.1} parent=1 // pred_fallthru
      _
    // Predicated region
    $region54: #{transformer_encoder_forward.1} parent=1 // pred_check
      _
    $region55: #{transformer_encoder_forward.1} parent=1 // pred_check_branch
      %76 = sbr.rel (0) target = $region57
    $region56: #{transformer_encoder_forward.1} parent=1 // pred_region
      _
    $region57: #{transformer_encoder_forward.1} parent=1 // pred_fallthru
      _
    // Predicated region
    $region58: #{transformer_encoder_forward.1} parent=1 // pred_check
      _
    $region59: #{transformer_encoder_forward.1} parent=1 // pred_check_branch
      %78 = sbr.rel (0) target = $region61
    $region60: #{transformer_encoder_forward.1} parent=1 // pred_region
      _
    $region61: #{transformer_encoder_forward.1} parent=1 // pred_fallthru
      _
    // Predicated region
    $region62: #{transformer_encoder_forward.1} parent=1 // pred_check
      _
    $region63: #{transformer_encoder_forward.1} parent=1 // pred_check_branch
      %80 = sbr.rel (0) target = $region65
    $region64: #{transformer_encoder_forward.1} parent=1 // pred_region
      _
    $region65: #{transformer_encoder_forward.1} parent=1 // pred_fallthru
      _
    // Predicated region
    $region66: #{transformer_encoder_forward.1} parent=1 // pred_check
      _
    $region67: #{transformer_encoder_forward.1} parent=1 // pred_check_branch
      %82 = sbr.rel (0) target = $region69
    $region68: #{transformer_encoder_forward.1} parent=1 // pred_region
      _
    $region69: #{transformer_encoder_forward.1} parent=1 // pred_fallthru
      _
    // Predicated region
    $region70: #{transformer_encoder_forward.1} parent=1 // pred_check
      _
    $region71: #{transformer_encoder_forward.1} parent=1 // pred_check_branch
      %84 = sbr.rel (0) target = $region73
    $region72: #{transformer_encoder_forward.1} parent=1 // pred_region
      _
    $region73: #{transformer_encoder_forward.1} parent=1 // pred_fallthru
      _
    // Predicated region
    $region74: #{transformer_encoder_forward.1} parent=1 // pred_check
      _
    $region75: #{transformer_encoder_forward.1} parent=1 // pred_check_branch
      %86 = sbr.rel (0) target = $region77
    $region76: #{transformer_encoder_forward.1} parent=1 // pred_region
      _
    $region77: #{transformer_encoder_forward.1} parent=1 // pred_fallthru
      _
    // Predicated region
    $region78: #{transformer_encoder_forward.1} parent=1 // pred_check
      _
    $region79: #{transformer_encoder_forward.1} parent=1 // pred_check_branch
      %88 = sbr.rel (0) target = $region81
    $region80: #{transformer_encoder_forward.1} parent=1 // pred_region
      %90 = dma.done [#allocation3], 1024
    $region81: #{transformer_encoder_forward.1} parent=1 // pred_fallthru
      _
    // Predicated region
    $region82: #{transformer_encoder_forward.1} parent=1 // pred_check
      _
    $region83: #{transformer_encoder_forward.1} parent=1 // pred_check_branch
      %92 = sbr.rel (0) target = $region85
    $region84: #{transformer_encoder_forward.1} parent=1 // pred_region
      %94 = dma.done [#allocation6], 1024
    $region85: #{transformer_encoder_forward.1} parent=1 // pred_fallthru
      _
    %v95 = vld [vmem:[%s0] sm:$0xff]
    %v96 = vld [vmem:[%s0 + $0x8] sm:$0xff]
    %v97 = vld [vmem:[%s1] sm:$0x1f]
    %v98 = vld [vmem:[%s2] sm:$0x1]
    %v100 = vperm.slane %v98, 0
    %vm102 = vcmask 39936
    %v104 = vsel %vm102, %v95, 0
    %v107 = vsel %vm102, %v96, 0
    %vm109 = vcmask 1044480
    %v111 = vsel %vm109, %v97, 0
    %113 = vmatpush.msra.mxu0 0.0
    %114 = vmatpush.msra.mxu0 0.0
    %115 = vmatpush.msra.mxu0 0.0
    %116 = vmatpush.msra.mxu0 0.0
    %117 = vmatpush.msra.mxu0 0.0
    %118 = vmatpush.msra.mxu0 0.0
    %119 = vmatpush.msra.mxu0 0.0
    %120 = vmatpush.msra.mxu0 0.0
    %121 = vmatpush.msra.mxu0 0.0
    %122 = vmatpush.msra.mxu0 0.0
    %123 = vmatpush.msra.mxu0 0.0
    %124 = vmatpush.msra.mxu0 0.0
    %125 = vmatpush.msra.mxu0 0.0
    %126 = vmatpush.msra.mxu0 0.0
    %127 = vmatpush.msra.mxu0 0.0
    %128 = vmatpush.msra.mxu0 %v111
    %129 = vmatmul.f32.gmra.mxu0 %v104
    %v130 = vpop.f32.mrf.mxu0
    %v131 = vadd.f32 %v100, %v130
    %132 = vmatmul.f32.gmra.mxu0 %v107
    %v133 = vpop.f32.mrf.mxu0
    %v134 = vadd.f32 %v100, %v133
    %135 = vdwg.mxu0
    %v136 = vld [vmem:[%s3] sm:$0xff]
    %v137 = vld [vmem:[%s3 + $0x8] sm:$0xff]
    %v138 = vadd.f32 %v131, %v136
    %v139 = vadd.f32 %v134, %v137
    %v140 = vld [vmem:[%s4] sm:$0x1]
    %v141 = vld [vmem:[%s5] sm:$0x1]
    %vm142 = vcmask 261120
    %v143 = vsel %vm142, %v138, 0.0
    %144 = vadd.xlane.f32.xlu0 %v143
    %v145 = vpop.xlane.xlu0 %144
    %v146 = vsel %vm142, %v139, 0.0
    %147 = vadd.xlane.f32.xlu0 %v146
    %v148 = vpop.xlane.xlu0 %147
    %v149 = vrcp.pop 32.0
    %v150 = vmul.f32 32.0, %v149
    %v151 = vsub.f32 1.0, %v150
    %v152 = vmul.f32 %v149, %v151
    %v153 = vadd.f32 %v149, %v152
    %vm154 = vweird.f32 %v149
    %v155 = vsel %vm154, %v149, %v153
    %v156 = vmul.f32 %v145, %v155
    %v157 = vmul.f32 %v148, %v155
    %v158 = vsub.f32 %v138, %v156
    %v159 = vsub.f32 %v139, %v157
    %v160 = vmul.f32 %v158, %v158
    %v161 = vmul.f32 %v159, %v159
    %v162 = vsel %vm142, %v160, 0.0
    %163 = vadd.xlane.f32.xlu0 %v162
    %v164 = vpop.xlane.xlu0 %163
    %v165 = vsel %vm142, %v161, 0.0
    %166 = vadd.xlane.f32.xlu0 %v165
    %v167 = vpop.xlane.xlu0 %166
    %v168 = vmul.f32 %v164, %v155
    %v169 = vmul.f32 %v167, %v155
    %v170 = vadd.f32 %v168, 1e-12
    %v171 = vadd.f32 %v169, 1e-12
    %v172 = vrsqrt.pop %v170
    %v173 = vmul.f32 %v172, %v170
    %v174 = vmul.f32 %v173, %v172
    %v175 = vmul.f32 0.5, %v174
    %v176 = vsub.f32 1.5, %v175
    %v177 = vmul.f32 %v172, %v176
    %vm178 = vweird.f32 %v170
    %vm179 = vweird.f32 %v172
    %vm180 = vmor %vm178, %vm179
    %v181 = vsel %vm180, %v172, %v177
    %v182 = vrsqrt.pop %v171
    %v183 = vmul.f32 %v182, %v171
    %v184 = vmul.f32 %v183, %v182
    %v185 = vmul.f32 0.5, %v184
    %v186 = vsub.f32 1.5, %v185
    %v187 = vmul.f32 %v182, %v186
    %vm188 = vweird.f32 %v171
    %vm189 = vweird.f32 %v182
    %vm190 = vmor %vm188, %vm189
    %v191 = vsel %vm190, %v182, %v187
    %v192 = vmul.f32 %v158, %v181
    %v193 = vmul.f32 %v159, %v191
    %v195 = vperm.slane %v140, 0
    %v197 = vmul.f32 %v192, %v195
    %v198 = vmul.f32 %v193, %v195
    %v200 = vperm.slane %v141, 0
    %v202 = vadd.f32 %v197, %v200
    %v203 = vadd.f32 %v198, %v200
    %v204 = vld [vmem:[%s6] sm:$0xff]
    %v205 = vld [vmem:[%s6 + $0x8] sm:$0xff]
    %v206 = vld [vmem:[%s6 + $0x10] sm:$0xff]
    %v207 = vld [vmem:[%s6 + $0x18] sm:$0xff]
    %v208 = vld [vmem:[%s7] sm:$0x1]
    %v210 = vperm.slane %v208, 0
    %v213 = vsel %vm142, %v202, 0
    %v216 = vsel %vm142, %v203, 0
    %218 = vmatpush.msra.mxu0 0.0
    %219 = vmatpush.msra.mxu0 0.0
    %220 = vmatpush.msra.mxu0 0.0
    %221 = vmatpush.msra.mxu0 0.0
    %222 = vmatpush.msra.mxu0 0.0
    %223 = vmatpush.msra.mxu0 0.0
    %224 = vmatpush.msra.mxu0 0.0
    %225 = vmatpush.msra.mxu0 0.0
    %226 = vmatpush.msra.mxu0 0.0
    %227 = vmatpush.msra.mxu0 0.0
    %228 = vmatpush.msra.mxu0 0.0
    %229 = vmatpush.msra.mxu0 0.0
    %230 = vmatpush.msra.mxu0 %v207
    %231 = vmatpush.msra.mxu0 %v206
    %232 = vmatpush.msra.mxu0 %v205
    %233 = vmatpush.msra.mxu0 %v204
    %234 = vmatmul.f32.gmra.mxu0 %v213
    %v235 = vpop.f32.mrf.mxu0
    %v236 = vadd.f32 %v210, %v235
    %237 = vmatmul.f32.gmra.mxu0 %v216
    %v238 = vpop.f32.mrf.mxu0
    %v239 = vadd.f32 %v210, %v238
    %240 = vdwg.mxu0
    %s241 = scalar_lea.vmem %s6, 32
    %v242 = vld [vmem:[%s241] sm:$0xff]
    %v243 = vld [vmem:[%s241 + $0x8] sm:$0xff]
    %v244 = vld [vmem:[%s241 + $0x10] sm:$0xff]
    %v245 = vld [vmem:[%s241 + $0x18] sm:$0xff]
    %s246 = scalar_lea.vmem %s7, 1
    %v247 = vld [vmem:[%s246] sm:$0x1]
    %v249 = vperm.slane %v247, 0
    %251 = vmatpush.msra.mxu0 0.0
    %252 = vmatpush.msra.mxu0 0.0
    %253 = vmatpush.msra.mxu0 0.0
    %254 = vmatpush.msra.mxu0 0.0
    %255 = vmatpush.msra.mxu0 0.0
    %256 = vmatpush.msra.mxu0 0.0
    %257 = vmatpush.msra.mxu0 0.0
    %258 = vmatpush.msra.mxu0 0.0
    %259 = vmatpush.msra.mxu0 0.0
    %260 = vmatpush.msra.mxu0 0.0
    %261 = vmatpush.msra.mxu0 0.0
    %262 = vmatpush.msra.mxu0 0.0
    %263 = vmatpush.msra.mxu0 %v245
    %264 = vmatpush.msra.mxu0 %v244
    %265 = vmatpush.msra.mxu0 %v243
    %266 = vmatpush.msra.mxu0 %v242
    %267 = vmatmul.f32.gmra.mxu0 %v213
    %v268 = vpop.f32.mrf.mxu0
    %v269 = vadd.f32 %v249, %v268
    %270 = vmatmul.f32.gmra.mxu0 %v216
    %v271 = vpop.f32.mrf.mxu0
    %v272 = vadd.f32 %v249, %v271
    %273 = vdwg.mxu0
    %s274 = scalar_lea.vmem %s6, 64
    %v275 = vld [vmem:[%s274] sm:$0xff]
    %v276 = vld [vmem:[%s274 + $0x8] sm:$0xff]
    %v277 = vld [vmem:[%s274 + $0x10] sm:$0xff]
    %v278 = vld [vmem:[%s274 + $0x18] sm:$0xff]
    %s279 = scalar_lea.vmem %s7, 2
    %v280 = vld [vmem:[%s279] sm:$0x1]
    %v282 = vperm.slane %v280, 0
    %284 = vmatpush.msra.mxu0 0.0
    %285 = vmatpush.msra.mxu0 0.0
    %286 = vmatpush.msra.mxu0 0.0
    %287 = vmatpush.msra.mxu0 0.0
    %288 = vmatpush.msra.mxu0 0.0
    %289 = vmatpush.msra.mxu0 0.0
    %290 = vmatpush.msra.mxu0 0.0
    %291 = vmatpush.msra.mxu0 0.0
    %292 = vmatpush.msra.mxu0 0.0
    %293 = vmatpush.msra.mxu0 0.0
    %294 = vmatpush.msra.mxu0 0.0
    %295 = vmatpush.msra.mxu0 0.0
    %296 = vmatpush.msra.mxu0 %v278
    %297 = vmatpush.msra.mxu0 %v277
    %298 = vmatpush.msra.mxu0 %v276
    %299 = vmatpush.msra.mxu0 %v275
    %300 = vmatmul.f32.gmra.mxu0 %v213
    %v301 = vpop.f32.mrf.mxu0
    %v302 = vadd.f32 %v282, %v301
    %303 = vmatmul.f32.gmra.mxu0 %v216
    %v304 = vpop.f32.mrf.mxu0
    %v305 = vadd.f32 %v282, %v304
    %306 = vdwg.mxu0
    %vm307 = vcmask 64512
    %v309 = vsel %vm307, %v236, 0
    %v312 = vsel %vm307, %v269, 0
    %314 = vmatpush.xpose.msra.mxu0 0.0
    %315 = vmatpush.xpose.msra.mxu0 0.0
    %316 = vmatpush.xpose.msra.mxu0 0.0
    %317 = vmatpush.xpose.msra.mxu0 0.0
    %318 = vmatpush.xpose.msra.mxu0 0.0
    %319 = vmatpush.xpose.msra.mxu0 0.0
    %320 = vmatpush.xpose.msra.mxu0 0.0
    %321 = vmatpush.xpose.msra.mxu0 0.0
    %322 = vmatpush.xpose.msra.mxu0 0.0
    %323 = vmatpush.xpose.msra.mxu0 0.0
    %324 = vmatpush.xpose.msra.mxu0 0.0
    %325 = vmatpush.xpose.msra.mxu0 0.0
    %326 = vmatpush.xpose.msra.mxu0 0.0
    %327 = vmatpush.xpose.msra.mxu0 0.0
    %328 = vmatpush.xpose.msra.mxu0 0.0
    %329 = vmatpush.xpose.msra.mxu0 %v312
    %330 = vmatmul.f32.gmra.mxu0 %v309
    %v331 = vpop.f32.mrf.mxu0
    %v332 = vadd.f32 0.0, %v331
    %333 = vdwg.mxu0
    %v335 = vsel %vm307, %v239, 0
    %v338 = vsel %vm307, %v272, 0
    %340 = vmatpush.xpose.msra.mxu0 0.0
    %341 = vmatpush.xpose.msra.mxu0 0.0
    %342 = vmatpush.xpose.msra.mxu0 0.0
    %343 = vmatpush.xpose.msra.mxu0 0.0
    %344 = vmatpush.xpose.msra.mxu0 0.0
    %345 = vmatpush.xpose.msra.mxu0 0.0
    %346 = vmatpush.xpose.msra.mxu0 0.0
    %347 = vmatpush.xpose.msra.mxu0 0.0
    %348 = vmatpush.xpose.msra.mxu0 0.0
    %349 = vmatpush.xpose.msra.mxu0 0.0
    %350 = vmatpush.xpose.msra.mxu0 0.0
    %351 = vmatpush.xpose.msra.mxu0 0.0
    %352 = vmatpush.xpose.msra.mxu0 0.0
    %353 = vmatpush.xpose.msra.mxu0 0.0
    %354 = vmatpush.xpose.msra.mxu0 0.0
    %355 = vmatpush.xpose.msra.mxu0 %v338
    %356 = vmatmul.f32.gmra.mxu0 %v335
    %v357 = vpop.f32.mrf.mxu0
    %v358 = vadd.f32 0.0, %v357
    %359 = vdwg.mxu0
    %v360 = vmul.f32 %v332, 0.35355338
    %v361 = vmul.f32 %v358, 0.35355338
    %v362 = vsel %vm307, %v360, -inf
    %363 = vmax.xlane.f32.xlu0 %v362
    %v364 = vpop.xlane.xlu0 %363
    %v365 = vsel %vm307, %v361, -inf
    %366 = vmax.xlane.f32.xlu0 %v365
    %v367 = vpop.xlane.xlu0 %366
    %v368 = vsub.f32 %v360, %v364
    %v369 = vsub.f32 %v361, %v367
    %v370 = vmul.f32 %v368, 1.442695
    %v371 = vpow.pop %v370
    %v372 = vmul.f32 %v369, 1.442695
    %v373 = vpow.pop %v372
    %v374 = vsel %vm307, %v371, 0.0
    %375 = vadd.xlane.f32.xlu0 %v374
    %v376 = vpop.xlane.xlu0 %375
    %v377 = vsel %vm307, %v373, 0.0
    %378 = vadd.xlane.f32.xlu0 %v377
    %v379 = vpop.xlane.xlu0 %378
    %v380 = vrcp.pop %v376
    %v381 = vrcp.pop %v379
    %v382 = vmul.f32 %v371, %v380
    %v383 = vmul.f32 %v373, %v381
    %v385 = vsel %vm307, %v382, 0
    %387 = vmatpush.msra.mxu0 0.0
    %388 = vmatpush.msra.mxu0 0.0
    %389 = vmatpush.msra.mxu0 0.0
    %390 = vmatpush.msra.mxu0 0.0
    %391 = vmatpush.msra.mxu0 0.0
    %392 = vmatpush.msra.mxu0 0.0
    %393 = vmatpush.msra.mxu0 0.0
    %394 = vmatpush.msra.mxu0 0.0
    %395 = vmatpush.msra.mxu0 0.0
    %396 = vmatpush.msra.mxu0 0.0
    %397 = vmatpush.msra.mxu0 0.0
    %398 = vmatpush.msra.mxu0 0.0
    %399 = vmatpush.msra.mxu0 0.0
    %400 = vmatpush.msra.mxu0 0.0
    %401 = vmatpush.msra.mxu0 0.0
    %402 = vmatpush.msra.mxu0 %v302
    %403 = vmatmul.f32.gmra.mxu0 %v385
    %v404 = vpop.f32.mrf.mxu0
    %v405 = vadd.f32 0.0, %v404
    %406 = vdwg.mxu0
    %v408 = vsel %vm307, %v383, 0
    %410 = vmatpush.msra.mxu0 0.0
    %411 = vmatpush.msra.mxu0 0.0
    %412 = vmatpush.msra.mxu0 0.0
    %413 = vmatpush.msra.mxu0 0.0
    %414 = vmatpush.msra.mxu0 0.0
    %415 = vmatpush.msra.mxu0 0.0
    %416 = vmatpush.msra.mxu0 0.0
    %417 = vmatpush.msra.mxu0 0.0
    %418 = vmatpush.msra.mxu0 0.0
    %419 = vmatpush.msra.mxu0 0.0
    %420 = vmatpush.msra.mxu0 0.0
    %421 = vmatpush.msra.mxu0 0.0
    %422 = vmatpush.msra.mxu0 0.0
    %423 = vmatpush.msra.mxu0 0.0
    %424 = vmatpush.msra.mxu0 0.0
    %425 = vmatpush.msra.mxu0 %v305
    %426 = vmatmul.f32.gmra.mxu0 %v408
    %v427 = vpop.f32.mrf.mxu0
    %v428 = vadd.f32 0.0, %v427
    %429 = vdwg.mxu0
    %430 = vrot.lane.b32.xlu0 %v236, 120
    %v431 = vpop.permute.xlu0 %430
    %432 = vrot.lane.b32.xlu0 %v269, 120
    %v433 = vpop.permute.xlu0 %432
    %v434 = vsel %vm307, %v431, 0
    %v436 = vsel %vm307, %v433, 0
    %438 = vmatpush.xpose.msra.mxu0 0.0
    %439 = vmatpush.xpose.msra.mxu0 0.0
    %440 = vmatpush.xpose.msra.mxu0 0.0
    %441 = vmatpush.xpose.msra.mxu0 0.0
    %442 = vmatpush.xpose.msra.mxu0 0.0
    %443 = vmatpush.xpose.msra.mxu0 0.0
    %444 = vmatpush.xpose.msra.mxu0 0.0
    %445 = vmatpush.xpose.msra.mxu0 0.0
    %446 = vmatpush.xpose.msra.mxu0 0.0
    %447 = vmatpush.xpose.msra.mxu0 0.0
    %448 = vmatpush.xpose.msra.mxu0 0.0
    %449 = vmatpush.xpose.msra.mxu0 0.0
    %450 = vmatpush.xpose.msra.mxu0 0.0
    %451 = vmatpush.xpose.msra.mxu0 0.0
    %452 = vmatpush.xpose.msra.mxu0 0.0
    %453 = vmatpush.xpose.msra.mxu0 %v436
    %454 = vmatmul.f32.gmra.mxu0 %v434
    %v455 = vpop.f32.mrf.mxu0
    %v456 = vadd.f32 0.0, %v455
    %457 = vdwg.mxu0
    %458 = vrot.lane.b32.xlu0 %v239, 120
    %v459 = vpop.permute.xlu0 %458
    %460 = vrot.lane.b32.xlu0 %v272, 120
    %v461 = vpop.permute.xlu0 %460
    %v462 = vsel %vm307, %v459, 0
    %v464 = vsel %vm307, %v461, 0
    %466 = vmatpush.xpose.msra.mxu0 0.0
    %467 = vmatpush.xpose.msra.mxu0 0.0
    %468 = vmatpush.xpose.msra.mxu0 0.0
    %469 = vmatpush.xpose.msra.mxu0 0.0
    %470 = vmatpush.xpose.msra.mxu0 0.0
    %471 = vmatpush.xpose.msra.mxu0 0.0
    %472 = vmatpush.xpose.msra.mxu0 0.0
    %473 = vmatpush.xpose.msra.mxu0 0.0
    %474 = vmatpush.xpose.msra.mxu0 0.0
    %475 = vmatpush.xpose.msra.mxu0 0.0
    %476 = vmatpush.xpose.msra.mxu0 0.0
    %477 = vmatpush.xpose.msra.mxu0 0.0
    %478 = vmatpush.xpose.msra.mxu0 0.0
    %479 = vmatpush.xpose.msra.mxu0 0.0
    %480 = vmatpush.xpose.msra.mxu0 0.0
    %481 = vmatpush.xpose.msra.mxu0 %v464
    %482 = vmatmul.f32.gmra.mxu0 %v462
    %v483 = vpop.f32.mrf.mxu0
    %v484 = vadd.f32 0.0, %v483
    %485 = vdwg.mxu0
    %v486 = vmul.f32 %v456, 0.35355338
    %v487 = vmul.f32 %v484, 0.35355338
    %v488 = vsel %vm307, %v486, -inf
    %489 = vmax.xlane.f32.xlu0 %v488
    %v490 = vpop.xlane.xlu0 %489
    %v491 = vsel %vm307, %v487, -inf
    %492 = vmax.xlane.f32.xlu0 %v491
    %v493 = vpop.xlane.xlu0 %492
    %v494 = vsub.f32 %v486, %v490
    %v495 = vsub.f32 %v487, %v493
    %v496 = vmul.f32 %v494, 1.442695
    %v497 = vpow.pop %v496
    %v498 = vmul.f32 %v495, 1.442695
    %v499 = vpow.pop %v498
    %v500 = vsel %vm307, %v497, 0.0
    %501 = vadd.xlane.f32.xlu0 %v500
    %v502 = vpop.xlane.xlu0 %501
    %v503 = vsel %vm307, %v499, 0.0
    %504 = vadd.xlane.f32.xlu0 %v503
    %v505 = vpop.xlane.xlu0 %504
    %v506 = vrcp.pop %v502
    %v507 = vrcp.pop %v505
    %v508 = vmul.f32 %v497, %v506
    %v509 = vmul.f32 %v499, %v507
    %511 = vrot.lane.b32.xlu0 %v302, 120
    %v512 = vpop.permute.xlu0 %511
    %v515 = vsel %vm307, %v508, 0
    %517 = vmatpush.msra.mxu0 0.0
    %518 = vmatpush.msra.mxu0 0.0
    %519 = vmatpush.msra.mxu0 0.0
    %520 = vmatpush.msra.mxu0 0.0
    %521 = vmatpush.msra.mxu0 0.0
    %522 = vmatpush.msra.mxu0 0.0
    %523 = vmatpush.msra.mxu0 0.0
    %524 = vmatpush.msra.mxu0 0.0
    %525 = vmatpush.msra.mxu0 0.0
    %526 = vmatpush.msra.mxu0 0.0
    %527 = vmatpush.msra.mxu0 0.0
    %528 = vmatpush.msra.mxu0 0.0
    %529 = vmatpush.msra.mxu0 0.0
    %530 = vmatpush.msra.mxu0 0.0
    %531 = vmatpush.msra.mxu0 0.0
    %532 = vmatpush.msra.mxu0 %v512
    %533 = vmatmul.f32.gmra.mxu0 %v515
    %v534 = vpop.f32.mrf.mxu0
    %v535 = vadd.f32 0.0, %v534
    %536 = vdwg.mxu0
    %538 = vrot.lane.b32.xlu0 %v305, 120
    %v539 = vpop.permute.xlu0 %538
    %v542 = vsel %vm307, %v509, 0
    %544 = vmatpush.msra.mxu0 0.0
    %545 = vmatpush.msra.mxu0 0.0
    %546 = vmatpush.msra.mxu0 0.0
    %547 = vmatpush.msra.mxu0 0.0
    %548 = vmatpush.msra.mxu0 0.0
    %549 = vmatpush.msra.mxu0 0.0
    %550 = vmatpush.msra.mxu0 0.0
    %551 = vmatpush.msra.mxu0 0.0
    %552 = vmatpush.msra.mxu0 0.0
    %553 = vmatpush.msra.mxu0 0.0
    %554 = vmatpush.msra.mxu0 0.0
    %555 = vmatpush.msra.mxu0 0.0
    %556 = vmatpush.msra.mxu0 0.0
    %557 = vmatpush.msra.mxu0 0.0
    %558 = vmatpush.msra.mxu0 0.0
    %559 = vmatpush.msra.mxu0 %v539
    %560 = vmatmul.f32.gmra.mxu0 %v542
    %v561 = vpop.f32.mrf.mxu0
    %v562 = vadd.f32 0.0, %v561
    %563 = vdwg.mxu0
    %564 = vrot.lane.b32.xlu0 %v236, 112
    %v565 = vpop.permute.xlu0 %564
    %566 = vrot.lane.b32.xlu0 %v269, 112
    %v567 = vpop.permute.xlu0 %566
    %v568 = vsel %vm307, %v565, 0
    %v570 = vsel %vm307, %v567, 0
    %572 = vmatpush.xpose.msra.mxu0 0.0
    %573 = vmatpush.xpose.msra.mxu0 0.0
    %574 = vmatpush.xpose.msra.mxu0 0.0
    %575 = vmatpush.xpose.msra.mxu0 0.0
    %576 = vmatpush.xpose.msra.mxu0 0.0
    %577 = vmatpush.xpose.msra.mxu0 0.0
    %578 = vmatpush.xpose.msra.mxu0 0.0
    %579 = vmatpush.xpose.msra.mxu0 0.0
    %580 = vmatpush.xpose.msra.mxu0 0.0
    %581 = vmatpush.xpose.msra.mxu0 0.0
    %582 = vmatpush.xpose.msra.mxu0 0.0
    %583 = vmatpush.xpose.msra.mxu0 0.0
    %584 = vmatpush.xpose.msra.mxu0 0.0
    %585 = vmatpush.xpose.msra.mxu0 0.0
    %586 = vmatpush.xpose.msra.mxu0 0.0
    %587 = vmatpush.xpose.msra.mxu0 %v570
    %588 = vmatmul.f32.gmra.mxu0 %v568
    %v589 = vpop.f32.mrf.mxu0
    %v590 = vadd.f32 0.0, %v589
    %591 = vdwg.mxu0
    %592 = vrot.lane.b32.xlu0 %v239, 112
    %v593 = vpop.permute.xlu0 %592
    %594 = vrot.lane.b32.xlu0 %v272, 112
    %v595 = vpop.permute.xlu0 %594
    %v596 = vsel %vm307, %v593, 0
    %v598 = vsel %vm307, %v595, 0
    %600 = vmatpush.xpose.msra.mxu0 0.0
    %601 = vmatpush.xpose.msra.mxu0 0.0
    %602 = vmatpush.xpose.msra.mxu0 0.0
    %603 = vmatpush.xpose.msra.mxu0 0.0
    %604 = vmatpush.xpose.msra.mxu0 0.0
    %605 = vmatpush.xpose.msra.mxu0 0.0
    %606 = vmatpush.xpose.msra.mxu0 0.0
    %607 = vmatpush.xpose.msra.mxu0 0.0
    %608 = vmatpush.xpose.msra.mxu0 0.0
    %609 = vmatpush.xpose.msra.mxu0 0.0
    %610 = vmatpush.xpose.msra.mxu0 0.0
    %611 = vmatpush.xpose.msra.mxu0 0.0
    %612 = vmatpush.xpose.msra.mxu0 0.0
    %613 = vmatpush.xpose.msra.mxu0 0.0
    %614 = vmatpush.xpose.msra.mxu0 0.0
    %615 = vmatpush.xpose.msra.mxu0 %v598
    %616 = vmatmul.f32.gmra.mxu0 %v596
    %v617 = vpop.f32.mrf.mxu0
    %v618 = vadd.f32 0.0, %v617
    %619 = vdwg.mxu0
    %v620 = vmul.f32 %v590, 0.35355338
    %v621 = vmul.f32 %v618, 0.35355338
    %v622 = vsel %vm307, %v620, -inf
    %623 = vmax.xlane.f32.xlu0 %v622
    %v624 = vpop.xlane.xlu0 %623
    %v625 = vsel %vm307, %v621, -inf
    %626 = vmax.xlane.f32.xlu0 %v625
    %v627 = vpop.xlane.xlu0 %626
    %v628 = vsub.f32 %v620, %v624
    %v629 = vsub.f32 %v621, %v627
    %v630 = vmul.f32 %v628, 1.442695
    %v631 = vpow.pop %v630
    %v632 = vmul.f32 %v629, 1.442695
    %v633 = vpow.pop %v632
    %v634 = vsel %vm307, %v631, 0.0
    %635 = vadd.xlane.f32.xlu0 %v634
    %v636 = vpop.xlane.xlu0 %635
    %v637 = vsel %vm307, %v633, 0.0
    %638 = vadd.xlane.f32.xlu0 %v637
    %v639 = vpop.xlane.xlu0 %638
    %v640 = vrcp.pop %v636
    %v641 = vrcp.pop %v639
    %v642 = vmul.f32 %v631, %v640
    %v643 = vmul.f32 %v633, %v641
    %644 = vrot.lane.b32.xlu0 %v302, 112
    %v645 = vpop.permute.xlu0 %644
    %v648 = vsel %vm307, %v642, 0
    %650 = vmatpush.msra.mxu0 0.0
    %651 = vmatpush.msra.mxu0 0.0
    %652 = vmatpush.msra.mxu0 0.0
    %653 = vmatpush.msra.mxu0 0.0
    %654 = vmatpush.msra.mxu0 0.0
    %655 = vmatpush.msra.mxu0 0.0
    %656 = vmatpush.msra.mxu0 0.0
    %657 = vmatpush.msra.mxu0 0.0
    %658 = vmatpush.msra.mxu0 0.0
    %659 = vmatpush.msra.mxu0 0.0
    %660 = vmatpush.msra.mxu0 0.0
    %661 = vmatpush.msra.mxu0 0.0
    %662 = vmatpush.msra.mxu0 0.0
    %663 = vmatpush.msra.mxu0 0.0
    %664 = vmatpush.msra.mxu0 0.0
    %665 = vmatpush.msra.mxu0 %v645
    %666 = vmatmul.f32.gmra.mxu0 %v648
    %v667 = vpop.f32.mrf.mxu0
    %v668 = vadd.f32 0.0, %v667
    %669 = vdwg.mxu0
    %670 = vrot.lane.b32.xlu0 %v305, 112
    %v671 = vpop.permute.xlu0 %670
    %v674 = vsel %vm307, %v643, 0
    %676 = vmatpush.msra.mxu0 0.0
    %677 = vmatpush.msra.mxu0 0.0
    %678 = vmatpush.msra.mxu0 0.0
    %679 = vmatpush.msra.mxu0 0.0
    %680 = vmatpush.msra.mxu0 0.0
    %681 = vmatpush.msra.mxu0 0.0
    %682 = vmatpush.msra.mxu0 0.0
    %683 = vmatpush.msra.mxu0 0.0
    %684 = vmatpush.msra.mxu0 0.0
    %685 = vmatpush.msra.mxu0 0.0
    %686 = vmatpush.msra.mxu0 0.0
    %687 = vmatpush.msra.mxu0 0.0
    %688 = vmatpush.msra.mxu0 0.0
    %689 = vmatpush.msra.mxu0 0.0
    %690 = vmatpush.msra.mxu0 0.0
    %691 = vmatpush.msra.mxu0 %v671
    %692 = vmatmul.f32.gmra.mxu0 %v674
    %v693 = vpop.f32.mrf.mxu0
    %v694 = vadd.f32 0.0, %v693
    %695 = vdwg.mxu0
    %696 = vrot.lane.b32.xlu0 %v236, 104
    %v697 = vpop.permute.xlu0 %696
    %698 = vrot.lane.b32.xlu0 %v269, 104
    %v699 = vpop.permute.xlu0 %698
    %v700 = vsel %vm307, %v697, 0
    %v702 = vsel %vm307, %v699, 0
    %704 = vmatpush.xpose.msra.mxu0 0.0
    %705 = vmatpush.xpose.msra.mxu0 0.0
    %706 = vmatpush.xpose.msra.mxu0 0.0
    %707 = vmatpush.xpose.msra.mxu0 0.0
    %708 = vmatpush.xpose.msra.mxu0 0.0
    %709 = vmatpush.xpose.msra.mxu0 0.0
    %710 = vmatpush.xpose.msra.mxu0 0.0
    %711 = vmatpush.xpose.msra.mxu0 0.0
    %712 = vmatpush.xpose.msra.mxu0 0.0
    %713 = vmatpush.xpose.msra.mxu0 0.0
    %714 = vmatpush.xpose.msra.mxu0 0.0
    %715 = vmatpush.xpose.msra.mxu0 0.0
    %716 = vmatpush.xpose.msra.mxu0 0.0
    %717 = vmatpush.xpose.msra.mxu0 0.0
    %718 = vmatpush.xpose.msra.mxu0 0.0
    %719 = vmatpush.xpose.msra.mxu0 %v702
    %720 = vmatmul.f32.gmra.mxu0 %v700
    %v721 = vpop.f32.mrf.mxu0
    %v722 = vadd.f32 0.0, %v721
    %723 = vdwg.mxu0
    %724 = vrot.lane.b32.xlu0 %v239, 104
    %v725 = vpop.permute.xlu0 %724
    %726 = vrot.lane.b32.xlu0 %v272, 104
    %v727 = vpop.permute.xlu0 %726
    %v728 = vsel %vm307, %v725, 0
    %v730 = vsel %vm307, %v727, 0
    %732 = vmatpush.xpose.msra.mxu0 0.0
    %733 = vmatpush.xpose.msra.mxu0 0.0
    %734 = vmatpush.xpose.msra.mxu0 0.0
    %735 = vmatpush.xpose.msra.mxu0 0.0
    %736 = vmatpush.xpose.msra.mxu0 0.0
    %737 = vmatpush.xpose.msra.mxu0 0.0
    %738 = vmatpush.xpose.msra.mxu0 0.0
    %739 = vmatpush.xpose.msra.mxu0 0.0
    %740 = vmatpush.xpose.msra.mxu0 0.0
    %741 = vmatpush.xpose.msra.mxu0 0.0
    %742 = vmatpush.xpose.msra.mxu0 0.0
    %743 = vmatpush.xpose.msra.mxu0 0.0
    %744 = vmatpush.xpose.msra.mxu0 0.0
    %745 = vmatpush.xpose.msra.mxu0 0.0
    %746 = vmatpush.xpose.msra.mxu0 0.0
    %747 = vmatpush.xpose.msra.mxu0 %v730
    %748 = vmatmul.f32.gmra.mxu0 %v728
    %v749 = vpop.f32.mrf.mxu0
    %v750 = vadd.f32 0.0, %v749
    %751 = vdwg.mxu0
    %v752 = vmul.f32 %v722, 0.35355338
    %v753 = vmul.f32 %v750, 0.35355338
    %v754 = vsel %vm307, %v752, -inf
    %755 = vmax.xlane.f32.xlu0 %v754
    %v756 = vpop.xlane.xlu0 %755
    %v757 = vsel %vm307, %v753, -inf
    %758 = vmax.xlane.f32.xlu0 %v757
    %v759 = vpop.xlane.xlu0 %758
    %v760 = vsub.f32 %v752, %v756
    %v761 = vsub.f32 %v753, %v759
    %v762 = vmul.f32 %v760, 1.442695
    %v763 = vpow.pop %v762
    %v764 = vmul.f32 %v761, 1.442695
    %v765 = vpow.pop %v764
    %v766 = vsel %vm307, %v763, 0.0
    %767 = vadd.xlane.f32.xlu0 %v766
    %v768 = vpop.xlane.xlu0 %767
    %v769 = vsel %vm307, %v765, 0.0
    %770 = vadd.xlane.f32.xlu0 %v769
    %v771 = vpop.xlane.xlu0 %770
    %v772 = vrcp.pop %v768
    %v773 = vrcp.pop %v771
    %v774 = vmul.f32 %v763, %v772
    %v775 = vmul.f32 %v765, %v773
    %776 = vrot.lane.b32.xlu0 %v302, 104
    %v777 = vpop.permute.xlu0 %776
    %v780 = vsel %vm307, %v774, 0
    %782 = vmatpush.msra.mxu0 0.0
    %783 = vmatpush.msra.mxu0 0.0
    %784 = vmatpush.msra.mxu0 0.0
    %785 = vmatpush.msra.mxu0 0.0
    %786 = vmatpush.msra.mxu0 0.0
    %787 = vmatpush.msra.mxu0 0.0
    %788 = vmatpush.msra.mxu0 0.0
    %789 = vmatpush.msra.mxu0 0.0
    %790 = vmatpush.msra.mxu0 0.0
    %791 = vmatpush.msra.mxu0 0.0
    %792 = vmatpush.msra.mxu0 0.0
    %793 = vmatpush.msra.mxu0 0.0
    %794 = vmatpush.msra.mxu0 0.0
    %795 = vmatpush.msra.mxu0 0.0
    %796 = vmatpush.msra.mxu0 0.0
    %797 = vmatpush.msra.mxu0 %v777
    %798 = vmatmul.f32.gmra.mxu0 %v780
    %v799 = vpop.f32.mrf.mxu0
    %v800 = vadd.f32 0.0, %v799
    %801 = vdwg.mxu0
    %802 = vrot.lane.b32.xlu0 %v305, 104
    %v803 = vpop.permute.xlu0 %802
    %v806 = vsel %vm307, %v775, 0
    %808 = vmatpush.msra.mxu0 0.0
    %809 = vmatpush.msra.mxu0 0.0
    %810 = vmatpush.msra.mxu0 0.0
    %811 = vmatpush.msra.mxu0 0.0
    %812 = vmatpush.msra.mxu0 0.0
    %813 = vmatpush.msra.mxu0 0.0
    %814 = vmatpush.msra.mxu0 0.0
    %815 = vmatpush.msra.mxu0 0.0
    %816 = vmatpush.msra.mxu0 0.0
    %817 = vmatpush.msra.mxu0 0.0
    %818 = vmatpush.msra.mxu0 0.0
    %819 = vmatpush.msra.mxu0 0.0
    %820 = vmatpush.msra.mxu0 0.0
    %821 = vmatpush.msra.mxu0 0.0
    %822 = vmatpush.msra.mxu0 0.0
    %823 = vmatpush.msra.mxu0 %v803
    %824 = vmatmul.f32.gmra.mxu0 %v806
    %v825 = vpop.f32.mrf.mxu0
    %v826 = vadd.f32 0.0, %v825
    %827 = vdwg.mxu0
    %830 = vrot.lane.b32.xlu0 %v535, 8
    %v831 = vpop.permute.xlu0 %830
    %832 = vrot.lane.b32.xlu0 %v562, 8
    %v833 = vpop.permute.xlu0 %832
    %838 = vrot.lane.b32.xlu0 %v668, 16
    %v839 = vpop.permute.xlu0 %838
    %840 = vrot.lane.b32.xlu0 %v694, 16
    %v841 = vpop.permute.xlu0 %840
    %846 = vrot.lane.b32.xlu0 %v800, 24
    %v847 = vpop.permute.xlu0 %846
    %848 = vrot.lane.b32.xlu0 %v826, 24
    %v849 = vpop.permute.xlu0 %848
    %v852 = vsel %vm307, %v405, %v831
    %v853 = vsel %vm307, %v428, %v833
    %vm854 = vcmask 130048
    %v855 = vsel %vm854, %v852, %v839
    %v856 = vsel %vm854, %v853, %v841
    %vm857 = vcmask 195584
    %v858 = vsel %vm857, %v855, %v847
    %v859 = vsel %vm857, %v856, %v849
    %v860 = vld [vmem:[#allocation2] sm:$0xff]
    %v861 = vld [vmem:[#allocation2 + $0x8] sm:$0xff]
    %v862 = vld [vmem:[#allocation2 + $0x10] sm:$0xff]
    %v863 = vld [vmem:[#allocation2 + $0x18] sm:$0xff]
    %v864 = vld [vmem:[%s9] sm:$0x1]
    %v866 = vperm.slane %v864, 0
    %v869 = vsel %vm142, %v858, 0
    %v872 = vsel %vm142, %v859, 0
    %874 = vmatpush.msra.mxu0 0.0
    %875 = vmatpush.msra.mxu0 0.0
    %876 = vmatpush.msra.mxu0 0.0
    %877 = vmatpush.msra.mxu0 0.0
    %878 = vmatpush.msra.mxu0 0.0
    %879 = vmatpush.msra.mxu0 0.0
    %880 = vmatpush.msra.mxu0 0.0
    %881 = vmatpush.msra.mxu0 0.0
    %882 = vmatpush.msra.mxu0 0.0
    %883 = vmatpush.msra.mxu0 0.0
    %884 = vmatpush.msra.mxu0 0.0
    %885 = vmatpush.msra.mxu0 0.0
    %886 = vmatpush.msra.mxu0 %v863
    %887 = vmatpush.msra.mxu0 %v862
    %888 = vmatpush.msra.mxu0 %v861
    %889 = vmatpush.msra.mxu0 %v860
    %890 = vmatmul.f32.gmra.mxu0 %v869
    %v891 = vpop.f32.mrf.mxu0
    %v892 = vadd.f32 %v866, %v891
    %893 = vmatmul.f32.gmra.mxu0 %v872
    %v894 = vpop.f32.mrf.mxu0
    %v895 = vadd.f32 %v866, %v894
    %896 = vdwg.mxu0
    %v897 = vadd.f32 %v202, %v892
    %v898 = vadd.f32 %v203, %v895
    %v899 = vld [vmem:[%s10] sm:$0x1]
    %v900 = vld [vmem:[%s11] sm:$0x1]
    %v901 = vsel %vm142, %v897, 0.0
    %902 = vadd.xlane.f32.xlu0 %v901
    %v903 = vpop.xlane.xlu0 %902
    %v904 = vsel %vm142, %v898, 0.0
    %905 = vadd.xlane.f32.xlu0 %v904
    %v906 = vpop.xlane.xlu0 %905
    %v907 = vmul.f32 %v903, %v155
    %v908 = vmul.f32 %v906, %v155
    %v909 = vsub.f32 %v897, %v907
    %v910 = vsub.f32 %v898, %v908
    %v911 = vmul.f32 %v909, %v909
    %v912 = vmul.f32 %v910, %v910
    %v913 = vsel %vm142, %v911, 0.0
    %914 = vadd.xlane.f32.xlu0 %v913
    %v915 = vpop.xlane.xlu0 %914
    %v916 = vsel %vm142, %v912, 0.0
    %917 = vadd.xlane.f32.xlu0 %v916
    %v918 = vpop.xlane.xlu0 %917
    %v919 = vmul.f32 %v915, %v155
    %v920 = vmul.f32 %v918, %v155
    %v921 = vadd.f32 %v919, 1e-12
    %v922 = vadd.f32 %v920, 1e-12
    %v923 = vrsqrt.pop %v921
    %v924 = vmul.f32 %v923, %v921
    %v925 = vmul.f32 %v924, %v923
    %v926 = vmul.f32 0.5, %v925
    %v927 = vsub.f32 1.5, %v926
    %v928 = vmul.f32 %v923, %v927
    %vm929 = vweird.f32 %v921
    %vm930 = vweird.f32 %v923
    %vm931 = vmor %vm929, %vm930
    %v932 = vsel %vm931, %v923, %v928
    %v933 = vrsqrt.pop %v922
    %v934 = vmul.f32 %v933, %v922
    %v935 = vmul.f32 %v934, %v933
    %v936 = vmul.f32 0.5, %v935
    %v937 = vsub.f32 1.5, %v936
    %v938 = vmul.f32 %v933, %v937
    %vm939 = vweird.f32 %v922
    %vm940 = vweird.f32 %v933
    %vm941 = vmor %vm939, %vm940
    %v942 = vsel %vm941, %v933, %v938
    %v943 = vmul.f32 %v909, %v932
    %v944 = vmul.f32 %v910, %v942
    %v946 = vperm.slane %v899, 0
    %v948 = vmul.f32 %v943, %v946
    %v949 = vmul.f32 %v944, %v946
    %v951 = vperm.slane %v900, 0
    %v953 = vadd.f32 %v948, %v951
    %v954 = vadd.f32 %v949, %v951
    %v955 = vld [vmem:[#allocation5] sm:$0xff]
    %v956 = vld [vmem:[#allocation5 + $0x8] sm:$0xff]
    %v957 = vld [vmem:[#allocation5 + $0x10] sm:$0xff]
    %v958 = vld [vmem:[#allocation5 + $0x18] sm:$0xff]
    %v959 = vld [vmem:[%s13] sm:$0x1]
    %v961 = vperm.slane %v959, 0
    %v964 = vsel %vm142, %v953, 0
    %v967 = vsel %vm142, %v954, 0
    %969 = vmatpush.msra.mxu0 0.0
    %970 = vmatpush.msra.mxu0 0.0
    %971 = vmatpush.msra.mxu0 0.0
    %972 = vmatpush.msra.mxu0 0.0
    %973 = vmatpush.msra.mxu0 0.0
    %974 = vmatpush.msra.mxu0 0.0
    %975 = vmatpush.msra.mxu0 0.0
    %976 = vmatpush.msra.mxu0 0.0
    %977 = vmatpush.msra.mxu0 0.0
    %978 = vmatpush.msra.mxu0 0.0
    %979 = vmatpush.msra.mxu0 0.0
    %980 = vmatpush.msra.mxu0 0.0
    %981 = vmatpush.msra.mxu0 %v958
    %982 = vmatpush.msra.mxu0 %v957
    %983 = vmatpush.msra.mxu0 %v956
    %984 = vmatpush.msra.mxu0 %v955
    %985 = vmatmul.f32.gmra.mxu0 %v964
    %v986 = vpop.f32.mrf.mxu0
    %v987 = vadd.f32 %v961, %v986
    %988 = vmatmul.f32.gmra.mxu0 %v967
    %v989 = vpop.f32.mrf.mxu0
    %v990 = vadd.f32 %v961, %v989
    %991 = vdwg.mxu0
    %v992 = vmul.f32 %v987, 0.5
    %v993 = vmul.f32 %v990, 0.5
    %v994 = vmul.f32 %v987, 0.70710677
    %v995 = vmul.f32 %v990, 0.70710677
    %v996 = vmul.f32 %v994, %v994
    %v997 = vmin.f32 16.0, %v996
    %v998 = vmul.f32 %v997, 2.1237322e-06
    %v999 = vadd.f32 %v998, 0.00028619796
    %v1000 = vmul.f32 %v997, %v999
    %v1001 = vadd.f32 %v1000, 0.0036580483
    %v1002 = vmul.f32 %v997, %v1001
    %v1003 = vadd.f32 %v1002, 0.05243302
    %v1004 = vmul.f32 %v997, %v1003
    %v1005 = vadd.f32 %v1004, 0.18741608
    %v1006 = vmul.f32 %v997, %v1005
    %v1007 = vadd.f32 %v1006, 1.1283791
    %v1008 = vmul.f32 %v994, %v1007
    %v1009 = vmul.f32 %v997, 3.8918573e-05
    %v1010 = vadd.f32 %v1009, 0.001143296
    %v1011 = vmul.f32 %v997, %v1010
    %v1012 = vadd.f32 %v1011, 0.014752088
    %v1013 = vmul.f32 %v997, %v1012
    %v1014 = vadd.f32 %v1013, 0.112945676
    %v1015 = vmul.f32 %v997, %v1014
    %v1016 = vadd.f32 %v1015, 0.4994258
    %v1017 = vmul.f32 %v997, %v1016
    %v1018 = vadd.f32 %v1017, 1.0
    %v1019 = vrcp.pop %v1018
    %v1020 = vmul.f32 %v1018, %v1019
    %v1021 = vsub.f32 1.0, %v1020
    %v1022 = vmul.f32 %v1019, %v1021
    %v1023 = vadd.f32 %v1019, %v1022
    %vm1024 = vweird.f32 %v1018
    %vm1025 = vweird.f32 %v1019
    %vm1026 = vmor %vm1024, %vm1025
    %v1027 = vsel %vm1026, %v1019, %v1023
    %v1028 = vand.u32 2147483647, %v1018
    %vm1029 = vcmp.eq.f32.partialorder %v1028, 8.507059e+37
    %v1030 = vand.u32 %v1018, 2147483648
    %v1031 = vor.u32 1.1754944e-38, %v1030
    %v1032 = vsel %vm1029, %v1031, %v1027
    %v1033 = vmul.f32 %v1008, %v1032
    %v1034 = vmin.f32 %v1033, 1.0
    %v1035 = vmax.f32 %v1034, -1.0
    %v1036 = vmul.f32 %v995, %v995
    %v1037 = vmin.f32 16.0, %v1036
    %v1038 = vmul.f32 %v1037, 2.1237322e-06
    %v1039 = vadd.f32 %v1038, 0.00028619796
    %v1040 = vmul.f32 %v1037, %v1039
    %v1041 = vadd.f32 %v1040, 0.0036580483
    %v1042 = vmul.f32 %v1037, %v1041
    %v1043 = vadd.f32 %v1042, 0.05243302
    %v1044 = vmul.f32 %v1037, %v1043
    %v1045 = vadd.f32 %v1044, 0.18741608
    %v1046 = vmul.f32 %v1037, %v1045
    %v1047 = vadd.f32 %v1046, 1.1283791
    %v1048 = vmul.f32 %v995, %v1047
    %v1049 = vmul.f32 %v1037, 3.8918573e-05
    %v1050 = vadd.f32 %v1049, 0.001143296
    %v1051 = vmul.f32 %v1037, %v1050
    %v1052 = vadd.f32 %v1051, 0.014752088
    %v1053 = vmul.f32 %v1037, %v1052
    %v1054 = vadd.f32 %v1053, 0.112945676
    %v1055 = vmul.f32 %v1037, %v1054
    %v1056 = vadd.f32 %v1055, 0.4994258
    %v1057 = vmul.f32 %v1037, %v1056
    %v1058 = vadd.f32 %v1057, 1.0
    %v1059 = vrcp.pop %v1058
    %v1060 = vmul.f32 %v1058, %v1059
    %v1061 = vsub.f32 1.0, %v1060
    %v1062 = vmul.f32 %v1059, %v1061
    %v1063 = vadd.f32 %v1059, %v1062
    %vm1064 = vweird.f32 %v1058
    %vm1065 = vweird.f32 %v1059
    %vm1066 = vmor %vm1064, %vm1065
    %v1067 = vsel %vm1066, %v1059, %v1063
    %v1068 = vand.u32 2147483647, %v1058
    %vm1069 = vcmp.eq.f32.partialorder %v1068, 8.507059e+37
    %v1070 = vand.u32 %v1058, 2147483648
    %v1071 = vor.u32 1.1754944e-38, %v1070
    %v1072 = vsel %vm1069, %v1071, %v1067
    %v1073 = vmul.f32 %v1048, %v1072
    %v1074 = vmin.f32 %v1073, 1.0
    %v1075 = vmax.f32 %v1074, -1.0
    %v1076 = vadd.f32 %v1035, 1.0
    %v1077 = vadd.f32 %v1075, 1.0
    %v1078 = vmul.f32 %v992, %v1076
    %v1079 = vmul.f32 %v993, %v1077
    %v1080 = vld [vmem:[%s14] sm:$0xff]
    %v1081 = vld [vmem:[%s14 + $0x8] sm:$0xff]
    %v1082 = vld [vmem:[%s14 + $0x10] sm:$0xff]
    %v1083 = vld [vmem:[%s14 + $0x18] sm:$0xff]
    %v1084 = vld [vmem:[%s14 + $0x20] sm:$0xff]
    %v1085 = vld [vmem:[%s14 + $0x28] sm:$0xff]
    %v1086 = vld [vmem:[%s14 + $0x30] sm:$0xff]
    %v1087 = vld [vmem:[%s14 + $0x38] sm:$0xff]
    %v1088 = vld [vmem:[%s15] sm:$0x1]
    %v1090 = vperm.slane %v1088, 0
    %vm1092 = vcmask 523264
    %v1094 = vsel %vm1092, %v1078, 0
    %v1097 = vsel %vm1092, %v1079, 0
    %1099 = vmatpush.msra.mxu0 0.0
    %1100 = vmatpush.msra.mxu0 0.0
    %1101 = vmatpush.msra.mxu0 0.0
    %1102 = vmatpush.msra.mxu0 0.0
    %1103 = vmatpush.msra.mxu0 0.0
    %1104 = vmatpush.msra.mxu0 0.0
    %1105 = vmatpush.msra.mxu0 0.0
    %1106 = vmatpush.msra.mxu0 0.0
    %1107 = vmatpush.msra.mxu0 %v1087
    %1108 = vmatpush.msra.mxu0 %v1086
    %1109 = vmatpush.msra.mxu0 %v1085
    %1110 = vmatpush.msra.mxu0 %v1084
    %1111 = vmatpush.msra.mxu0 %v1083
    %1112 = vmatpush.msra.mxu0 %v1082
    %1113 = vmatpush.msra.mxu0 %v1081
    %1114 = vmatpush.msra.mxu0 %v1080
    %1115 = vmatmul.f32.gmra.mxu0 %v1094
    %v1116 = vpop.f32.mrf.mxu0
    %v1117 = vadd.f32 %v1090, %v1116
    %1118 = vmatmul.f32.gmra.mxu0 %v1097
    %v1119 = vpop.f32.mrf.mxu0
    %v1120 = vadd.f32 %v1090, %v1119
    %1121 = vdwg.mxu0
    %v1122 = vadd.f32 %v953, %v1117
    %v1123 = vadd.f32 %v954, %v1120
    %v1124 = vld [vmem:[%s16] sm:$0x1]
    %v1125 = vld [vmem:[%s17] sm:$0x1]
    %v1126 = vsel %vm142, %v1122, 0.0
    %1127 = vadd.xlane.f32.xlu0 %v1126
    %v1128 = vpop.xlane.xlu0 %1127
    %v1129 = vsel %vm142, %v1123, 0.0
    %1130 = vadd.xlane.f32.xlu0 %v1129
    %v1131 = vpop.xlane.xlu0 %1130
    %v1132 = vmul.f32 %v1128, %v155
    %v1133 = vmul.f32 %v1131, %v155
    %v1134 = vsub.f32 %v1122, %v1132
    %v1135 = vsub.f32 %v1123, %v1133
    %v1136 = vmul.f32 %v1134, %v1134
    %v1137 = vmul.f32 %v1135, %v1135
    %v1138 = vsel %vm142, %v1136, 0.0
    %1139 = vadd.xlane.f32.xlu0 %v1138
    %v1140 = vpop.xlane.xlu0 %1139
    %v1141 = vsel %vm142, %v1137, 0.0
    %1142 = vadd.xlane.f32.xlu0 %v1141
    %v1143 = vpop.xlane.xlu0 %1142
    %v1144 = vmul.f32 %v1140, %v155
    %v1145 = vmul.f32 %v1143, %v155
    %v1146 = vadd.f32 %v1144, 1e-12
    %v1147 = vadd.f32 %v1145, 1e-12
    %v1148 = vrsqrt.pop %v1146
    %v1149 = vmul.f32 %v1148, %v1146
    %v1150 = vmul.f32 %v1149, %v1148
    %v1151 = vmul.f32 0.5, %v1150
    %v1152 = vsub.f32 1.5, %v1151
    %v1153 = vmul.f32 %v1148, %v1152
    %vm1154 = vweird.f32 %v1146
    %vm1155 = vweird.f32 %v1148
    %vm1156 = vmor %vm1154, %vm1155
    %v1157 = vsel %vm1156, %v1148, %v1153
    %v1158 = vrsqrt.pop %v1147
    %v1159 = vmul.f32 %v1158, %v1147
    %v1160 = vmul.f32 %v1159, %v1158
    %v1161 = vmul.f32 0.5, %v1160
    %v1162 = vsub.f32 1.5, %v1161
    %v1163 = vmul.f32 %v1158, %v1162
    %vm1164 = vweird.f32 %v1147
    %vm1165 = vweird.f32 %v1158
    %vm1166 = vmor %vm1164, %vm1165
    %v1167 = vsel %vm1166, %v1158, %v1163
    %v1168 = vmul.f32 %v1134, %v1157
    %v1169 = vmul.f32 %v1135, %v1167
    %v1171 = vperm.slane %v1124, 0
    %v1173 = vmul.f32 %v1168, %v1171
    %v1174 = vmul.f32 %v1169, %v1171
    %v1176 = vperm.slane %v1125, 0
    %v1178 = vadd.f32 %v1173, %v1176
    %v1179 = vadd.f32 %v1174, %v1176
    %s1180 = scalar_lea.vmem %s6, 96
    %v1181 = vld [vmem:[%s1180] sm:$0xff]
    %v1182 = vld [vmem:[%s1180 + $0x8] sm:$0xff]
    %v1183 = vld [vmem:[%s1180 + $0x10] sm:$0xff]
    %v1184 = vld [vmem:[%s1180 + $0x18] sm:$0xff]
    %s1185 = scalar_lea.vmem %s7, 3
    %v1186 = vld [vmem:[%s1185] sm:$0x1]
    %v1188 = vperm.slane %v1186, 0
    %v1191 = vsel %vm142, %v1178, 0
    %v1194 = vsel %vm142, %v1179, 0
    %1196 = vmatpush.msra.mxu0 0.0
    %1197 = vmatpush.msra.mxu0 0.0
    %1198 = vmatpush.msra.mxu0 0.0
    %1199 = vmatpush.msra.mxu0 0.0
    %1200 = vmatpush.msra.mxu0 0.0
    %1201 = vmatpush.msra.mxu0 0.0
    %1202 = vmatpush.msra.mxu0 0.0
    %1203 = vmatpush.msra.mxu0 0.0
    %1204 = vmatpush.msra.mxu0 0.0
    %1205 = vmatpush.msra.mxu0 0.0
    %1206 = vmatpush.msra.mxu0 0.0
    %1207 = vmatpush.msra.mxu0 0.0
    %1208 = vmatpush.msra.mxu0 %v1184
    %1209 = vmatpush.msra.mxu0 %v1183
    %1210 = vmatpush.msra.mxu0 %v1182
    %1211 = vmatpush.msra.mxu0 %v1181
    %1212 = vmatmul.f32.gmra.mxu0 %v1191
    %v1213 = vpop.f32.mrf.mxu0
    %v1214 = vadd.f32 %v1188, %v1213
    %1215 = vmatmul.f32.gmra.mxu0 %v1194
    %v1216 = vpop.f32.mrf.mxu0
    %v1217 = vadd.f32 %v1188, %v1216
    %1218 = vdwg.mxu0
    %s1219 = scalar_lea.vmem %s6, 128
    %v1220 = vld [vmem:[%s1219] sm:$0xff]
    %v1221 = vld [vmem:[%s1219 + $0x8] sm:$0xff]
    %v1222 = vld [vmem:[%s1219 + $0x10] sm:$0xff]
    %v1223 = vld [vmem:[%s1219 + $0x18] sm:$0xff]
    %s1224 = scalar_lea.vmem %s7, 4
    %v1225 = vld [vmem:[%s1224] sm:$0x1]
    %v1227 = vperm.slane %v1225, 0
    %1229 = vmatpush.msra.mxu0 0.0
    %1230 = vmatpush.msra.mxu0 0.0
    %1231 = vmatpush.msra.mxu0 0.0
    %1232 = vmatpush.msra.mxu0 0.0
    %1233 = vmatpush.msra.mxu0 0.0
    %1234 = vmatpush.msra.mxu0 0.0
    %1235 = vmatpush.msra.mxu0 0.0
    %1236 = vmatpush.msra.mxu0 0.0
    %1237 = vmatpush.msra.mxu0 0.0
    %1238 = vmatpush.msra.mxu0 0.0
    %1239 = vmatpush.msra.mxu0 0.0
    %1240 = vmatpush.msra.mxu0 0.0
    %1241 = vmatpush.msra.mxu0 %v1223
    %1242 = vmatpush.msra.mxu0 %v1222
    %1243 = vmatpush.msra.mxu0 %v1221
    %1244 = vmatpush.msra.mxu0 %v1220
    %1245 = vmatmul.f32.gmra.mxu0 %v1191
    %v1246 = vpop.f32.mrf.mxu0
    %v1247 = vadd.f32 %v1227, %v1246
    %1248 = vmatmul.f32.gmra.mxu0 %v1194
    %v1249 = vpop.f32.mrf.mxu0
    %v1250 = vadd.f32 %v1227, %v1249
    %1251 = vdwg.mxu0
    %s1252 = scalar_lea.vmem %s6, 160
    %v1253 = vld [vmem:[%s1252] sm:$0xff]
    %v1254 = vld [vmem:[%s1252 + $0x8] sm:$0xff]
    %v1255 = vld [vmem:[%s1252 + $0x10] sm:$0xff]
    %v1256 = vld [vmem:[%s1252 + $0x18] sm:$0xff]
    %s1257 = scalar_lea.vmem %s7, 5
    %v1258 = vld [vmem:[%s1257] sm:$0x1]
    %v1260 = vperm.slane %v1258, 0
    %1262 = vmatpush.msra.mxu0 0.0
    %1263 = vmatpush.msra.mxu0 0.0
    %1264 = vmatpush.msra.mxu0 0.0
    %1265 = vmatpush.msra.mxu0 0.0
    %1266 = vmatpush.msra.mxu0 0.0
    %1267 = vmatpush.msra.mxu0 0.0
    %1268 = vmatpush.msra.mxu0 0.0
    %1269 = vmatpush.msra.mxu0 0.0
    %1270 = vmatpush.msra.mxu0 0.0
    %1271 = vmatpush.msra.mxu0 0.0
    %1272 = vmatpush.msra.mxu0 0.0
    %1273 = vmatpush.msra.mxu0 0.0
    %1274 = vmatpush.msra.mxu0 %v1256
    %1275 = vmatpush.msra.mxu0 %v1255
    %1276 = vmatpush.msra.mxu0 %v1254
    %1277 = vmatpush.msra.mxu0 %v1253
    %1278 = vmatmul.f32.gmra.mxu0 %v1191
    %v1279 = vpop.f32.mrf.mxu0
    %v1280 = vadd.f32 %v1260, %v1279
    %1281 = vmatmul.f32.gmra.mxu0 %v1194
    %v1282 = vpop.f32.mrf.mxu0
    %v1283 = vadd.f32 %v1260, %v1282
    %1284 = vdwg.mxu0
    %v1286 = vsel %vm307, %v1214, 0
    %v1289 = vsel %vm307, %v1247, 0
    %1291 = vmatpush.xpose.msra.mxu0 0.0
    %1292 = vmatpush.xpose.msra.mxu0 0.0
    %1293 = vmatpush.xpose.msra.mxu0 0.0
    %1294 = vmatpush.xpose.msra.mxu0 0.0
    %1295 = vmatpush.xpose.msra.mxu0 0.0
    %1296 = vmatpush.xpose.msra.mxu0 0.0
    %1297 = vmatpush.xpose.msra.mxu0 0.0
    %1298 = vmatpush.xpose.msra.mxu0 0.0
    %1299 = vmatpush.xpose.msra.mxu0 0.0
    %1300 = vmatpush.xpose.msra.mxu0 0.0
    %1301 = vmatpush.xpose.msra.mxu0 0.0
    %1302 = vmatpush.xpose.msra.mxu0 0.0
    %1303 = vmatpush.xpose.msra.mxu0 0.0
    %1304 = vmatpush.xpose.msra.mxu0 0.0
    %1305 = vmatpush.xpose.msra.mxu0 0.0
    %1306 = vmatpush.xpose.msra.mxu0 %v1289
    %1307 = vmatmul.f32.gmra.mxu0 %v1286
    %v1308 = vpop.f32.mrf.mxu0
    %v1309 = vadd.f32 0.0, %v1308
    %1310 = vdwg.mxu0
    %v1312 = vsel %vm307, %v1217, 0
    %v1315 = vsel %vm307, %v1250, 0
    %1317 = vmatpush.xpose.msra.mxu0 0.0
    %1318 = vmatpush.xpose.msra.mxu0 0.0
    %1319 = vmatpush.xpose.msra.mxu0 0.0
    %1320 = vmatpush.xpose.msra.mxu0 0.0
    %1321 = vmatpush.xpose.msra.mxu0 0.0
    %1322 = vmatpush.xpose.msra.mxu0 0.0
    %1323 = vmatpush.xpose.msra.mxu0 0.0
    %1324 = vmatpush.xpose.msra.mxu0 0.0
    %1325 = vmatpush.xpose.msra.mxu0 0.0
    %1326 = vmatpush.xpose.msra.mxu0 0.0
    %1327 = vmatpush.xpose.msra.mxu0 0.0
    %1328 = vmatpush.xpose.msra.mxu0 0.0
    %1329 = vmatpush.xpose.msra.mxu0 0.0
    %1330 = vmatpush.xpose.msra.mxu0 0.0
    %1331 = vmatpush.xpose.msra.mxu0 0.0
    %1332 = vmatpush.xpose.msra.mxu0 %v1315
    %1333 = vmatmul.f32.gmra.mxu0 %v1312
    %v1334 = vpop.f32.mrf.mxu0
    %v1335 = vadd.f32 0.0, %v1334
    %1336 = vdwg.mxu0
    %v1337 = vmul.f32 %v1309, 0.35355338
    %v1338 = vmul.f32 %v1335, 0.35355338
    %v1339 = vsel %vm307, %v1337, -inf
    %1340 = vmax.xlane.f32.xlu0 %v1339
    %v1341 = vpop.xlane.xlu0 %1340
    %v1342 = vsel %vm307, %v1338, -inf
    %1343 = vmax.xlane.f32.xlu0 %v1342
    %v1344 = vpop.xlane.xlu0 %1343
    %v1345 = vsub.f32 %v1337, %v1341
    %v1346 = vsub.f32 %v1338, %v1344
    %v1347 = vmul.f32 %v1345, 1.442695
    %v1348 = vpow.pop %v1347
    %v1349 = vmul.f32 %v1346, 1.442695
    %v1350 = vpow.pop %v1349
    %v1351 = vsel %vm307, %v1348, 0.0
    %1352 = vadd.xlane.f32.xlu0 %v1351
    %v1353 = vpop.xlane.xlu0 %1352
    %v1354 = vsel %vm307, %v1350, 0.0
    %1355 = vadd.xlane.f32.xlu0 %v1354
    %v1356 = vpop.xlane.xlu0 %1355
    %v1357 = vrcp.pop %v1353
    %v1358 = vrcp.pop %v1356
    %v1359 = vmul.f32 %v1348, %v1357
    %v1360 = vmul.f32 %v1350, %v1358
    %v1362 = vsel %vm307, %v1359, 0
    %1364 = vmatpush.msra.mxu0 0.0
    %1365 = vmatpush.msra.mxu0 0.0
    %1366 = vmatpush.msra.mxu0 0.0
    %1367 = vmatpush.msra.mxu0 0.0
    %1368 = vmatpush.msra.mxu0 0.0
    %1369 = vmatpush.msra.mxu0 0.0
    %1370 = vmatpush.msra.mxu0 0.0
    %1371 = vmatpush.msra.mxu0 0.0
    %1372 = vmatpush.msra.mxu0 0.0
    %1373 = vmatpush.msra.mxu0 0.0
    %1374 = vmatpush.msra.mxu0 0.0
    %1375 = vmatpush.msra.mxu0 0.0
    %1376 = vmatpush.msra.mxu0 0.0
    %1377 = vmatpush.msra.mxu0 0.0
    %1378 = vmatpush.msra.mxu0 0.0
    %1379 = vmatpush.msra.mxu0 %v1280
    %1380 = vmatmul.f32.gmra.mxu0 %v1362
    %v1381 = vpop.f32.mrf.mxu0
    %v1382 = vadd.f32 0.0, %v1381
    %1383 = vdwg.mxu0
    %v1385 = vsel %vm307, %v1360, 0
    %1387 = vmatpush.msra.mxu0 0.0
    %1388 = vmatpush.msra.mxu0 0.0
    %1389 = vmatpush.msra.mxu0 0.0
    %1390 = vmatpush.msra.mxu0 0.0
    %1391 = vmatpush.msra.mxu0 0.0
    %1392 = vmatpush.msra.mxu0 0.0
    %1393 = vmatpush.msra.mxu0 0.0
    %1394 = vmatpush.msra.mxu0 0.0
    %1395 = vmatpush.msra.mxu0 0.0
    %1396 = vmatpush.msra.mxu0 0.0
    %1397 = vmatpush.msra.mxu0 0.0
    %1398 = vmatpush.msra.mxu0 0.0
    %1399 = vmatpush.msra.mxu0 0.0
    %1400 = vmatpush.msra.mxu0 0.0
    %1401 = vmatpush.msra.mxu0 0.0
    %1402 = vmatpush.msra.mxu0 %v1283
    %1403 = vmatmul.f32.gmra.mxu0 %v1385
    %v1404 = vpop.f32.mrf.mxu0
    %v1405 = vadd.f32 0.0, %v1404
    %1406 = vdwg.mxu0
    %1407 = vrot.lane.b32.xlu0 %v1214, 120
    %v1408 = vpop.permute.xlu0 %1407
    %1409 = vrot.lane.b32.xlu0 %v1247, 120
    %v1410 = vpop.permute.xlu0 %1409
    %v1411 = vsel %vm307, %v1408, 0
    %v1413 = vsel %vm307, %v1410, 0
    %1415 = vmatpush.xpose.msra.mxu0 0.0
    %1416 = vmatpush.xpose.msra.mxu0 0.0
    %1417 = vmatpush.xpose.msra.mxu0 0.0
    %1418 = vmatpush.xpose.msra.mxu0 0.0
    %1419 = vmatpush.xpose.msra.mxu0 0.0
    %1420 = vmatpush.xpose.msra.mxu0 0.0
    %1421 = vmatpush.xpose.msra.mxu0 0.0
    %1422 = vmatpush.xpose.msra.mxu0 0.0
    %1423 = vmatpush.xpose.msra.mxu0 0.0
    %1424 = vmatpush.xpose.msra.mxu0 0.0
    %1425 = vmatpush.xpose.msra.mxu0 0.0
    %1426 = vmatpush.xpose.msra.mxu0 0.0
    %1427 = vmatpush.xpose.msra.mxu0 0.0
    %1428 = vmatpush.xpose.msra.mxu0 0.0
    %1429 = vmatpush.xpose.msra.mxu0 0.0
    %1430 = vmatpush.xpose.msra.mxu0 %v1413
    %1431 = vmatmul.f32.gmra.mxu0 %v1411
    %v1432 = vpop.f32.mrf.mxu0
    %v1433 = vadd.f32 0.0, %v1432
    %1434 = vdwg.mxu0
    %1435 = vrot.lane.b32.xlu0 %v1217, 120
    %v1436 = vpop.permute.xlu0 %1435
    %1437 = vrot.lane.b32.xlu0 %v1250, 120
    %v1438 = vpop.permute.xlu0 %1437
    %v1439 = vsel %vm307, %v1436, 0
    %v1441 = vsel %vm307, %v1438, 0
    %1443 = vmatpush.xpose.msra.mxu0 0.0
    %1444 = vmatpush.xpose.msra.mxu0 0.0
    %1445 = vmatpush.xpose.msra.mxu0 0.0
    %1446 = vmatpush.xpose.msra.mxu0 0.0
    %1447 = vmatpush.xpose.msra.mxu0 0.0
    %1448 = vmatpush.xpose.msra.mxu0 0.0
    %1449 = vmatpush.xpose.msra.mxu0 0.0
    %1450 = vmatpush.xpose.msra.mxu0 0.0
    %1451 = vmatpush.xpose.msra.mxu0 0.0
    %1452 = vmatpush.xpose.msra.mxu0 0.0
    %1453 = vmatpush.xpose.msra.mxu0 0.0
    %1454 = vmatpush.xpose.msra.mxu0 0.0
    %1455 = vmatpush.xpose.msra.mxu0 0.0
    %1456 = vmatpush.xpose.msra.mxu0 0.0
    %1457 = vmatpush.xpose.msra.mxu0 0.0
    %1458 = vmatpush.xpose.msra.mxu0 %v1441
    %1459 = vmatmul.f32.gmra.mxu0 %v1439
    %v1460 = vpop.f32.mrf.mxu0
    %v1461 = vadd.f32 0.0, %v1460
    %1462 = vdwg.mxu0
    %v1463 = vmul.f32 %v1433, 0.35355338
    %v1464 = vmul.f32 %v1461, 0.35355338
    %v1465 = vsel %vm307, %v1463, -inf
    %1466 = vmax.xlane.f32.xlu0 %v1465
    %v1467 = vpop.xlane.xlu0 %1466
    %v1468 = vsel %vm307, %v1464, -inf
    %1469 = vmax.xlane.f32.xlu0 %v1468
    %v1470 = vpop.xlane.xlu0 %1469
    %v1471 = vsub.f32 %v1463, %v1467
    %v1472 = vsub.f32 %v1464, %v1470
    %v1473 = vmul.f32 %v1471, 1.442695
    %v1474 = vpow.pop %v1473
    %v1475 = vmul.f32 %v1472, 1.442695
    %v1476 = vpow.pop %v1475
    %v1477 = vsel %vm307, %v1474, 0.0
    %1478 = vadd.xlane.f32.xlu0 %v1477
    %v1479 = vpop.xlane.xlu0 %1478
    %v1480 = vsel %vm307, %v1476, 0.0
    %1481 = vadd.xlane.f32.xlu0 %v1480
    %v1482 = vpop.xlane.xlu0 %1481
    %v1483 = vrcp.pop %v1479
    %v1484 = vrcp.pop %v1482
    %v1485 = vmul.f32 %v1474, %v1483
    %v1486 = vmul.f32 %v1476, %v1484
    %1488 = vrot.lane.b32.xlu0 %v1280, 120
    %v1489 = vpop.permute.xlu0 %1488
    %v1492 = vsel %vm307, %v1485, 0
    %1494 = vmatpush.msra.mxu0 0.0
    %1495 = vmatpush.msra.mxu0 0.0
    %1496 = vmatpush.msra.mxu0 0.0
    %1497 = vmatpush.msra.mxu0 0.0
    %1498 = vmatpush.msra.mxu0 0.0
    %1499 = vmatpush.msra.mxu0 0.0
    %1500 = vmatpush.msra.mxu0 0.0
    %1501 = vmatpush.msra.mxu0 0.0
    %1502 = vmatpush.msra.mxu0 0.0
    %1503 = vmatpush.msra.mxu0 0.0
    %1504 = vmatpush.msra.mxu0 0.0
    %1505 = vmatpush.msra.mxu0 0.0
    %1506 = vmatpush.msra.mxu0 0.0
    %1507 = vmatpush.msra.mxu0 0.0
    %1508 = vmatpush.msra.mxu0 0.0
    %1509 = vmatpush.msra.mxu0 %v1489
    %1510 = vmatmul.f32.gmra.mxu0 %v1492
    %v1511 = vpop.f32.mrf.mxu0
    %v1512 = vadd.f32 0.0, %v1511
    %1513 = vdwg.mxu0
    %1515 = vrot.lane.b32.xlu0 %v1283, 120
    %v1516 = vpop.permute.xlu0 %1515
    %v1519 = vsel %vm307, %v1486, 0
    %1521 = vmatpush.msra.mxu0 0.0
    %1522 = vmatpush.msra.mxu0 0.0
    %1523 = vmatpush.msra.mxu0 0.0
    %1524 = vmatpush.msra.mxu0 0.0
    %1525 = vmatpush.msra.mxu0 0.0
    %1526 = vmatpush.msra.mxu0 0.0
    %1527 = vmatpush.msra.mxu0 0.0
    %1528 = vmatpush.msra.mxu0 0.0
    %1529 = vmatpush.msra.mxu0 0.0
    %1530 = vmatpush.msra.mxu0 0.0
    %1531 = vmatpush.msra.mxu0 0.0
    %1532 = vmatpush.msra.mxu0 0.0
    %1533 = vmatpush.msra.mxu0 0.0
    %1534 = vmatpush.msra.mxu0 0.0
    %1535 = vmatpush.msra.mxu0 0.0
    %1536 = vmatpush.msra.mxu0 %v1516
    %1537 = vmatmul.f32.gmra.mxu0 %v1519
    %v1538 = vpop.f32.mrf.mxu0
    %v1539 = vadd.f32 0.0, %v1538
    %1540 = vdwg.mxu0
    %1541 = vrot.lane.b32.xlu0 %v1214, 112
    %v1542 = vpop.permute.xlu0 %1541
    %1543 = vrot.lane.b32.xlu0 %v1247, 112
    %v1544 = vpop.permute.xlu0 %1543
    %v1545 = vsel %vm307, %v1542, 0
    %v1547 = vsel %vm307, %v1544, 0
    %1549 = vmatpush.xpose.msra.mxu0 0.0
    %1550 = vmatpush.xpose.msra.mxu0 0.0
    %1551 = vmatpush.xpose.msra.mxu0 0.0
    %1552 = vmatpush.xpose.msra.mxu0 0.0
    %1553 = vmatpush.xpose.msra.mxu0 0.0
    %1554 = vmatpush.xpose.msra.mxu0 0.0
    %1555 = vmatpush.xpose.msra.mxu0 0.0
    %1556 = vmatpush.xpose.msra.mxu0 0.0
    %1557 = vmatpush.xpose.msra.mxu0 0.0
    %1558 = vmatpush.xpose.msra.mxu0 0.0
    %1559 = vmatpush.xpose.msra.mxu0 0.0
    %1560 = vmatpush.xpose.msra.mxu0 0.0
    %1561 = vmatpush.xpose.msra.mxu0 0.0
    %1562 = vmatpush.xpose.msra.mxu0 0.0
    %1563 = vmatpush.xpose.msra.mxu0 0.0
    %1564 = vmatpush.xpose.msra.mxu0 %v1547
    %1565 = vmatmul.f32.gmra.mxu0 %v1545
    %v1566 = vpop.f32.mrf.mxu0
    %v1567 = vadd.f32 0.0, %v1566
    %1568 = vdwg.mxu0
    %1569 = vrot.lane.b32.xlu0 %v1217, 112
    %v1570 = vpop.permute.xlu0 %1569
    %1571 = vrot.lane.b32.xlu0 %v1250, 112
    %v1572 = vpop.permute.xlu0 %1571
    %v1573 = vsel %vm307, %v1570, 0
    %v1575 = vsel %vm307, %v1572, 0
    %1577 = vmatpush.xpose.msra.mxu0 0.0
    %1578 = vmatpush.xpose.msra.mxu0 0.0
    %1579 = vmatpush.xpose.msra.mxu0 0.0
    %1580 = vmatpush.xpose.msra.mxu0 0.0
    %1581 = vmatpush.xpose.msra.mxu0 0.0
    %1582 = vmatpush.xpose.msra.mxu0 0.0
    %1583 = vmatpush.xpose.msra.mxu0 0.0
    %1584 = vmatpush.xpose.msra.mxu0 0.0
    %1585 = vmatpush.xpose.msra.mxu0 0.0
    %1586 = vmatpush.xpose.msra.mxu0 0.0
    %1587 = vmatpush.xpose.msra.mxu0 0.0
    %1588 = vmatpush.xpose.msra.mxu0 0.0
    %1589 = vmatpush.xpose.msra.mxu0 0.0
    %1590 = vmatpush.xpose.msra.mxu0 0.0
    %1591 = vmatpush.xpose.msra.mxu0 0.0
    %1592 = vmatpush.xpose.msra.mxu0 %v1575
    %1593 = vmatmul.f32.gmra.mxu0 %v1573
    %v1594 = vpop.f32.mrf.mxu0
    %v1595 = vadd.f32 0.0, %v1594
    %1596 = vdwg.mxu0
    %v1597 = vmul.f32 %v1567, 0.35355338
    %v1598 = vmul.f32 %v1595, 0.35355338
    %v1599 = vsel %vm307, %v1597, -inf
    %1600 = vmax.xlane.f32.xlu0 %v1599
    %v1601 = vpop.xlane.xlu0 %1600
    %v1602 = vsel %vm307, %v1598, -inf
    %1603 = vmax.xlane.f32.xlu0 %v1602
    %v1604 = vpop.xlane.xlu0 %1603
    %v1605 = vsub.f32 %v1597, %v1601
    %v1606 = vsub.f32 %v1598, %v1604
    %v1607 = vmul.f32 %v1605, 1.442695
    %v1608 = vpow.pop %v1607
    %v1609 = vmul.f32 %v1606, 1.442695
    %v1610 = vpow.pop %v1609
    %v1611 = vsel %vm307, %v1608, 0.0
    %1612 = vadd.xlane.f32.xlu0 %v1611
    %v1613 = vpop.xlane.xlu0 %1612
    %v1614 = vsel %vm307, %v1610, 0.0
    %1615 = vadd.xlane.f32.xlu0 %v1614
    %v1616 = vpop.xlane.xlu0 %1615
    %v1617 = vrcp.pop %v1613
    %v1618 = vrcp.pop %v1616
    %v1619 = vmul.f32 %v1608, %v1617
    %v1620 = vmul.f32 %v1610, %v1618
    %1621 = vrot.lane.b32.xlu0 %v1280, 112
    %v1622 = vpop.permute.xlu0 %1621
    %v1625 = vsel %vm307, %v1619, 0
    %1627 = vmatpush.msra.mxu0 0.0
    %1628 = vmatpush.msra.mxu0 0.0
    %1629 = vmatpush.msra.mxu0 0.0
    %1630 = vmatpush.msra.mxu0 0.0
    %1631 = vmatpush.msra.mxu0 0.0
    %1632 = vmatpush.msra.mxu0 0.0
    %1633 = vmatpush.msra.mxu0 0.0
    %1634 = vmatpush.msra.mxu0 0.0
    %1635 = vmatpush.msra.mxu0 0.0
    %1636 = vmatpush.msra.mxu0 0.0
    %1637 = vmatpush.msra.mxu0 0.0
    %1638 = vmatpush.msra.mxu0 0.0
    %1639 = vmatpush.msra.mxu0 0.0
    %1640 = vmatpush.msra.mxu0 0.0
    %1641 = vmatpush.msra.mxu0 0.0
    %1642 = vmatpush.msra.mxu0 %v1622
    %1643 = vmatmul.f32.gmra.mxu0 %v1625
    %v1644 = vpop.f32.mrf.mxu0
    %v1645 = vadd.f32 0.0, %v1644
    %1646 = vdwg.mxu0
    %1647 = vrot.lane.b32.xlu0 %v1283, 112
    %v1648 = vpop.permute.xlu0 %1647
    %v1651 = vsel %vm307, %v1620, 0
    %1653 = vmatpush.msra.mxu0 0.0
    %1654 = vmatpush.msra.mxu0 0.0
    %1655 = vmatpush.msra.mxu0 0.0
    %1656 = vmatpush.msra.mxu0 0.0
    %1657 = vmatpush.msra.mxu0 0.0
    %1658 = vmatpush.msra.mxu0 0.0
    %1659 = vmatpush.msra.mxu0 0.0
    %1660 = vmatpush.msra.mxu0 0.0
    %1661 = vmatpush.msra.mxu0 0.0
    %1662 = vmatpush.msra.mxu0 0.0
    %1663 = vmatpush.msra.mxu0 0.0
    %1664 = vmatpush.msra.mxu0 0.0
    %1665 = vmatpush.msra.mxu0 0.0
    %1666 = vmatpush.msra.mxu0 0.0
    %1667 = vmatpush.msra.mxu0 0.0
    %1668 = vmatpush.msra.mxu0 %v1648
    %1669 = vmatmul.f32.gmra.mxu0 %v1651
    %v1670 = vpop.f32.mrf.mxu0
    %v1671 = vadd.f32 0.0, %v1670
    %1672 = vdwg.mxu0
    %1673 = vrot.lane.b32.xlu0 %v1214, 104
    %v1674 = vpop.permute.xlu0 %1673
    %1675 = vrot.lane.b32.xlu0 %v1247, 104
    %v1676 = vpop.permute.xlu0 %1675
    %v1677 = vsel %vm307, %v1674, 0
    %v1679 = vsel %vm307, %v1676, 0
    %1681 = vmatpush.xpose.msra.mxu0 0.0
    %1682 = vmatpush.xpose.msra.mxu0 0.0
    %1683 = vmatpush.xpose.msra.mxu0 0.0
    %1684 = vmatpush.xpose.msra.mxu0 0.0
    %1685 = vmatpush.xpose.msra.mxu0 0.0
    %1686 = vmatpush.xpose.msra.mxu0 0.0
    %1687 = vmatpush.xpose.msra.mxu0 0.0
    %1688 = vmatpush.xpose.msra.mxu0 0.0
    %1689 = vmatpush.xpose.msra.mxu0 0.0
    %1690 = vmatpush.xpose.msra.mxu0 0.0
    %1691 = vmatpush.xpose.msra.mxu0 0.0
    %1692 = vmatpush.xpose.msra.mxu0 0.0
    %1693 = vmatpush.xpose.msra.mxu0 0.0
    %1694 = vmatpush.xpose.msra.mxu0 0.0
    %1695 = vmatpush.xpose.msra.mxu0 0.0
    %1696 = vmatpush.xpose.msra.mxu0 %v1679
    %1697 = vmatmul.f32.gmra.mxu0 %v1677
    %v1698 = vpop.f32.mrf.mxu0
    %v1699 = vadd.f32 0.0, %v1698
    %1700 = vdwg.mxu0
    %1701 = vrot.lane.b32.xlu0 %v1217, 104
    %v1702 = vpop.permute.xlu0 %1701
    %1703 = vrot.lane.b32.xlu0 %v1250, 104
    %v1704 = vpop.permute.xlu0 %1703
    %v1705 = vsel %vm307, %v1702, 0
    %v1707 = vsel %vm307, %v1704, 0
    %1709 = vmatpush.xpose.msra.mxu0 0.0
    %1710 = vmatpush.xpose.msra.mxu0 0.0
    %1711 = vmatpush.xpose.msra.mxu0 0.0
    %1712 = vmatpush.xpose.msra.mxu0 0.0
    %1713 = vmatpush.xpose.msra.mxu0 0.0
    %1714 = vmatpush.xpose.msra.mxu0 0.0
    %1715 = vmatpush.xpose.msra.mxu0 0.0
    %1716 = vmatpush.xpose.msra.mxu0 0.0
    %1717 = vmatpush.xpose.msra.mxu0 0.0
    %1718 = vmatpush.xpose.msra.mxu0 0.0
    %1719 = vmatpush.xpose.msra.mxu0 0.0
    %1720 = vmatpush.xpose.msra.mxu0 0.0
    %1721 = vmatpush.xpose.msra.mxu0 0.0
    %1722 = vmatpush.xpose.msra.mxu0 0.0
    %1723 = vmatpush.xpose.msra.mxu0 0.0
    %1724 = vmatpush.xpose.msra.mxu0 %v1707
    %1725 = vmatmul.f32.gmra.mxu0 %v1705
    %v1726 = vpop.f32.mrf.mxu0
    %v1727 = vadd.f32 0.0, %v1726
    %1728 = vdwg.mxu0
    %v1729 = vmul.f32 %v1699, 0.35355338
    %v1730 = vmul.f32 %v1727, 0.35355338
    %v1731 = vsel %vm307, %v1729, -inf
    %1732 = vmax.xlane.f32.xlu0 %v1731
    %v1733 = vpop.xlane.xlu0 %1732
    %v1734 = vsel %vm307, %v1730, -inf
    %1735 = vmax.xlane.f32.xlu0 %v1734
    %v1736 = vpop.xlane.xlu0 %1735
    %v1737 = vsub.f32 %v1729, %v1733
    %v1738 = vsub.f32 %v1730, %v1736
    %v1739 = vmul.f32 %v1737, 1.442695
    %v1740 = vpow.pop %v1739
    %v1741 = vmul.f32 %v1738, 1.442695
    %v1742 = vpow.pop %v1741
    %v1743 = vsel %vm307, %v1740, 0.0
    %1744 = vadd.xlane.f32.xlu0 %v1743
    %v1745 = vpop.xlane.xlu0 %1744
    %v1746 = vsel %vm307, %v1742, 0.0
    %1747 = vadd.xlane.f32.xlu0 %v1746
    %v1748 = vpop.xlane.xlu0 %1747
    %v1749 = vrcp.pop %v1745
    %v1750 = vrcp.pop %v1748
    %v1751 = vmul.f32 %v1740, %v1749
    %v1752 = vmul.f32 %v1742, %v1750
    %1753 = vrot.lane.b32.xlu0 %v1280, 104
    %v1754 = vpop.permute.xlu0 %1753
    %v1757 = vsel %vm307, %v1751, 0
    %1759 = vmatpush.msra.mxu0 0.0
    %1760 = vmatpush.msra.mxu0 0.0
    %1761 = vmatpush.msra.mxu0 0.0
    %1762 = vmatpush.msra.mxu0 0.0
    %1763 = vmatpush.msra.mxu0 0.0
    %1764 = vmatpush.msra.mxu0 0.0
    %1765 = vmatpush.msra.mxu0 0.0
    %1766 = vmatpush.msra.mxu0 0.0
    %1767 = vmatpush.msra.mxu0 0.0
    %1768 = vmatpush.msra.mxu0 0.0
    %1769 = vmatpush.msra.mxu0 0.0
    %1770 = vmatpush.msra.mxu0 0.0
    %1771 = vmatpush.msra.mxu0 0.0
    %1772 = vmatpush.msra.mxu0 0.0
    %1773 = vmatpush.msra.mxu0 0.0
    %1774 = vmatpush.msra.mxu0 %v1754
    %1775 = vmatmul.f32.gmra.mxu0 %v1757
    %v1776 = vpop.f32.mrf.mxu0
    %v1777 = vadd.f32 0.0, %v1776
    %1778 = vdwg.mxu0
    %1779 = vrot.lane.b32.xlu0 %v1283, 104
    %v1780 = vpop.permute.xlu0 %1779
    %v1783 = vsel %vm307, %v1752, 0
    %1785 = vmatpush.msra.mxu0 0.0
    %1786 = vmatpush.msra.mxu0 0.0
    %1787 = vmatpush.msra.mxu0 0.0
    %1788 = vmatpush.msra.mxu0 0.0
    %1789 = vmatpush.msra.mxu0 0.0
    %1790 = vmatpush.msra.mxu0 0.0
    %1791 = vmatpush.msra.mxu0 0.0
    %1792 = vmatpush.msra.mxu0 0.0
    %1793 = vmatpush.msra.mxu0 0.0
    %1794 = vmatpush.msra.mxu0 0.0
    %1795 = vmatpush.msra.mxu0 0.0
    %1796 = vmatpush.msra.mxu0 0.0
    %1797 = vmatpush.msra.mxu0 0.0
    %1798 = vmatpush.msra.mxu0 0.0
    %1799 = vmatpush.msra.mxu0 0.0
    %1800 = vmatpush.msra.mxu0 %v1780
    %1801 = vmatmul.f32.gmra.mxu0 %v1783
    %v1802 = vpop.f32.mrf.mxu0
    %v1803 = vadd.f32 0.0, %v1802
    %1804 = vdwg.mxu0
    %1807 = vrot.lane.b32.xlu0 %v1512, 8
    %v1808 = vpop.permute.xlu0 %1807
    %1809 = vrot.lane.b32.xlu0 %v1539, 8
    %v1810 = vpop.permute.xlu0 %1809
    %1815 = vrot.lane.b32.xlu0 %v1645, 16
    %v1816 = vpop.permute.xlu0 %1815
    %1817 = vrot.lane.b32.xlu0 %v1671, 16
    %v1818 = vpop.permute.xlu0 %1817
    %1823 = vrot.lane.b32.xlu0 %v1777, 24
    %v1824 = vpop.permute.xlu0 %1823
    %1825 = vrot.lane.b32.xlu0 %v1803, 24
    %v1826 = vpop.permute.xlu0 %1825
    %v1829 = vsel %vm307, %v1382, %v1808
    %v1830 = vsel %vm307, %v1405, %v1810
    %v1831 = vsel %vm854, %v1829, %v1816
    %v1832 = vsel %vm854, %v1830, %v1818
    %v1833 = vsel %vm857, %v1831, %v1824
    %v1834 = vsel %vm857, %v1832, %v1826
    %s1835 = scalar_lea.vmem [#allocation2], 32
    %v1836 = vld [vmem:[%s1835] sm:$0xff]
    %v1837 = vld [vmem:[%s1835 + $0x8] sm:$0xff]
    %v1838 = vld [vmem:[%s1835 + $0x10] sm:$0xff]
    %v1839 = vld [vmem:[%s1835 + $0x18] sm:$0xff]
    %s1840 = scalar_lea.vmem %s9, 1
    %v1841 = vld [vmem:[%s1840] sm:$0x1]
    %v1843 = vperm.slane %v1841, 0
    %v1846 = vsel %vm142, %v1833, 0
    %v1849 = vsel %vm142, %v1834, 0
    %1851 = vmatpush.msra.mxu0 0.0
    %1852 = vmatpush.msra.mxu0 0.0
    %1853 = vmatpush.msra.mxu0 0.0
    %1854 = vmatpush.msra.mxu0 0.0
    %1855 = vmatpush.msra.mxu0 0.0
    %1856 = vmatpush.msra.mxu0 0.0
    %1857 = vmatpush.msra.mxu0 0.0
    %1858 = vmatpush.msra.mxu0 0.0
    %1859 = vmatpush.msra.mxu0 0.0
    %1860 = vmatpush.msra.mxu0 0.0
    %1861 = vmatpush.msra.mxu0 0.0
    %1862 = vmatpush.msra.mxu0 0.0
    %1863 = vmatpush.msra.mxu0 %v1839
    %1864 = vmatpush.msra.mxu0 %v1838
    %1865 = vmatpush.msra.mxu0 %v1837
    %1866 = vmatpush.msra.mxu0 %v1836
    %1867 = vmatmul.f32.gmra.mxu0 %v1846
    %v1868 = vpop.f32.mrf.mxu0
    %v1869 = vadd.f32 %v1843, %v1868
    %1870 = vmatmul.f32.gmra.mxu0 %v1849
    %v1871 = vpop.f32.mrf.mxu0
    %v1872 = vadd.f32 %v1843, %v1871
    %1873 = vdwg.mxu0
    %v1874 = vadd.f32 %v1178, %v1869
    %v1875 = vadd.f32 %v1179, %v1872
    %s1876 = scalar_lea.vmem %s10, 1
    %v1877 = vld [vmem:[%s1876] sm:$0x1]
    %s1878 = scalar_lea.vmem %s11, 1
    %v1879 = vld [vmem:[%s1878] sm:$0x1]
    %v1880 = vsel %vm142, %v1874, 0.0
    %1881 = vadd.xlane.f32.xlu0 %v1880
    %v1882 = vpop.xlane.xlu0 %1881
    %v1883 = vsel %vm142, %v1875, 0.0
    %1884 = vadd.xlane.f32.xlu0 %v1883
    %v1885 = vpop.xlane.xlu0 %1884
    %v1886 = vmul.f32 %v1882, %v155
    %v1887 = vmul.f32 %v1885, %v155
    %v1888 = vsub.f32 %v1874, %v1886
    %v1889 = vsub.f32 %v1875, %v1887
    %v1890 = vmul.f32 %v1888, %v1888
    %v1891 = vmul.f32 %v1889, %v1889
    %v1892 = vsel %vm142, %v1890, 0.0
    %1893 = vadd.xlane.f32.xlu0 %v1892
    %v1894 = vpop.xlane.xlu0 %1893
    %v1895 = vsel %vm142, %v1891, 0.0
    %1896 = vadd.xlane.f32.xlu0 %v1895
    %v1897 = vpop.xlane.xlu0 %1896
    %v1898 = vmul.f32 %v1894, %v155
    %v1899 = vmul.f32 %v1897, %v155
    %v1900 = vadd.f32 %v1898, 1e-12
    %v1901 = vadd.f32 %v1899, 1e-12
    %v1902 = vrsqrt.pop %v1900
    %v1903 = vmul.f32 %v1902, %v1900
    %v1904 = vmul.f32 %v1903, %v1902
    %v1905 = vmul.f32 0.5, %v1904
    %v1906 = vsub.f32 1.5, %v1905
    %v1907 = vmul.f32 %v1902, %v1906
    %vm1908 = vweird.f32 %v1900
    %vm1909 = vweird.f32 %v1902
    %vm1910 = vmor %vm1908, %vm1909
    %v1911 = vsel %vm1910, %v1902, %v1907
    %v1912 = vrsqrt.pop %v1901
    %v1913 = vmul.f32 %v1912, %v1901
    %v1914 = vmul.f32 %v1913, %v1912
    %v1915 = vmul.f32 0.5, %v1914
    %v1916 = vsub.f32 1.5, %v1915
    %v1917 = vmul.f32 %v1912, %v1916
    %vm1918 = vweird.f32 %v1901
    %vm1919 = vweird.f32 %v1912
    %vm1920 = vmor %vm1918, %vm1919
    %v1921 = vsel %vm1920, %v1912, %v1917
    %v1922 = vmul.f32 %v1888, %v1911
    %v1923 = vmul.f32 %v1889, %v1921
    %v1925 = vperm.slane %v1877, 0
    %v1927 = vmul.f32 %v1922, %v1925
    %v1928 = vmul.f32 %v1923, %v1925
    %v1930 = vperm.slane %v1879, 0
    %v1932 = vadd.f32 %v1927, %v1930
    %v1933 = vadd.f32 %v1928, %v1930
    %s1934 = scalar_lea.vmem [#allocation5], 32
    %v1935 = vld [vmem:[%s1934] sm:$0xff]
    %v1936 = vld [vmem:[%s1934 + $0x8] sm:$0xff]
    %v1937 = vld [vmem:[%s1934 + $0x10] sm:$0xff]
    %v1938 = vld [vmem:[%s1934 + $0x18] sm:$0xff]
    %s1939 = scalar_lea.vmem %s13, 1
    %v1940 = vld [vmem:[%s1939] sm:$0x1]
    %v1942 = vperm.slane %v1940, 0
    %v1945 = vsel %vm142, %v1932, 0
    %v1948 = vsel %vm142, %v1933, 0
    %1950 = vmatpush.msra.mxu0 0.0
    %1951 = vmatpush.msra.mxu0 0.0
    %1952 = vmatpush.msra.mxu0 0.0
    %1953 = vmatpush.msra.mxu0 0.0
    %1954 = vmatpush.msra.mxu0 0.0
    %1955 = vmatpush.msra.mxu0 0.0
    %1956 = vmatpush.msra.mxu0 0.0
    %1957 = vmatpush.msra.mxu0 0.0
    %1958 = vmatpush.msra.mxu0 0.0
    %1959 = vmatpush.msra.mxu0 0.0
    %1960 = vmatpush.msra.mxu0 0.0
    %1961 = vmatpush.msra.mxu0 0.0
    %1962 = vmatpush.msra.mxu0 %v1938
    %1963 = vmatpush.msra.mxu0 %v1937
    %1964 = vmatpush.msra.mxu0 %v1936
    %1965 = vmatpush.msra.mxu0 %v1935
    %1966 = vmatmul.f32.gmra.mxu0 %v1945
    %v1967 = vpop.f32.mrf.mxu0
    %v1968 = vadd.f32 %v1942, %v1967
    %1969 = vmatmul.f32.gmra.mxu0 %v1948
    %v1970 = vpop.f32.mrf.mxu0
    %v1971 = vadd.f32 %v1942, %v1970
    %1972 = vdwg.mxu0
    %v1973 = vmul.f32 %v1968, 0.5
    %v1974 = vmul.f32 %v1971, 0.5
    %v1975 = vmul.f32 %v1968, 0.70710677
    %v1976 = vmul.f32 %v1971, 0.70710677
    %v1977 = vmul.f32 %v1975, %v1975
    %v1978 = vmin.f32 16.0, %v1977
    %v1979 = vmul.f32 %v1978, 2.1237322e-06
    %v1980 = vadd.f32 %v1979, 0.00028619796
    %v1981 = vmul.f32 %v1978, %v1980
    %v1982 = vadd.f32 %v1981, 0.0036580483
    %v1983 = vmul.f32 %v1978, %v1982
    %v1984 = vadd.f32 %v1983, 0.05243302
    %v1985 = vmul.f32 %v1978, %v1984
    %v1986 = vadd.f32 %v1985, 0.18741608
    %v1987 = vmul.f32 %v1978, %v1986
    %v1988 = vadd.f32 %v1987, 1.1283791
    %v1989 = vmul.f32 %v1975, %v1988
    %v1990 = vmul.f32 %v1978, 3.8918573e-05
    %v1991 = vadd.f32 %v1990, 0.001143296
    %v1992 = vmul.f32 %v1978, %v1991
    %v1993 = vadd.f32 %v1992, 0.014752088
    %v1994 = vmul.f32 %v1978, %v1993
    %v1995 = vadd.f32 %v1994, 0.112945676
    %v1996 = vmul.f32 %v1978, %v1995
    %v1997 = vadd.f32 %v1996, 0.4994258
    %v1998 = vmul.f32 %v1978, %v1997
    %v1999 = vadd.f32 %v1998, 1.0
    %v2000 = vrcp.pop %v1999
    %v2001 = vmul.f32 %v1999, %v2000
    %v2002 = vsub.f32 1.0, %v2001
    %v2003 = vmul.f32 %v2000, %v2002
    %v2004 = vadd.f32 %v2000, %v2003
    %vm2005 = vweird.f32 %v1999
    %vm2006 = vweird.f32 %v2000
    %vm2007 = vmor %vm2005, %vm2006
    %v2008 = vsel %vm2007, %v2000, %v2004
    %v2009 = vand.u32 2147483647, %v1999
    %vm2010 = vcmp.eq.f32.partialorder %v2009, 8.507059e+37
    %v2011 = vand.u32 %v1999, 2147483648
    %v2012 = vor.u32 1.1754944e-38, %v2011
    %v2013 = vsel %vm2010, %v2012, %v2008
    %v2014 = vmul.f32 %v1989, %v2013
    %v2015 = vmin.f32 %v2014, 1.0
    %v2016 = vmax.f32 %v2015, -1.0
    %v2017 = vmul.f32 %v1976, %v1976
    %v2018 = vmin.f32 16.0, %v2017
    %v2019 = vmul.f32 %v2018, 2.1237322e-06
    %v2020 = vadd.f32 %v2019, 0.00028619796
    %v2021 = vmul.f32 %v2018, %v2020
    %v2022 = vadd.f32 %v2021, 0.0036580483
    %v2023 = vmul.f32 %v2018, %v2022
    %v2024 = vadd.f32 %v2023, 0.05243302
    %v2025 = vmul.f32 %v2018, %v2024
    %v2026 = vadd.f32 %v2025, 0.18741608
    %v2027 = vmul.f32 %v2018, %v2026
    %v2028 = vadd.f32 %v2027, 1.1283791
    %v2029 = vmul.f32 %v1976, %v2028
    %v2030 = vmul.f32 %v2018, 3.8918573e-05
    %v2031 = vadd.f32 %v2030, 0.001143296
    %v2032 = vmul.f32 %v2018, %v2031
    %v2033 = vadd.f32 %v2032, 0.014752088
    %v2034 = vmul.f32 %v2018, %v2033
    %v2035 = vadd.f32 %v2034, 0.112945676
    %v2036 = vmul.f32 %v2018, %v2035
    %v2037 = vadd.f32 %v2036, 0.4994258
    %v2038 = vmul.f32 %v2018, %v2037
    %v2039 = vadd.f32 %v2038, 1.0
    %v2040 = vrcp.pop %v2039
    %v2041 = vmul.f32 %v2039, %v2040
    %v2042 = vsub.f32 1.0, %v2041
    %v2043 = vmul.f32 %v2040, %v2042
    %v2044 = vadd.f32 %v2040, %v2043
    %vm2045 = vweird.f32 %v2039
    %vm2046 = vweird.f32 %v2040
    %vm2047 = vmor %vm2045, %vm2046
    %v2048 = vsel %vm2047, %v2040, %v2044
    %v2049 = vand.u32 2147483647, %v2039
    %vm2050 = vcmp.eq.f32.partialorder %v2049, 8.507059e+37
    %v2051 = vand.u32 %v2039, 2147483648
    %v2052 = vor.u32 1.1754944e-38, %v2051
    %v2053 = vsel %vm2050, %v2052, %v2048
    %v2054 = vmul.f32 %v2029, %v2053
    %v2055 = vmin.f32 %v2054, 1.0
    %v2056 = vmax.f32 %v2055, -1.0
    %v2057 = vadd.f32 %v2016, 1.0
    %v2058 = vadd.f32 %v2056, 1.0
    %v2059 = vmul.f32 %v1973, %v2057
    %v2060 = vmul.f32 %v1974, %v2058
    %s2061 = scalar_lea.vmem %s14, 64
    %v2062 = vld [vmem:[%s2061] sm:$0xff]
    %v2063 = vld [vmem:[%s2061 + $0x8] sm:$0xff]
    %v2064 = vld [vmem:[%s2061 + $0x10] sm:$0xff]
    %v2065 = vld [vmem:[%s2061 + $0x18] sm:$0xff]
    %v2066 = vld [vmem:[%s2061 + $0x20] sm:$0xff]
    %v2067 = vld [vmem:[%s2061 + $0x28] sm:$0xff]
    %v2068 = vld [vmem:[%s2061 + $0x30] sm:$0xff]
    %v2069 = vld [vmem:[%s2061 + $0x38] sm:$0xff]
    %s2070 = scalar_lea.vmem %s15, 1
    %v2071 = vld [vmem:[%s2070] sm:$0x1]
    %v2073 = vperm.slane %v2071, 0
    %v2076 = vsel %vm1092, %v2059, 0
    %v2079 = vsel %vm1092, %v2060, 0
    %2081 = vmatpush.msra.mxu0 0.0
    %2082 = vmatpush.msra.mxu0 0.0
    %2083 = vmatpush.msra.mxu0 0.0
    %2084 = vmatpush.msra.mxu0 0.0
    %2085 = vmatpush.msra.mxu0 0.0
    %2086 = vmatpush.msra.mxu0 0.0
    %2087 = vmatpush.msra.mxu0 0.0
    %2088 = vmatpush.msra.mxu0 0.0
    %2089 = vmatpush.msra.mxu0 %v2069
    %2090 = vmatpush.msra.mxu0 %v2068
    %2091 = vmatpush.msra.mxu0 %v2067
    %2092 = vmatpush.msra.mxu0 %v2066
    %2093 = vmatpush.msra.mxu0 %v2065
    %2094 = vmatpush.msra.mxu0 %v2064
    %2095 = vmatpush.msra.mxu0 %v2063
    %2096 = vmatpush.msra.mxu0 %v2062
    %2097 = vmatmul.f32.gmra.mxu0 %v2076
    %v2098 = vpop.f32.mrf.mxu0
    %v2099 = vadd.f32 %v2073, %v2098
    %2100 = vmatmul.f32.gmra.mxu0 %v2079
    %v2101 = vpop.f32.mrf.mxu0
    %v2102 = vadd.f32 %v2073, %v2101
    %2103 = vdwg.mxu0
    %v2104 = vadd.f32 %v1932, %v2099
    %v2105 = vadd.f32 %v1933, %v2102
    %s2106 = scalar_lea.vmem %s16, 1
    %v2107 = vld [vmem:[%s2106] sm:$0x1]
    %s2108 = scalar_lea.vmem %s17, 1
    %v2109 = vld [vmem:[%s2108] sm:$0x1]
    %v2110 = vsel %vm142, %v2104, 0.0
    %2111 = vadd.xlane.f32.xlu0 %v2110
    %v2112 = vpop.xlane.xlu0 %2111
    %v2113 = vsel %vm142, %v2105, 0.0
    %2114 = vadd.xlane.f32.xlu0 %v2113
    %v2115 = vpop.xlane.xlu0 %2114
    %v2116 = vmul.f32 %v2112, %v155
    %v2117 = vmul.f32 %v2115, %v155
    %v2118 = vsub.f32 %v2104, %v2116
    %v2119 = vsub.f32 %v2105, %v2117
    %v2120 = vmul.f32 %v2118, %v2118
    %v2121 = vmul.f32 %v2119, %v2119
    %v2122 = vsel %vm142, %v2120, 0.0
    %2123 = vadd.xlane.f32.xlu0 %v2122
    %v2124 = vpop.xlane.xlu0 %2123
    %v2125 = vsel %vm142, %v2121, 0.0
    %2126 = vadd.xlane.f32.xlu0 %v2125
    %v2127 = vpop.xlane.xlu0 %2126
    %v2128 = vmul.f32 %v2124, %v155
    %v2129 = vmul.f32 %v2127, %v155
    %v2130 = vadd.f32 %v2128, 1e-12
    %v2131 = vadd.f32 %v2129, 1e-12
    %v2132 = vrsqrt.pop %v2130
    %v2133 = vmul.f32 %v2132, %v2130
    %v2134 = vmul.f32 %v2133, %v2132
    %v2135 = vmul.f32 0.5, %v2134
    %v2136 = vsub.f32 1.5, %v2135
    %v2137 = vmul.f32 %v2132, %v2136
    %vm2138 = vweird.f32 %v2130
    %vm2139 = vweird.f32 %v2132
    %vm2140 = vmor %vm2138, %vm2139
    %v2141 = vsel %vm2140, %v2132, %v2137
    %v2142 = vrsqrt.pop %v2131
    %v2143 = vmul.f32 %v2142, %v2131
    %v2144 = vmul.f32 %v2143, %v2142
    %v2145 = vmul.f32 0.5, %v2144
    %v2146 = vsub.f32 1.5, %v2145
    %v2147 = vmul.f32 %v2142, %v2146
    %vm2148 = vweird.f32 %v2131
    %vm2149 = vweird.f32 %v2142
    %vm2150 = vmor %vm2148, %vm2149
    %v2151 = vsel %vm2150, %v2142, %v2147
    %v2152 = vmul.f32 %v2118, %v2141
    %v2153 = vmul.f32 %v2119, %v2151
    %v2155 = vperm.slane %v2107, 0
    %v2157 = vmul.f32 %v2152, %v2155
    %v2158 = vmul.f32 %v2153, %v2155
    %v2160 = vperm.slane %v2109, 0
    %v2162 = vadd.f32 %v2157, %v2160
    %v2163 = vadd.f32 %v2158, %v2160
    %v2164 = vld [vmem:[%s18] sm:$0x3]
    %v2166 = vsel %vm854, %v2164, 0
    %2168 = vmatpush.msra.mxu0 0.0
    %2169 = vmatpush.msra.mxu0 0.0
    %2170 = vmatpush.msra.mxu0 0.0
    %2171 = vmatpush.msra.mxu0 0.0
    %2172 = vmatpush.msra.mxu0 0.0
    %2173 = vmatpush.msra.mxu0 0.0
    %2174 = vmatpush.msra.mxu0 0.0
    %2175 = vmatpush.msra.mxu0 0.0
    %2176 = vmatpush.msra.mxu0 0.0
    %2177 = vmatpush.msra.mxu0 0.0
    %2178 = vmatpush.msra.mxu0 0.0
    %2179 = vmatpush.msra.mxu0 0.0
    %2180 = vmatpush.msra.mxu0 0.0
    %2181 = vmatpush.msra.mxu0 0.0
    %2182 = vmatpush.msra.mxu0 %v2163
    %2183 = vmatpush.msra.mxu0 %v2162
    %2184 = vmatmul.f32.gmra.mxu0 %v2166
    %v2185 = vpop.f32.mrf.mxu0
    %v2186 = vadd.f32 0.0, %v2185
    %2187 = vdwg.mxu0
    %vm2188 = vcmask 254976
    %2189 = vst.msk [vmem:[#allocation7] sm:$0x3] %vm2188, %v2186
    // Predicated region
    $region86: #{transformer_encoder_forward.1} parent=1 // pred_check
      _
    $region87: #{transformer_encoder_forward.1} parent=1 // pred_check_branch
      %2191 = sbr.rel (0) target = $region89
    $region88: #{transformer_encoder_forward.1} parent=1 // pred_region
      %2193 = vsyncadd [#allocation4], 0
      %s2195 = sshll.u32 [#allocation7], 4
      %s2196 = int_to_ptr.vmem [resolvable:$true] %s2195
      %s2197 = sshll.u32 %s19, 4
      %s2198 = int_to_ptr.hbm [resolvable:$true] %s2197
      %2200 = dma.vmem_to_hbm [thread:$0]  %s2196, 32, %s2198, [#allocation4]
    $region89: #{transformer_encoder_forward.1} parent=1 // pred_fallthru
      _
    // Predicated region
    $region90: #{transformer_encoder_forward.1} parent=1 // pred_check
      _
    $region91: #{transformer_encoder_forward.1} parent=1 // pred_check_branch
      %2202 = sbr.rel (0) target = $region93
    $region92: #{transformer_encoder_forward.1} parent=1 // pred_region
      %2204 = dma.done [#allocation4], 32
    $region93: #{transformer_encoder_forward.1} parent=1 // pred_fallthru
      _
    %2205 = vsyncpa [#allocation3], 1
    %2206 = vsyncpa [#allocation6], 1
    %2207 = vsyncpa [#allocation4], 1

</llo_original>
